<compile_context>
chip_gen: v7x
topology: tpu7x:2x2x1
jax: 0.10.0
libtpu: 0.0.40
codegen_flags: <defaults>
</compile_context>

<pallas_src>
import functools

import jax
import jax.numpy as jnp
from jax import lax
from jax.experimental import pallas as pl
from jax.experimental.pallas import tpu as pltpu

# ---- model hyperparameters (small, consistent with the module) ----
D_MODEL = 32
NUM_HEADS = 4
D_HEAD = D_MODEL // NUM_HEADS
D_FF = 64
LN_EPS = 1e-5


# ----------------------------- in-kernel helpers -----------------------------

def _layer_norm(x, g, b):
    inv_d = 1.0 / D_MODEL
    mean = jnp.sum(x, axis=-1, keepdims=True) * inv_d
    xc = x - mean
    var = jnp.sum(xc * xc, axis=-1, keepdims=True) * inv_d
    return xc * lax.rsqrt(var + LN_EPS) * g + b


def _attention(q, k, v, attn_ref, *, batch, t_q, t_k):
    """q: (batch*t_q, D); k, v: (batch*t_k, D).

    Writes per-head attention weights to attn_ref[h*batch + b] and returns the
    head-concatenated context of shape (batch*t_q, D).  Head split is done with
    static feature-dim slices (no transposes); the (batch, head) loop is fully
    unrolled at trace time — all operands live in vregs/VMEM.
    """
    scale = 1.0 / float(D_HEAD) ** 0.5
    ctx_rows = [[] for _ in range(batch)]
    for h in range(NUM_HEADS):
        d0 = h * D_HEAD
        for b in range(batch):
            qbh = q[b * t_q:(b + 1) * t_q, d0:d0 + D_HEAD]
            kbh = k[b * t_k:(b + 1) * t_k, d0:d0 + D_HEAD]
            vbh = v[b * t_k:(b + 1) * t_k, d0:d0 + D_HEAD]
            s = lax.dot_general(qbh, kbh, (((1,), (1,)), ((), ())),
                                preferred_element_type=jnp.float32) * scale
            s = s - jnp.max(s, axis=-1, keepdims=True)
            e = jnp.exp(s)
            # divide -> EUP reciprocal + multiply (keeps VALU slot free)
            p = e * pl.reciprocal(jnp.sum(e, axis=-1, keepdims=True), approx=True)
            attn_ref[h * batch + b, :, :] = p.astype(attn_ref.dtype)
            ctx_rows[b].append(jnp.dot(p, vbh, preferred_element_type=jnp.float32))
    return jnp.concatenate([jnp.concatenate(r, axis=-1) for r in ctx_rows], axis=0)


# ----------------------------- fused layer kernel -----------------------------

def _decoder_layer_kernel(x_ref, enc_ref,
                          ln1g_ref, ln1b_ref, wqkv1_ref, bqkv1_ref,
                          ln2g_ref, ln2b_ref, wq2_ref, bq2_ref, wkv2_ref, bkv2_ref,
                          ln3g_ref, ln3b_ref, w1_ref, b1_ref, w2_ref, b2_ref,
                          out_ref, self_attn_ref, enc_attn_ref,
                          *, batch, t_dec, t_enc):
    x = x_ref[...].astype(jnp.float32)        # (B*Tq, D)  residual stream
    enc = enc_ref[...].astype(jnp.float32)    # (B*Tk, D)

    # --- self-attention block (pre-norm, fused QKV projection) ---
    xn = _layer_norm(x, ln1g_ref[...], ln1b_ref[...])
    qkv = jnp.dot(xn, wqkv1_ref[...], preferred_element_type=jnp.float32) + bqkv1_ref[...]
    ctx = _attention(qkv[:, :D_MODEL], qkv[:, D_MODEL:2 * D_MODEL], qkv[:, 2 * D_MODEL:],
                     self_attn_ref, batch=batch, t_q=t_dec, t_k=t_dec)
    x = x + ctx

    # --- decoder (cross) attention block (pre-norm, fused KV projection) ---
    xn = _layer_norm(x, ln2g_ref[...], ln2b_ref[...])
    q = jnp.dot(xn, wq2_ref[...], preferred_element_type=jnp.float32) + bq2_ref[...]
    kv = jnp.dot(enc, wkv2_ref[...], preferred_element_type=jnp.float32) + bkv2_ref[...]
    ctx = _attention(q, kv[:, :D_MODEL], kv[:, D_MODEL:],
                     enc_attn_ref, batch=batch, t_q=t_dec, t_k=t_enc)
    x = x + ctx

    # --- feed-forward block (pre-norm); dropout = identity in eval ---
    xn = _layer_norm(x, ln3g_ref[...], ln3b_ref[...])
    h = jnp.dot(xn, w1_ref[...], preferred_element_type=jnp.float32) + b1_ref[...]
    h = jnp.maximum(h, 0.0)
    y = jnp.dot(h, w2_ref[...], preferred_element_type=jnp.float32) + b2_ref[...]
    x = x + y

    out_ref[...] = x.astype(out_ref.dtype)


# ----------------------------- wrapper -----------------------------

def _full_spec(shape):
    nd = len(shape)
    return pl.BlockSpec(shape, lambda *_: (0,) * nd)


def transformer_decoder_layer(inputs, encoder_outputs, params,
                              self_attn_mask=None, encoder_attn_mask=None):
    """inputs: (B, Tq, D); encoder_outputs: (B, Tk, D)."""
    # TODO(synk): masks must be None; masked_fill(-inf) attention-mask path not implemented.
    B, Tq, D = inputs.shape
    Tk = encoder_outputs.shape[1]

    args = (
        inputs.reshape(B * Tq, D), encoder_outputs.reshape(B * Tk, D),
        params["ln1_g"], params["ln1_b"], params["wqkv1"], params["bqkv1"],
        params["ln2_g"], params["ln2_b"], params["wq2"], params["bq2"],
        params["wkv2"], params["bkv2"],
        params["ln3_g"], params["ln3_b"], params["w1"], params["b1"],
        params["w2"], params["b2"],
    )
    kernel = functools.partial(_decoder_layer_kernel, batch=B, t_dec=Tq, t_enc=Tk)
    out, self_attn, enc_attn = pl.pallas_call(
        kernel,
        out_shape=(
            jax.ShapeDtypeStruct((B * Tq, D), inputs.dtype),
            jax.ShapeDtypeStruct((NUM_HEADS * B, Tq, Tq), jnp.float32),
            jax.ShapeDtypeStruct((NUM_HEADS * B, Tq, Tk), jnp.float32),
        ),
        in_specs=[_full_spec(a.shape) for a in args],
        out_specs=(
            _full_spec((B * Tq, D)),
            _full_spec((NUM_HEADS * B, Tq, Tq)),
            _full_spec((NUM_HEADS * B, Tq, Tk)),
        ),
        compiler_params=pltpu.CompilerParams(vmem_limit_bytes=32 * 1024 * 1024),
    )(*args)
    return out.reshape(B, Tq, D), self_attn, enc_attn


# ----------------------------- parameter init -----------------------------

def init_params(key):
    ks = jax.random.split(key, 5)

    def dense(k, din, dout):
        w = jax.random.normal(k, (din, dout), jnp.float32) * 0.02
        b = jnp.zeros((1, dout), jnp.float32)
        return w, b

    wqkv1, bqkv1 = dense(ks[0], D_MODEL, 3 * D_MODEL)   # self-attn fused Q|K|V
    wq2, bq2 = dense(ks[1], D_MODEL, D_MODEL)           # cross-attn Q
    wkv2, bkv2 = dense(ks[2], D_MODEL, 2 * D_MODEL)     # cross-attn fused K|V
    w1, b1 = dense(ks[3], D_MODEL, D_FF)
    w2, b2 = dense(ks[4], D_FF, D_MODEL)

    ones = jnp.ones((1, D_MODEL), jnp.float32)
    zeros = jnp.zeros((1, D_MODEL), jnp.float32)
    return dict(
        ln1_g=ones, ln1_b=zeros, ln2_g=ones, ln2_b=zeros, ln3_g=ones, ln3_b=zeros,
        wqkv1=wqkv1, bqkv1=bqkv1, wq2=wq2, bq2=bq2, wkv2=wkv2, bkv2=bkv2,
        w1=w1, b1=b1, w2=w2, b2=b2,
    )


# ----------------------------- main -----------------------------

if __name__ == "__main__":
    key = jax.random.PRNGKey(0)
    k_param, k_in, k_enc = jax.random.split(key, 3)

    B, T_DEC, T_ENC = 2, 8, 16
    params = init_params(k_param)
    inputs = jax.random.normal(k_in, (B, T_DEC, D_MODEL), jnp.float32)
    encoder_outputs = jax.random.normal(k_enc, (B, T_ENC, D_MODEL), jnp.float32)

    layer = jax.jit(transformer_decoder_layer)
    outputs, self_attn, encoder_attn = layer(inputs, encoder_outputs, params)
    jax.block_until_ready((outputs, self_attn, encoder_attn))

    assert outputs.shape == (B, T_DEC, D_MODEL)
    assert self_attn.shape == (NUM_HEADS * B, T_DEC, T_DEC)
    assert encoder_attn.shape == (NUM_HEADS * B, T_DEC, T_ENC)
    assert bool(jnp.all(jnp.isfinite(outputs)))
    print("KERNEL_OK")
</pallas_src>

<mosaic_0001>
module attributes {stable_mosaic.version = 11 : i64} {
  func.func @_decoder_layer_kernel(%arg0: memref<16x32xf32, #tpu.memory_space<vmem>>, %arg1: memref<32x32xf32, #tpu.memory_space<vmem>>, %arg2: memref<1x32xf32, #tpu.memory_space<vmem>>, %arg3: memref<1x32xf32, #tpu.memory_space<vmem>>, %arg4: memref<32x96xf32, #tpu.memory_space<vmem>>, %arg5: memref<1x96xf32, #tpu.memory_space<vmem>>, %arg6: memref<1x32xf32, #tpu.memory_space<vmem>>, %arg7: memref<1x32xf32, #tpu.memory_space<vmem>>, %arg8: memref<32x32xf32, #tpu.memory_space<vmem>>, %arg9: memref<1x32xf32, #tpu.memory_space<vmem>>, %arg10: memref<32x64xf32, #tpu.memory_space<vmem>>, %arg11: memref<1x64xf32, #tpu.memory_space<vmem>>, %arg12: memref<1x32xf32, #tpu.memory_space<vmem>>, %arg13: memref<1x32xf32, #tpu.memory_space<vmem>>, %arg14: memref<32x64xf32, #tpu.memory_space<vmem>>, %arg15: memref<1x64xf32, #tpu.memory_space<vmem>>, %arg16: memref<64x32xf32, #tpu.memory_space<vmem>>, %arg17: memref<1x32xf32, #tpu.memory_space<vmem>>, %arg18: memref<16x32xf32, #tpu.memory_space<vmem>>, %arg19: memref<8x8x8xf32, #tpu.memory_space<vmem>>, %arg20: memref<8x8x16xf32, #tpu.memory_space<vmem>>) attributes {dimension_semantics = [], scalar_prefetch = 0 : i64, scratch_operands = 0 : i64, tpu.core_type = #tpu.core_type<tc>} {
    %c0 = arith.constant 0 : index
    %c0_0 = arith.constant 0 : index
    %0 = vector.load %arg0[%c0, %c0_0] : memref<16x32xf32, #tpu.memory_space<vmem>>, vector<16x32xf32>
    %c0_1 = arith.constant 0 : index
    %c0_2 = arith.constant 0 : index
    %1 = vector.load %arg1[%c0_1, %c0_2] : memref<32x32xf32, #tpu.memory_space<vmem>>, vector<32x32xf32>
    %c0_3 = arith.constant 0 : index
    %c0_4 = arith.constant 0 : index
    %2 = vector.load %arg2[%c0_3, %c0_4] : memref<1x32xf32, #tpu.memory_space<vmem>>, vector<1x32xf32>
    %c0_5 = arith.constant 0 : index
    %c0_6 = arith.constant 0 : index
    %3 = vector.load %arg3[%c0_5, %c0_6] : memref<1x32xf32, #tpu.memory_space<vmem>>, vector<1x32xf32>
    %cst = arith.constant dense<0.000000e+00> : vector<16xf32>
    %4 = vector.multi_reduction <add>, %0, %cst [1] : vector<16x32xf32> to vector<16xf32>
    %5 = vector.shape_cast %4 : vector<16xf32> to vector<16x1xf32>
    %cst_7 = arith.constant 3.125000e-02 : f32
    %6 = vector.broadcast %cst_7 : f32 to vector<16x1xf32>
    %7 = arith.mulf %5, %6 : vector<16x1xf32>
    %8 = vector.broadcast %7 : vector<16x1xf32> to vector<16x32xf32>
    %9 = arith.subf %0, %8 : vector<16x32xf32>
    %10 = arith.mulf %9, %9 : vector<16x32xf32>
    %cst_8 = arith.constant dense<0.000000e+00> : vector<16xf32>
    %11 = vector.multi_reduction <add>, %10, %cst_8 [1] : vector<16x32xf32> to vector<16xf32>
    %12 = vector.shape_cast %11 : vector<16xf32> to vector<16x1xf32>
    %cst_9 = arith.constant 3.125000e-02 : f32
    %13 = vector.broadcast %cst_9 : f32 to vector<16x1xf32>
    %14 = arith.mulf %12, %13 : vector<16x1xf32>
    %cst_10 = arith.constant 9.99999974E-6 : f32
    %15 = vector.broadcast %cst_10 : f32 to vector<16x1xf32>
    %16 = arith.addf %14, %15 : vector<16x1xf32>
    %17 = math.rsqrt %16 : vector<16x1xf32>
    %18 = vector.broadcast %17 : vector<16x1xf32> to vector<16x32xf32>
    %19 = arith.mulf %9, %18 : vector<16x32xf32>
    %20 = vector.broadcast %2 : vector<1x32xf32> to vector<16x32xf32>
    %21 = arith.mulf %19, %20 : vector<16x32xf32>
    %22 = vector.broadcast %3 : vector<1x32xf32> to vector<16x32xf32>
    %23 = arith.addf %21, %22 : vector<16x32xf32>
    %c0_11 = arith.constant 0 : index
    %c0_12 = arith.constant 0 : index
    %24 = vector.load %arg4[%c0_11, %c0_12] : memref<32x96xf32, #tpu.memory_space<vmem>>, vector<32x96xf32>
    %cst_13 = arith.constant dense<0.000000e+00> : vector<16x96xf32>
    %25 = tpu.matmul %23, %24, %cst_13 {dimension_numbers = #tpu.dot_dimension_numbers<[1], [0], [0], [1], [0, 0, 1, 1], [], []>} : vector<16x32xf32>, vector<32x96xf32>, vector<16x96xf32> -> vector<16x96xf32>
    %c0_14 = arith.constant 0 : index
    %c0_15 = arith.constant 0 : index
    %26 = vector.load %arg5[%c0_14, %c0_15] : memref<1x96xf32, #tpu.memory_space<vmem>>, vector<1x96xf32>
    %27 = vector.broadcast %26 : vector<1x96xf32> to vector<16x96xf32>
    %28 = arith.addf %25, %27 : vector<16x96xf32>
    %29 = vector.extract_strided_slice %28 {offsets = [0, 0], sizes = [16, 32], strides = [1, 1]} : vector<16x96xf32> to vector<16x32xf32>
    %30 = vector.extract_strided_slice %28 {offsets = [0, 32], sizes = [16, 32], strides = [1, 1]} : vector<16x96xf32> to vector<16x32xf32>
    %31 = vector.extract_strided_slice %28 {offsets = [0, 64], sizes = [16, 32], strides = [1, 1]} : vector<16x96xf32> to vector<16x32xf32>
    %32 = vector.extract_strided_slice %29 {offsets = [0, 0], sizes = [8, 8], strides = [1, 1]} : vector<16x32xf32> to vector<8x8xf32>
    %33 = vector.extract_strided_slice %30 {offsets = [0, 0], sizes = [8, 8], strides = [1, 1]} : vector<16x32xf32> to vector<8x8xf32>
    %34 = vector.extract_strided_slice %31 {offsets = [0, 0], sizes = [8, 8], strides = [1, 1]} : vector<16x32xf32> to vector<8x8xf32>
    %cst_16 = arith.constant dense<0.000000e+00> : vector<8x8xf32>
    %35 = tpu.matmul %32, %33, %cst_16 {dimension_numbers = #tpu.dot_dimension_numbers<[1], [1], [0], [0], [0, 0, 1, 0], [], []>} : vector<8x8xf32>, vector<8x8xf32>, vector<8x8xf32> -> vector<8x8xf32>
    %cst_17 = arith.constant 0.353553385 : f32
    %36 = vector.broadcast %cst_17 : f32 to vector<8x8xf32>
    %37 = arith.mulf %35, %36 : vector<8x8xf32>
    %cst_18 = arith.constant dense<0xFF800000> : vector<8xf32>
    %38 = vector.multi_reduction <maximumf>, %37, %cst_18 [1] : vector<8x8xf32> to vector<8xf32>
    %39 = vector.shape_cast %38 : vector<8xf32> to vector<8x1xf32>
    %40 = vector.broadcast %39 : vector<8x1xf32> to vector<8x8xf32>
    %41 = arith.subf %37, %40 : vector<8x8xf32>
    %42 = math.exp %41 : vector<8x8xf32>
    %cst_19 = arith.constant dense<0.000000e+00> : vector<8xf32>
    %43 = vector.multi_reduction <add>, %42, %cst_19 [1] : vector<8x8xf32> to vector<8xf32>
    %44 = vector.shape_cast %43 : vector<8xf32> to vector<8x1xf32>
    %45 = tpu.reciprocal %44 {approx = true} : vector<8x1xf32> -> vector<8x1xf32>
    %46 = vector.broadcast %45 : vector<8x1xf32> to vector<8x8xf32>
    %47 = arith.mulf %42, %46 : vector<8x8xf32>
    %c0_20 = arith.constant 0 : index
    %c0_21 = arith.constant 0 : index
    %c0_22 = arith.constant 0 : index
    %48 = vector.load %arg19[%c0_20, %c0_21, %c0_22] : memref<8x8x8xf32, #tpu.memory_space<vmem>>, vector<1x8x8xf32>
    %49 = vector.shape_cast %48 : vector<1x8x8xf32> to vector<8x8xf32>
    %50 = vector.shape_cast %47 : vector<8x8xf32> to vector<1x8x8xf32>
    tpu.vector_store %arg19[%c0_20, %c0_21, %c0_22], %50 {strides = array<i32>} : memref<8x8x8xf32, #tpu.memory_space<vmem>>, vector<1x8x8xf32>,
    %cst_23 = arith.constant dense<0.000000e+00> : vector<8x8xf32>
    %51 = tpu.matmul %47, %34, %cst_23 {dimension_numbers = #tpu.dot_dimension_numbers<[1], [0], [0], [1], [0, 0, 1, 1], [], []>} : vector<8x8xf32>, vector<8x8xf32>, vector<8x8xf32> -> vector<8x8xf32>
    %52 = vector.extract_strided_slice %29 {offsets = [8, 0], sizes = [8, 8], strides = [1, 1]} : vector<16x32xf32> to vector<8x8xf32>
    %53 = vector.extract_strided_slice %30 {offsets = [8, 0], sizes = [8, 8], strides = [1, 1]} : vector<16x32xf32> to vector<8x8xf32>
    %54 = vector.extract_strided_slice %31 {offsets = [8, 0], sizes = [8, 8], strides = [1, 1]} : vector<16x32xf32> to vector<8x8xf32>
    %cst_24 = arith.constant dense<0.000000e+00> : vector<8x8xf32>
    %55 = tpu.matmul %52, %53, %cst_24 {dimension_numbers = #tpu.dot_dimension_numbers<[1], [1], [0], [0], [0, 0, 1, 0], [], []>} : vector<8x8xf32>, vector<8x8xf32>, vector<8x8xf32> -> vector<8x8xf32>
    %cst_25 = arith.constant 0.353553385 : f32
    %56 = vector.broadcast %cst_25 : f32 to vector<8x8xf32>
    %57 = arith.mulf %55, %56 : vector<8x8xf32>
    %cst_26 = arith.constant dense<0xFF800000> : vector<8xf32>
    %58 = vector.multi_reduction <maximumf>, %57, %cst_26 [1] : vector<8x8xf32> to vector<8xf32>
    %59 = vector.shape_cast %58 : vector<8xf32> to vector<8x1xf32>
    %60 = vector.broadcast %59 : vector<8x1xf32> to vector<8x8xf32>
    %61 = arith.subf %57, %60 : vector<8x8xf32>
    %62 = math.exp %61 : vector<8x8xf32>
    %cst_27 = arith.constant dense<0.000000e+00> : vector<8xf32>
    %63 = vector.multi_reduction <add>, %62, %cst_27 [1] : vector<8x8xf32> to vector<8xf32>
    %64 = vector.shape_cast %63 : vector<8xf32> to vector<8x1xf32>
    %65 = tpu.reciprocal %64 {approx = true} : vector<8x1xf32> -> vector<8x1xf32>
    %66 = vector.broadcast %65 : vector<8x1xf32> to vector<8x8xf32>
    %67 = arith.mulf %62, %66 : vector<8x8xf32>
    %c1 = arith.constant 1 : index
    %c0_28 = arith.constant 0 : index
    %c0_29 = arith.constant 0 : index
    %68 = vector.load %arg19[%c1, %c0_28, %c0_29] : memref<8x8x8xf32, #tpu.memory_space<vmem>>, vector<1x8x8xf32>
    %69 = vector.shape_cast %68 : vector<1x8x8xf32> to vector<8x8xf32>
    %70 = vector.shape_cast %67 : vector<8x8xf32> to vector<1x8x8xf32>
    tpu.vector_store %arg19[%c1, %c0_28, %c0_29], %70 {strides = array<i32>} : memref<8x8x8xf32, #tpu.memory_space<vmem>>, vector<1x8x8xf32>,
    %cst_30 = arith.constant dense<0.000000e+00> : vector<8x8xf32>
    %71 = tpu.matmul %67, %54, %cst_30 {dimension_numbers = #tpu.dot_dimension_numbers<[1], [0], [0], [1], [0, 0, 1, 1], [], []>} : vector<8x8xf32>, vector<8x8xf32>, vector<8x8xf32> -> vector<8x8xf32>
    %72 = vector.extract_strided_slice %29 {offsets = [0, 8], sizes = [8, 8], strides = [1, 1]} : vector<16x32xf32> to vector<8x8xf32>
    %73 = vector.extract_strided_slice %30 {offsets = [0, 8], sizes = [8, 8], strides = [1, 1]} : vector<16x32xf32> to vector<8x8xf32>
    %74 = vector.extract_strided_slice %31 {offsets = [0, 8], sizes = [8, 8], strides = [1, 1]} : vector<16x32xf32> to vector<8x8xf32>
    %cst_31 = arith.constant dense<0.000000e+00> : vector<8x8xf32>
    %75 = tpu.matmul %72, %73, %cst_31 {dimension_numbers = #tpu.dot_dimension_numbers<[1], [1], [0], [0], [0, 0, 1, 0], [], []>} : vector<8x8xf32>, vector<8x8xf32>, vector<8x8xf32> -> vector<8x8xf32>
    %cst_32 = arith.constant 0.353553385 : f32
    %76 = vector.broadcast %cst_32 : f32 to vector<8x8xf32>
    %77 = arith.mulf %75, %76 : vector<8x8xf32>
    %cst_33 = arith.constant dense<0xFF800000> : vector<8xf32>
    %78 = vector.multi_reduction <maximumf>, %77, %cst_33 [1] : vector<8x8xf32> to vector<8xf32>
    %79 = vector.shape_cast %78 : vector<8xf32> to vector<8x1xf32>
    %80 = vector.broadcast %79 : vector<8x1xf32> to vector<8x8xf32>
    %81 = arith.subf %77, %80 : vector<8x8xf32>
    %82 = math.exp %81 : vector<8x8xf32>
    %cst_34 = arith.constant dense<0.000000e+00> : vector<8xf32>
    %83 = vector.multi_reduction <add>, %82, %cst_34 [1] : vector<8x8xf32> to vector<8xf32>
    %84 = vector.shape_cast %83 : vector<8xf32> to vector<8x1xf32>
    %85 = tpu.reciprocal %84 {approx = true} : vector<8x1xf32> -> vector<8x1xf32>
    %86 = vector.broadcast %85 : vector<8x1xf32> to vector<8x8xf32>
    %87 = arith.mulf %82, %86 : vector<8x8xf32>
    %c2 = arith.constant 2 : index
    %c0_35 = arith.constant 0 : index
    %c0_36 = arith.constant 0 : index
    %88 = vector.load %arg19[%c2, %c0_35, %c0_36] : memref<8x8x8xf32, #tpu.memory_space<vmem>>, vector<1x8x8xf32>
    %89 = vector.shape_cast %88 : vector<1x8x8xf32> to vector<8x8xf32>
    %90 = vector.shape_cast %87 : vector<8x8xf32> to vector<1x8x8xf32>
    tpu.vector_store %arg19[%c2, %c0_35, %c0_36], %90 {strides = array<i32>} : memref<8x8x8xf32, #tpu.memory_space<vmem>>, vector<1x8x8xf32>,
    %cst_37 = arith.constant dense<0.000000e+00> : vector<8x8xf32>
    %91 = tpu.matmul %87, %74, %cst_37 {dimension_numbers = #tpu.dot_dimension_numbers<[1], [0], [0], [1], [0, 0, 1, 1], [], []>} : vector<8x8xf32>, vector<8x8xf32>, vector<8x8xf32> -> vector<8x8xf32>
    %92 = vector.extract_strided_slice %29 {offsets = [8, 8], sizes = [8, 8], strides = [1, 1]} : vector<16x32xf32> to vector<8x8xf32>
    %93 = vector.extract_strided_slice %30 {offsets = [8, 8], sizes = [8, 8], strides = [1, 1]} : vector<16x32xf32> to vector<8x8xf32>
    %94 = vector.extract_strided_slice %31 {offsets = [8, 8], sizes = [8, 8], strides = [1, 1]} : vector<16x32xf32> to vector<8x8xf32>
    %cst_38 = arith.constant dense<0.000000e+00> : vector<8x8xf32>
    %95 = tpu.matmul %92, %93, %cst_38 {dimension_numbers = #tpu.dot_dimension_numbers<[1], [1], [0], [0], [0, 0, 1, 0], [], []>} : vector<8x8xf32>, vector<8x8xf32>, vector<8x8xf32> -> vector<8x8xf32>
    %cst_39 = arith.constant 0.353553385 : f32
    %96 = vector.broadcast %cst_39 : f32 to vector<8x8xf32>
    %97 = arith.mulf %95, %96 : vector<8x8xf32>
    %cst_40 = arith.constant dense<0xFF800000> : vector<8xf32>
    %98 = vector.multi_reduction <maximumf>, %97, %cst_40 [1] : vector<8x8xf32> to vector<8xf32>
    %99 = vector.shape_cast %98 : vector<8xf32> to vector<8x1xf32>
    %100 = vector.broadcast %99 : vector<8x1xf32> to vector<8x8xf32>
    %101 = arith.subf %97, %100 : vector<8x8xf32>
    %102 = math.exp %101 : vector<8x8xf32>
    %cst_41 = arith.constant dense<0.000000e+00> : vector<8xf32>
    %103 = vector.multi_reduction <add>, %102, %cst_41 [1] : vector<8x8xf32> to vector<8xf32>
    %104 = vector.shape_cast %103 : vector<8xf32> to vector<8x1xf32>
    %105 = tpu.reciprocal %104 {approx = true} : vector<8x1xf32> -> vector<8x1xf32>
    %106 = vector.broadcast %105 : vector<8x1xf32> to vector<8x8xf32>
    %107 = arith.mulf %102, %106 : vector<8x8xf32>
    %c3 = arith.constant 3 : index
    %c0_42 = arith.constant 0 : index
    %c0_43 = arith.constant 0 : index
    %108 = vector.load %arg19[%c3, %c0_42, %c0_43] : memref<8x8x8xf32, #tpu.memory_space<vmem>>, vector<1x8x8xf32>
    %109 = vector.shape_cast %108 : vector<1x8x8xf32> to vector<8x8xf32>
    %110 = vector.shape_cast %107 : vector<8x8xf32> to vector<1x8x8xf32>
    tpu.vector_store %arg19[%c3, %c0_42, %c0_43], %110 {strides = array<i32>} : memref<8x8x8xf32, #tpu.memory_space<vmem>>, vector<1x8x8xf32>,
    %cst_44 = arith.constant dense<0.000000e+00> : vector<8x8xf32>
    %111 = tpu.matmul %107, %94, %cst_44 {dimension_numbers = #tpu.dot_dimension_numbers<[1], [0], [0], [1], [0, 0, 1, 1], [], []>} : vector<8x8xf32>, vector<8x8xf32>, vector<8x8xf32> -> vector<8x8xf32>
    %112 = vector.extract_strided_slice %29 {offsets = [0, 16], sizes = [8, 8], strides = [1, 1]} : vector<16x32xf32> to vector<8x8xf32>
    %113 = vector.extract_strided_slice %30 {offsets = [0, 16], sizes = [8, 8], strides = [1, 1]} : vector<16x32xf32> to vector<8x8xf32>
    %114 = vector.extract_strided_slice %31 {offsets = [0, 16], sizes = [8, 8], strides = [1, 1]} : vector<16x32xf32> to vector<8x8xf32>
    %cst_45 = arith.constant dense<0.000000e+00> : vector<8x8xf32>
    %115 = tpu.matmul %112, %113, %cst_45 {dimension_numbers = #tpu.dot_dimension_numbers<[1], [1], [0], [0], [0, 0, 1, 0], [], []>} : vector<8x8xf32>, vector<8x8xf32>, vector<8x8xf32> -> vector<8x8xf32>
    %cst_46 = arith.constant 0.353553385 : f32
    %116 = vector.broadcast %cst_46 : f32 to vector<8x8xf32>
    %117 = arith.mulf %115, %116 : vector<8x8xf32>
    %cst_47 = arith.constant dense<0xFF800000> : vector<8xf32>
    %118 = vector.multi_reduction <maximumf>, %117, %cst_47 [1] : vector<8x8xf32> to vector<8xf32>
    %119 = vector.shape_cast %118 : vector<8xf32> to vector<8x1xf32>
    %120 = vector.broadcast %119 : vector<8x1xf32> to vector<8x8xf32>
    %121 = arith.subf %117, %120 : vector<8x8xf32>
    %122 = math.exp %121 : vector<8x8xf32>
    %cst_48 = arith.constant dense<0.000000e+00> : vector<8xf32>
    %123 = vector.multi_reduction <add>, %122, %cst_48 [1] : vector<8x8xf32> to vector<8xf32>
    %124 = vector.shape_cast %123 : vector<8xf32> to vector<8x1xf32>
    %125 = tpu.reciprocal %124 {approx = true} : vector<8x1xf32> -> vector<8x1xf32>
    %126 = vector.broadcast %125 : vector<8x1xf32> to vector<8x8xf32>
    %127 = arith.mulf %122, %126 : vector<8x8xf32>
    %c4 = arith.constant 4 : index
    %c0_49 = arith.constant 0 : index
    %c0_50 = arith.constant 0 : index
    %128 = vector.load %arg19[%c4, %c0_49, %c0_50] : memref<8x8x8xf32, #tpu.memory_space<vmem>>, vector<1x8x8xf32>
    %129 = vector.shape_cast %128 : vector<1x8x8xf32> to vector<8x8xf32>
    %130 = vector.shape_cast %127 : vector<8x8xf32> to vector<1x8x8xf32>
    tpu.vector_store %arg19[%c4, %c0_49, %c0_50], %130 {strides = array<i32>} : memref<8x8x8xf32, #tpu.memory_space<vmem>>, vector<1x8x8xf32>,
    %cst_51 = arith.constant dense<0.000000e+00> : vector<8x8xf32>
    %131 = tpu.matmul %127, %114, %cst_51 {dimension_numbers = #tpu.dot_dimension_numbers<[1], [0], [0], [1], [0, 0, 1, 1], [], []>} : vector<8x8xf32>, vector<8x8xf32>, vector<8x8xf32> -> vector<8x8xf32>
    %132 = vector.extract_strided_slice %29 {offsets = [8, 16], sizes = [8, 8], strides = [1, 1]} : vector<16x32xf32> to vector<8x8xf32>
    %133 = vector.extract_strided_slice %30 {offsets = [8, 16], sizes = [8, 8], strides = [1, 1]} : vector<16x32xf32> to vector<8x8xf32>
    %134 = vector.extract_strided_slice %31 {offsets = [8, 16], sizes = [8, 8], strides = [1, 1]} : vector<16x32xf32> to vector<8x8xf32>
    %cst_52 = arith.constant dense<0.000000e+00> : vector<8x8xf32>
    %135 = tpu.matmul %132, %133, %cst_52 {dimension_numbers = #tpu.dot_dimension_numbers<[1], [1], [0], [0], [0, 0, 1, 0], [], []>} : vector<8x8xf32>, vector<8x8xf32>, vector<8x8xf32> -> vector<8x8xf32>
    %cst_53 = arith.constant 0.353553385 : f32
    %136 = vector.broadcast %cst_53 : f32 to vector<8x8xf32>
    %137 = arith.mulf %135, %136 : vector<8x8xf32>
    %cst_54 = arith.constant dense<0xFF800000> : vector<8xf32>
    %138 = vector.multi_reduction <maximumf>, %137, %cst_54 [1] : vector<8x8xf32> to vector<8xf32>
    %139 = vector.shape_cast %138 : vector<8xf32> to vector<8x1xf32>
    %140 = vector.broadcast %139 : vector<8x1xf32> to vector<8x8xf32>
    %141 = arith.subf %137, %140 : vector<8x8xf32>
    %142 = math.exp %141 : vector<8x8xf32>
    %cst_55 = arith.constant dense<0.000000e+00> : vector<8xf32>
    %143 = vector.multi_reduction <add>, %142, %cst_55 [1] : vector<8x8xf32> to vector<8xf32>
    %144 = vector.shape_cast %143 : vector<8xf32> to vector<8x1xf32>
    %145 = tpu.reciprocal %144 {approx = true} : vector<8x1xf32> -> vector<8x1xf32>
    %146 = vector.broadcast %145 : vector<8x1xf32> to vector<8x8xf32>
    %147 = arith.mulf %142, %146 : vector<8x8xf32>
    %c5 = arith.constant 5 : index
    %c0_56 = arith.constant 0 : index
    %c0_57 = arith.constant 0 : index
    %148 = vector.load %arg19[%c5, %c0_56, %c0_57] : memref<8x8x8xf32, #tpu.memory_space<vmem>>, vector<1x8x8xf32>
    %149 = vector.shape_cast %148 : vector<1x8x8xf32> to vector<8x8xf32>
    %150 = vector.shape_cast %147 : vector<8x8xf32> to vector<1x8x8xf32>
    tpu.vector_store %arg19[%c5, %c0_56, %c0_57], %150 {strides = array<i32>} : memref<8x8x8xf32, #tpu.memory_space<vmem>>, vector<1x8x8xf32>,
    %cst_58 = arith.constant dense<0.000000e+00> : vector<8x8xf32>
    %151 = tpu.matmul %147, %134, %cst_58 {dimension_numbers = #tpu.dot_dimension_numbers<[1], [0], [0], [1], [0, 0, 1, 1], [], []>} : vector<8x8xf32>, vector<8x8xf32>, vector<8x8xf32> -> vector<8x8xf32>
    %152 = vector.extract_strided_slice %29 {offsets = [0, 24], sizes = [8, 8], strides = [1, 1]} : vector<16x32xf32> to vector<8x8xf32>
    %153 = vector.extract_strided_slice %30 {offsets = [0, 24], sizes = [8, 8], strides = [1, 1]} : vector<16x32xf32> to vector<8x8xf32>
    %154 = vector.extract_strided_slice %31 {offsets = [0, 24], sizes = [8, 8], strides = [1, 1]} : vector<16x32xf32> to vector<8x8xf32>
    %cst_59 = arith.constant dense<0.000000e+00> : vector<8x8xf32>
    %155 = tpu.matmul %152, %153, %cst_59 {dimension_numbers = #tpu.dot_dimension_numbers<[1], [1], [0], [0], [0, 0, 1, 0], [], []>} : vector<8x8xf32>, vector<8x8xf32>, vector<8x8xf32> -> vector<8x8xf32>
    %cst_60 = arith.constant 0.353553385 : f32
    %156 = vector.broadcast %cst_60 : f32 to vector<8x8xf32>
    %157 = arith.mulf %155, %156 : vector<8x8xf32>
    %cst_61 = arith.constant dense<0xFF800000> : vector<8xf32>
    %158 = vector.multi_reduction <maximumf>, %157, %cst_61 [1] : vector<8x8xf32> to vector<8xf32>
    %159 = vector.shape_cast %158 : vector<8xf32> to vector<8x1xf32>
    %160 = vector.broadcast %159 : vector<8x1xf32> to vector<8x8xf32>
    %161 = arith.subf %157, %160 : vector<8x8xf32>
    %162 = math.exp %161 : vector<8x8xf32>
    %cst_62 = arith.constant dense<0.000000e+00> : vector<8xf32>
    %163 = vector.multi_reduction <add>, %162, %cst_62 [1] : vector<8x8xf32> to vector<8xf32>
    %164 = vector.shape_cast %163 : vector<8xf32> to vector<8x1xf32>
    %165 = tpu.reciprocal %164 {approx = true} : vector<8x1xf32> -> vector<8x1xf32>
    %166 = vector.broadcast %165 : vector<8x1xf32> to vector<8x8xf32>
    %167 = arith.mulf %162, %166 : vector<8x8xf32>
    %c6 = arith.constant 6 : index
    %c0_63 = arith.constant 0 : index
    %c0_64 = arith.constant 0 : index
    %168 = vector.load %arg19[%c6, %c0_63, %c0_64] : memref<8x8x8xf32, #tpu.memory_space<vmem>>, vector<1x8x8xf32>
    %169 = vector.shape_cast %168 : vector<1x8x8xf32> to vector<8x8xf32>
    %170 = vector.shape_cast %167 : vector<8x8xf32> to vector<1x8x8xf32>
    tpu.vector_store %arg19[%c6, %c0_63, %c0_64], %170 {strides = array<i32>} : memref<8x8x8xf32, #tpu.memory_space<vmem>>, vector<1x8x8xf32>,
    %cst_65 = arith.constant dense<0.000000e+00> : vector<8x8xf32>
    %171 = tpu.matmul %167, %154, %cst_65 {dimension_numbers = #tpu.dot_dimension_numbers<[1], [0], [0], [1], [0, 0, 1, 1], [], []>} : vector<8x8xf32>, vector<8x8xf32>, vector<8x8xf32> -> vector<8x8xf32>
    %172 = vector.extract_strided_slice %29 {offsets = [8, 24], sizes = [8, 8], strides = [1, 1]} : vector<16x32xf32> to vector<8x8xf32>
    %173 = vector.extract_strided_slice %30 {offsets = [8, 24], sizes = [8, 8], strides = [1, 1]} : vector<16x32xf32> to vector<8x8xf32>
    %174 = vector.extract_strided_slice %31 {offsets = [8, 24], sizes = [8, 8], strides = [1, 1]} : vector<16x32xf32> to vector<8x8xf32>
    %cst_66 = arith.constant dense<0.000000e+00> : vector<8x8xf32>
    %175 = tpu.matmul %172, %173, %cst_66 {dimension_numbers = #tpu.dot_dimension_numbers<[1], [1], [0], [0], [0, 0, 1, 0], [], []>} : vector<8x8xf32>, vector<8x8xf32>, vector<8x8xf32> -> vector<8x8xf32>
    %cst_67 = arith.constant 0.353553385 : f32
    %176 = vector.broadcast %cst_67 : f32 to vector<8x8xf32>
    %177 = arith.mulf %175, %176 : vector<8x8xf32>
    %cst_68 = arith.constant dense<0xFF800000> : vector<8xf32>
    %178 = vector.multi_reduction <maximumf>, %177, %cst_68 [1] : vector<8x8xf32> to vector<8xf32>
    %179 = vector.shape_cast %178 : vector<8xf32> to vector<8x1xf32>
    %180 = vector.broadcast %179 : vector<8x1xf32> to vector<8x8xf32>
    %181 = arith.subf %177, %180 : vector<8x8xf32>
    %182 = math.exp %181 : vector<8x8xf32>
    %cst_69 = arith.constant dense<0.000000e+00> : vector<8xf32>
    %183 = vector.multi_reduction <add>, %182, %cst_69 [1] : vector<8x8xf32> to vector<8xf32>
    %184 = vector.shape_cast %183 : vector<8xf32> to vector<8x1xf32>
    %185 = tpu.reciprocal %184 {approx = true} : vector<8x1xf32> -> vector<8x1xf32>
    %186 = vector.broadcast %185 : vector<8x1xf32> to vector<8x8xf32>
    %187 = arith.mulf %182, %186 : vector<8x8xf32>
    %c7 = arith.constant 7 : index
    %c0_70 = arith.constant 0 : index
    %c0_71 = arith.constant 0 : index
    %188 = vector.load %arg19[%c7, %c0_70, %c0_71] : memref<8x8x8xf32, #tpu.memory_space<vmem>>, vector<1x8x8xf32>
    %189 = vector.shape_cast %188 : vector<1x8x8xf32> to vector<8x8xf32>
    %190 = vector.shape_cast %187 : vector<8x8xf32> to vector<1x8x8xf32>
    tpu.vector_store %arg19[%c7, %c0_70, %c0_71], %190 {strides = array<i32>} : memref<8x8x8xf32, #tpu.memory_space<vmem>>, vector<1x8x8xf32>,
    %cst_72 = arith.constant dense<0.000000e+00> : vector<8x8xf32>
    %191 = tpu.matmul %187, %174, %cst_72 {dimension_numbers = #tpu.dot_dimension_numbers<[1], [0], [0], [1], [0, 0, 1, 1], [], []>} : vector<8x8xf32>, vector<8x8xf32>, vector<8x8xf32> -> vector<8x8xf32>
    %192 = tpu.concatenate %51, %91, %131, %171 in 1 : vector<8x8xf32>, vector<8x8xf32>, vector<8x8xf32>, vector<8x8xf32> -> vector<8x32xf32>
    %193 = tpu.concatenate %71, %111, %151, %191 in 1 : vector<8x8xf32>, vector<8x8xf32>, vector<8x8xf32>, vector<8x8xf32> -> vector<8x32xf32>
    %194 = tpu.concatenate %192, %193 in 0 : vector<8x32xf32>, vector<8x32xf32> -> vector<16x32xf32>
    %195 = arith.addf %0, %194 : vector<16x32xf32>
    %c0_73 = arith.constant 0 : index
    %c0_74 = arith.constant 0 : index
    %196 = vector.load %arg6[%c0_73, %c0_74] : memref<1x32xf32, #tpu.memory_space<vmem>>, vector<1x32xf32>
    %c0_75 = arith.constant 0 : index
    %c0_76 = arith.constant 0 : index
    %197 = vector.load %arg7[%c0_75, %c0_76] : memref<1x32xf32, #tpu.memory_space<vmem>>, vector<1x32xf32>
    %cst_77 = arith.constant dense<0.000000e+00> : vector<16xf32>
    %198 = vector.multi_reduction <add>, %195, %cst_77 [1] : vector<16x32xf32> to vector<16xf32>
    %199 = vector.shape_cast %198 : vector<16xf32> to vector<16x1xf32>
    %cst_78 = arith.constant 3.125000e-02 : f32
    %200 = vector.broadcast %cst_78 : f32 to vector<16x1xf32>
    %201 = arith.mulf %199, %200 : vector<16x1xf32>
    %202 = vector.broadcast %201 : vector<16x1xf32> to vector<16x32xf32>
    %203 = arith.subf %195, %202 : vector<16x32xf32>
    %204 = arith.mulf %203, %203 : vector<16x32xf32>
    %cst_79 = arith.constant dense<0.000000e+00> : vector<16xf32>
    %205 = vector.multi_reduction <add>, %204, %cst_79 [1] : vector<16x32xf32> to vector<16xf32>
    %206 = vector.shape_cast %205 : vector<16xf32> to vector<16x1xf32>
    %cst_80 = arith.constant 3.125000e-02 : f32
    %207 = vector.broadcast %cst_80 : f32 to vector<16x1xf32>
    %208 = arith.mulf %206, %207 : vector<16x1xf32>
    %cst_81 = arith.constant 9.99999974E-6 : f32
    %209 = vector.broadcast %cst_81 : f32 to vector<16x1xf32>
    %210 = arith.addf %208, %209 : vector<16x1xf32>
    %211 = math.rsqrt %210 : vector<16x1xf32>
    %212 = vector.broadcast %211 : vector<16x1xf32> to vector<16x32xf32>
    %213 = arith.mulf %203, %212 : vector<16x32xf32>
    %214 = vector.broadcast %196 : vector<1x32xf32> to vector<16x32xf32>
    %215 = arith.mulf %213, %214 : vector<16x32xf32>
    %216 = vector.broadcast %197 : vector<1x32xf32> to vector<16x32xf32>
    %217 = arith.addf %215, %216 : vector<16x32xf32>
    %c0_82 = arith.constant 0 : index
    %c0_83 = arith.constant 0 : index
    %218 = vector.load %arg8[%c0_82, %c0_83] : memref<32x32xf32, #tpu.memory_space<vmem>>, vector<32x32xf32>
    %cst_84 = arith.constant dense<0.000000e+00> : vector<16x32xf32>
    %219 = tpu.matmul %217, %218, %cst_84 {dimension_numbers = #tpu.dot_dimension_numbers<[1], [0], [0], [1], [0, 0, 1, 1], [], []>} : vector<16x32xf32>, vector<32x32xf32>, vector<16x32xf32> -> vector<16x32xf32>
    %c0_85 = arith.constant 0 : index
    %c0_86 = arith.constant 0 : index
    %220 = vector.load %arg9[%c0_85, %c0_86] : memref<1x32xf32, #tpu.memory_space<vmem>>, vector<1x32xf32>
    %221 = vector.broadcast %220 : vector<1x32xf32> to vector<16x32xf32>
    %222 = arith.addf %219, %221 : vector<16x32xf32>
    %c0_87 = arith.constant 0 : index
    %c0_88 = arith.constant 0 : index
    %223 = vector.load %arg10[%c0_87, %c0_88] : memref<32x64xf32, #tpu.memory_space<vmem>>, vector<32x64xf32>
    %cst_89 = arith.constant dense<0.000000e+00> : vector<32x64xf32>
    %224 = tpu.matmul %1, %223, %cst_89 {dimension_numbers = #tpu.dot_dimension_numbers<[1], [0], [0], [1], [0, 0, 1, 1], [], []>} : vector<32x32xf32>, vector<32x64xf32>, vector<32x64xf32> -> vector<32x64xf32>
    %c0_90 = arith.constant 0 : index
    %c0_91 = arith.constant 0 : index
    %225 = vector.load %arg11[%c0_90, %c0_91] : memref<1x64xf32, #tpu.memory_space<vmem>>, vector<1x64xf32>
    %226 = vector.broadcast %225 : vector<1x64xf32> to vector<32x64xf32>
    %227 = arith.addf %224, %226 : vector<32x64xf32>
    %228 = vector.extract_strided_slice %227 {offsets = [0, 0], sizes = [32, 32], strides = [1, 1]} : vector<32x64xf32> to vector<32x32xf32>
    %229 = vector.extract_strided_slice %227 {offsets = [0, 32], sizes = [32, 32], strides = [1, 1]} : vector<32x64xf32> to vector<32x32xf32>
    %230 = vector.extract_strided_slice %222 {offsets = [0, 0], sizes = [8, 8], strides = [1, 1]} : vector<16x32xf32> to vector<8x8xf32>
    %231 = vector.extract_strided_slice %228 {offsets = [0, 0], sizes = [16, 8], strides = [1, 1]} : vector<32x32xf32> to vector<16x8xf32>
    %232 = vector.extract_strided_slice %229 {offsets = [0, 0], sizes = [16, 8], strides = [1, 1]} : vector<32x32xf32> to vector<16x8xf32>
    %cst_92 = arith.constant dense<0.000000e+00> : vector<8x16xf32>
    %233 = tpu.matmul %230, %231, %cst_92 {dimension_numbers = #tpu.dot_dimension_numbers<[1], [1], [0], [0], [0, 0, 1, 0], [], []>} : vector<8x8xf32>, vector<16x8xf32>, vector<8x16xf32> -> vector<8x16xf32>
    %cst_93 = arith.constant 0.353553385 : f32
    %234 = vector.broadcast %cst_93 : f32 to vector<8x16xf32>
    %235 = arith.mulf %233, %234 : vector<8x16xf32>
    %cst_94 = arith.constant dense<0xFF800000> : vector<8xf32>
    %236 = vector.multi_reduction <maximumf>, %235, %cst_94 [1] : vector<8x16xf32> to vector<8xf32>
    %237 = vector.shape_cast %236 : vector<8xf32> to vector<8x1xf32>
    %238 = vector.broadcast %237 : vector<8x1xf32> to vector<8x16xf32>
    %239 = arith.subf %235, %238 : vector<8x16xf32>
    %240 = math.exp %239 : vector<8x16xf32>
    %cst_95 = arith.constant dense<0.000000e+00> : vector<8xf32>
    %241 = vector.multi_reduction <add>, %240, %cst_95 [1] : vector<8x16xf32> to vector<8xf32>
    %242 = vector.shape_cast %241 : vector<8xf32> to vector<8x1xf32>
    %243 = tpu.reciprocal %242 {approx = true} : vector<8x1xf32> -> vector<8x1xf32>
    %244 = vector.broadcast %243 : vector<8x1xf32> to vector<8x16xf32>
    %245 = arith.mulf %240, %244 : vector<8x16xf32>
    %c0_96 = arith.constant 0 : index
    %c0_97 = arith.constant 0 : index
    %c0_98 = arith.constant 0 : index
    %246 = vector.load %arg20[%c0_96, %c0_97, %c0_98] : memref<8x8x16xf32, #tpu.memory_space<vmem>>, vector<1x8x16xf32>
    %247 = vector.shape_cast %246 : vector<1x8x16xf32> to vector<8x16xf32>
    %248 = vector.shape_cast %245 : vector<8x16xf32> to vector<1x8x16xf32>
    tpu.vector_store %arg20[%c0_96, %c0_97, %c0_98], %248 {strides = array<i32>} : memref<8x8x16xf32, #tpu.memory_space<vmem>>, vector<1x8x16xf32>,
    %cst_99 = arith.constant dense<0.000000e+00> : vector<8x8xf32>
    %249 = tpu.matmul %245, %232, %cst_99 {dimension_numbers = #tpu.dot_dimension_numbers<[1], [0], [0], [1], [0, 0, 1, 1], [], []>} : vector<8x16xf32>, vector<16x8xf32>, vector<8x8xf32> -> vector<8x8xf32>
    %250 = vector.extract_strided_slice %222 {offsets = [8, 0], sizes = [8, 8], strides = [1, 1]} : vector<16x32xf32> to vector<8x8xf32>
    %251 = vector.extract_strided_slice %228 {offsets = [16, 0], sizes = [16, 8], strides = [1, 1]} : vector<32x32xf32> to vector<16x8xf32>
    %252 = vector.extract_strided_slice %229 {offsets = [16, 0], sizes = [16, 8], strides = [1, 1]} : vector<32x32xf32> to vector<16x8xf32>
    %cst_100 = arith.constant dense<0.000000e+00> : vector<8x16xf32>
    %253 = tpu.matmul %250, %251, %cst_100 {dimension_numbers = #tpu.dot_dimension_numbers<[1], [1], [0], [0], [0, 0, 1, 0], [], []>} : vector<8x8xf32>, vector<16x8xf32>, vector<8x16xf32> -> vector<8x16xf32>
    %cst_101 = arith.constant 0.353553385 : f32
    %254 = vector.broadcast %cst_101 : f32 to vector<8x16xf32>
    %255 = arith.mulf %253, %254 : vector<8x16xf32>
    %cst_102 = arith.constant dense<0xFF800000> : vector<8xf32>
    %256 = vector.multi_reduction <maximumf>, %255, %cst_102 [1] : vector<8x16xf32> to vector<8xf32>
    %257 = vector.shape_cast %256 : vector<8xf32> to vector<8x1xf32>
    %258 = vector.broadcast %257 : vector<8x1xf32> to vector<8x16xf32>
    %259 = arith.subf %255, %258 : vector<8x16xf32>
    %260 = math.exp %259 : vector<8x16xf32>
    %cst_103 = arith.constant dense<0.000000e+00> : vector<8xf32>
    %261 = vector.multi_reduction <add>, %260, %cst_103 [1] : vector<8x16xf32> to vector<8xf32>
    %262 = vector.shape_cast %261 : vector<8xf32> to vector<8x1xf32>
    %263 = tpu.reciprocal %262 {approx = true} : vector<8x1xf32> -> vector<8x1xf32>
    %264 = vector.broadcast %263 : vector<8x1xf32> to vector<8x16xf32>
    %265 = arith.mulf %260, %264 : vector<8x16xf32>
    %c1_104 = arith.constant 1 : index
    %c0_105 = arith.constant 0 : index
    %c0_106 = arith.constant 0 : index
    %266 = vector.load %arg20[%c1_104, %c0_105, %c0_106] : memref<8x8x16xf32, #tpu.memory_space<vmem>>, vector<1x8x16xf32>
    %267 = vector.shape_cast %266 : vector<1x8x16xf32> to vector<8x16xf32>
    %268 = vector.shape_cast %265 : vector<8x16xf32> to vector<1x8x16xf32>
    tpu.vector_store %arg20[%c1_104, %c0_105, %c0_106], %268 {strides = array<i32>} : memref<8x8x16xf32, #tpu.memory_space<vmem>>, vector<1x8x16xf32>,
    %cst_107 = arith.constant dense<0.000000e+00> : vector<8x8xf32>
    %269 = tpu.matmul %265, %252, %cst_107 {dimension_numbers = #tpu.dot_dimension_numbers<[1], [0], [0], [1], [0, 0, 1, 1], [], []>} : vector<8x16xf32>, vector<16x8xf32>, vector<8x8xf32> -> vector<8x8xf32>
    %270 = vector.extract_strided_slice %222 {offsets = [0, 8], sizes = [8, 8], strides = [1, 1]} : vector<16x32xf32> to vector<8x8xf32>
    %271 = vector.extract_strided_slice %228 {offsets = [0, 8], sizes = [16, 8], strides = [1, 1]} : vector<32x32xf32> to vector<16x8xf32>
    %272 = vector.extract_strided_slice %229 {offsets = [0, 8], sizes = [16, 8], strides = [1, 1]} : vector<32x32xf32> to vector<16x8xf32>
    %cst_108 = arith.constant dense<0.000000e+00> : vector<8x16xf32>
    %273 = tpu.matmul %270, %271, %cst_108 {dimension_numbers = #tpu.dot_dimension_numbers<[1], [1], [0], [0], [0, 0, 1, 0], [], []>} : vector<8x8xf32>, vector<16x8xf32>, vector<8x16xf32> -> vector<8x16xf32>
    %cst_109 = arith.constant 0.353553385 : f32
    %274 = vector.broadcast %cst_109 : f32 to vector<8x16xf32>
    %275 = arith.mulf %273, %274 : vector<8x16xf32>
    %cst_110 = arith.constant dense<0xFF800000> : vector<8xf32>
    %276 = vector.multi_reduction <maximumf>, %275, %cst_110 [1] : vector<8x16xf32> to vector<8xf32>
    %277 = vector.shape_cast %276 : vector<8xf32> to vector<8x1xf32>
    %278 = vector.broadcast %277 : vector<8x1xf32> to vector<8x16xf32>
    %279 = arith.subf %275, %278 : vector<8x16xf32>
    %280 = math.exp %279 : vector<8x16xf32>
    %cst_111 = arith.constant dense<0.000000e+00> : vector<8xf32>
    %281 = vector.multi_reduction <add>, %280, %cst_111 [1] : vector<8x16xf32> to vector<8xf32>
    %282 = vector.shape_cast %281 : vector<8xf32> to vector<8x1xf32>
    %283 = tpu.reciprocal %282 {approx = true} : vector<8x1xf32> -> vector<8x1xf32>
    %284 = vector.broadcast %283 : vector<8x1xf32> to vector<8x16xf32>
    %285 = arith.mulf %280, %284 : vector<8x16xf32>
    %c2_112 = arith.constant 2 : index
    %c0_113 = arith.constant 0 : index
    %c0_114 = arith.constant 0 : index
    %286 = vector.load %arg20[%c2_112, %c0_113, %c0_114] : memref<8x8x16xf32, #tpu.memory_space<vmem>>, vector<1x8x16xf32>
    %287 = vector.shape_cast %286 : vector<1x8x16xf32> to vector<8x16xf32>
    %288 = vector.shape_cast %285 : vector<8x16xf32> to vector<1x8x16xf32>
    tpu.vector_store %arg20[%c2_112, %c0_113, %c0_114], %288 {strides = array<i32>} : memref<8x8x16xf32, #tpu.memory_space<vmem>>, vector<1x8x16xf32>,
    %cst_115 = arith.constant dense<0.000000e+00> : vector<8x8xf32>
    %289 = tpu.matmul %285, %272, %cst_115 {dimension_numbers = #tpu.dot_dimension_numbers<[1], [0], [0], [1], [0, 0, 1, 1], [], []>} : vector<8x16xf32>, vector<16x8xf32>, vector<8x8xf32> -> vector<8x8xf32>
    %290 = vector.extract_strided_slice %222 {offsets = [8, 8], sizes = [8, 8], strides = [1, 1]} : vector<16x32xf32> to vector<8x8xf32>
    %291 = vector.extract_strided_slice %228 {offsets = [16, 8], sizes = [16, 8], strides = [1, 1]} : vector<32x32xf32> to vector<16x8xf32>
    %292 = vector.extract_strided_slice %229 {offsets = [16, 8], sizes = [16, 8], strides = [1, 1]} : vector<32x32xf32> to vector<16x8xf32>
    %cst_116 = arith.constant dense<0.000000e+00> : vector<8x16xf32>
    %293 = tpu.matmul %290, %291, %cst_116 {dimension_numbers = #tpu.dot_dimension_numbers<[1], [1], [0], [0], [0, 0, 1, 0], [], []>} : vector<8x8xf32>, vector<16x8xf32>, vector<8x16xf32> -> vector<8x16xf32>
    %cst_117 = arith.constant 0.353553385 : f32
    %294 = vector.broadcast %cst_117 : f32 to vector<8x16xf32>
    %295 = arith.mulf %293, %294 : vector<8x16xf32>
    %cst_118 = arith.constant dense<0xFF800000> : vector<8xf32>
    %296 = vector.multi_reduction <maximumf>, %295, %cst_118 [1] : vector<8x16xf32> to vector<8xf32>
    %297 = vector.shape_cast %296 : vector<8xf32> to vector<8x1xf32>
    %298 = vector.broadcast %297 : vector<8x1xf32> to vector<8x16xf32>
    %299 = arith.subf %295, %298 : vector<8x16xf32>
    %300 = math.exp %299 : vector<8x16xf32>
    %cst_119 = arith.constant dense<0.000000e+00> : vector<8xf32>
    %301 = vector.multi_reduction <add>, %300, %cst_119 [1] : vector<8x16xf32> to vector<8xf32>
    %302 = vector.shape_cast %301 : vector<8xf32> to vector<8x1xf32>
    %303 = tpu.reciprocal %302 {approx = true} : vector<8x1xf32> -> vector<8x1xf32>
    %304 = vector.broadcast %303 : vector<8x1xf32> to vector<8x16xf32>
    %305 = arith.mulf %300, %304 : vector<8x16xf32>
    %c3_120 = arith.constant 3 : index
    %c0_121 = arith.constant 0 : index
    %c0_122 = arith.constant 0 : index
    %306 = vector.load %arg20[%c3_120, %c0_121, %c0_122] : memref<8x8x16xf32, #tpu.memory_space<vmem>>, vector<1x8x16xf32>
    %307 = vector.shape_cast %306 : vector<1x8x16xf32> to vector<8x16xf32>
    %308 = vector.shape_cast %305 : vector<8x16xf32> to vector<1x8x16xf32>
    tpu.vector_store %arg20[%c3_120, %c0_121, %c0_122], %308 {strides = array<i32>} : memref<8x8x16xf32, #tpu.memory_space<vmem>>, vector<1x8x16xf32>,
    %cst_123 = arith.constant dense<0.000000e+00> : vector<8x8xf32>
    %309 = tpu.matmul %305, %292, %cst_123 {dimension_numbers = #tpu.dot_dimension_numbers<[1], [0], [0], [1], [0, 0, 1, 1], [], []>} : vector<8x16xf32>, vector<16x8xf32>, vector<8x8xf32> -> vector<8x8xf32>
    %310 = vector.extract_strided_slice %222 {offsets = [0, 16], sizes = [8, 8], strides = [1, 1]} : vector<16x32xf32> to vector<8x8xf32>
    %311 = vector.extract_strided_slice %228 {offsets = [0, 16], sizes = [16, 8], strides = [1, 1]} : vector<32x32xf32> to vector<16x8xf32>
    %312 = vector.extract_strided_slice %229 {offsets = [0, 16], sizes = [16, 8], strides = [1, 1]} : vector<32x32xf32> to vector<16x8xf32>
    %cst_124 = arith.constant dense<0.000000e+00> : vector<8x16xf32>
    %313 = tpu.matmul %310, %311, %cst_124 {dimension_numbers = #tpu.dot_dimension_numbers<[1], [1], [0], [0], [0, 0, 1, 0], [], []>} : vector<8x8xf32>, vector<16x8xf32>, vector<8x16xf32> -> vector<8x16xf32>
    %cst_125 = arith.constant 0.353553385 : f32
    %314 = vector.broadcast %cst_125 : f32 to vector<8x16xf32>
    %315 = arith.mulf %313, %314 : vector<8x16xf32>
    %cst_126 = arith.constant dense<0xFF800000> : vector<8xf32>
    %316 = vector.multi_reduction <maximumf>, %315, %cst_126 [1] : vector<8x16xf32> to vector<8xf32>
    %317 = vector.shape_cast %316 : vector<8xf32> to vector<8x1xf32>
    %318 = vector.broadcast %317 : vector<8x1xf32> to vector<8x16xf32>
    %319 = arith.subf %315, %318 : vector<8x16xf32>
    %320 = math.exp %319 : vector<8x16xf32>
    %cst_127 = arith.constant dense<0.000000e+00> : vector<8xf32>
    %321 = vector.multi_reduction <add>, %320, %cst_127 [1] : vector<8x16xf32> to vector<8xf32>
    %322 = vector.shape_cast %321 : vector<8xf32> to vector<8x1xf32>
    %323 = tpu.reciprocal %322 {approx = true} : vector<8x1xf32> -> vector<8x1xf32>
    %324 = vector.broadcast %323 : vector<8x1xf32> to vector<8x16xf32>
    %325 = arith.mulf %320, %324 : vector<8x16xf32>
    %c4_128 = arith.constant 4 : index
    %c0_129 = arith.constant 0 : index
    %c0_130 = arith.constant 0 : index
    %326 = vector.load %arg20[%c4_128, %c0_129, %c0_130] : memref<8x8x16xf32, #tpu.memory_space<vmem>>, vector<1x8x16xf32>
    %327 = vector.shape_cast %326 : vector<1x8x16xf32> to vector<8x16xf32>
    %328 = vector.shape_cast %325 : vector<8x16xf32> to vector<1x8x16xf32>
    tpu.vector_store %arg20[%c4_128, %c0_129, %c0_130], %328 {strides = array<i32>} : memref<8x8x16xf32, #tpu.memory_space<vmem>>, vector<1x8x16xf32>,
    %cst_131 = arith.constant dense<0.000000e+00> : vector<8x8xf32>
    %329 = tpu.matmul %325, %312, %cst_131 {dimension_numbers = #tpu.dot_dimension_numbers<[1], [0], [0], [1], [0, 0, 1, 1], [], []>} : vector<8x16xf32>, vector<16x8xf32>, vector<8x8xf32> -> vector<8x8xf32>
    %330 = vector.extract_strided_slice %222 {offsets = [8, 16], sizes = [8, 8], strides = [1, 1]} : vector<16x32xf32> to vector<8x8xf32>
    %331 = vector.extract_strided_slice %228 {offsets = [16, 16], sizes = [16, 8], strides = [1, 1]} : vector<32x32xf32> to vector<16x8xf32>
    %332 = vector.extract_strided_slice %229 {offsets = [16, 16], sizes = [16, 8], strides = [1, 1]} : vector<32x32xf32> to vector<16x8xf32>
    %cst_132 = arith.constant dense<0.000000e+00> : vector<8x16xf32>
    %333 = tpu.matmul %330, %331, %cst_132 {dimension_numbers = #tpu.dot_dimension_numbers<[1], [1], [0], [0], [0, 0, 1, 0], [], []>} : vector<8x8xf32>, vector<16x8xf32>, vector<8x16xf32> -> vector<8x16xf32>
    %cst_133 = arith.constant 0.353553385 : f32
    %334 = vector.broadcast %cst_133 : f32 to vector<8x16xf32>
    %335 = arith.mulf %333, %334 : vector<8x16xf32>
    %cst_134 = arith.constant dense<0xFF800000> : vector<8xf32>
    %336 = vector.multi_reduction <maximumf>, %335, %cst_134 [1] : vector<8x16xf32> to vector<8xf32>
    %337 = vector.shape_cast %336 : vector<8xf32> to vector<8x1xf32>
    %338 = vector.broadcast %337 : vector<8x1xf32> to vector<8x16xf32>
    %339 = arith.subf %335, %338 : vector<8x16xf32>
    %340 = math.exp %339 : vector<8x16xf32>
    %cst_135 = arith.constant dense<0.000000e+00> : vector<8xf32>
    %341 = vector.multi_reduction <add>, %340, %cst_135 [1] : vector<8x16xf32> to vector<8xf32>
    %342 = vector.shape_cast %341 : vector<8xf32> to vector<8x1xf32>
    %343 = tpu.reciprocal %342 {approx = true} : vector<8x1xf32> -> vector<8x1xf32>
    %344 = vector.broadcast %343 : vector<8x1xf32> to vector<8x16xf32>
    %345 = arith.mulf %340, %344 : vector<8x16xf32>
    %c5_136 = arith.constant 5 : index
    %c0_137 = arith.constant 0 : index
    %c0_138 = arith.constant 0 : index
    %346 = vector.load %arg20[%c5_136, %c0_137, %c0_138] : memref<8x8x16xf32, #tpu.memory_space<vmem>>, vector<1x8x16xf32>
    %347 = vector.shape_cast %346 : vector<1x8x16xf32> to vector<8x16xf32>
    %348 = vector.shape_cast %345 : vector<8x16xf32> to vector<1x8x16xf32>
    tpu.vector_store %arg20[%c5_136, %c0_137, %c0_138], %348 {strides = array<i32>} : memref<8x8x16xf32, #tpu.memory_space<vmem>>, vector<1x8x16xf32>,
    %cst_139 = arith.constant dense<0.000000e+00> : vector<8x8xf32>
    %349 = tpu.matmul %345, %332, %cst_139 {dimension_numbers = #tpu.dot_dimension_numbers<[1], [0], [0], [1], [0, 0, 1, 1], [], []>} : vector<8x16xf32>, vector<16x8xf32>, vector<8x8xf32> -> vector<8x8xf32>
    %350 = vector.extract_strided_slice %222 {offsets = [0, 24], sizes = [8, 8], strides = [1, 1]} : vector<16x32xf32> to vector<8x8xf32>
    %351 = vector.extract_strided_slice %228 {offsets = [0, 24], sizes = [16, 8], strides = [1, 1]} : vector<32x32xf32> to vector<16x8xf32>
    %352 = vector.extract_strided_slice %229 {offsets = [0, 24], sizes = [16, 8], strides = [1, 1]} : vector<32x32xf32> to vector<16x8xf32>
    %cst_140 = arith.constant dense<0.000000e+00> : vector<8x16xf32>
    %353 = tpu.matmul %350, %351, %cst_140 {dimension_numbers = #tpu.dot_dimension_numbers<[1], [1], [0], [0], [0, 0, 1, 0], [], []>} : vector<8x8xf32>, vector<16x8xf32>, vector<8x16xf32> -> vector<8x16xf32>
    %cst_141 = arith.constant 0.353553385 : f32
    %354 = vector.broadcast %cst_141 : f32 to vector<8x16xf32>
    %355 = arith.mulf %353, %354 : vector<8x16xf32>
    %cst_142 = arith.constant dense<0xFF800000> : vector<8xf32>
    %356 = vector.multi_reduction <maximumf>, %355, %cst_142 [1] : vector<8x16xf32> to vector<8xf32>
    %357 = vector.shape_cast %356 : vector<8xf32> to vector<8x1xf32>
    %358 = vector.broadcast %357 : vector<8x1xf32> to vector<8x16xf32>
    %359 = arith.subf %355, %358 : vector<8x16xf32>
    %360 = math.exp %359 : vector<8x16xf32>
    %cst_143 = arith.constant dense<0.000000e+00> : vector<8xf32>
    %361 = vector.multi_reduction <add>, %360, %cst_143 [1] : vector<8x16xf32> to vector<8xf32>
    %362 = vector.shape_cast %361 : vector<8xf32> to vector<8x1xf32>
    %363 = tpu.reciprocal %362 {approx = true} : vector<8x1xf32> -> vector<8x1xf32>
    %364 = vector.broadcast %363 : vector<8x1xf32> to vector<8x16xf32>
    %365 = arith.mulf %360, %364 : vector<8x16xf32>
    %c6_144 = arith.constant 6 : index
    %c0_145 = arith.constant 0 : index
    %c0_146 = arith.constant 0 : index
    %366 = vector.load %arg20[%c6_144, %c0_145, %c0_146] : memref<8x8x16xf32, #tpu.memory_space<vmem>>, vector<1x8x16xf32>
    %367 = vector.shape_cast %366 : vector<1x8x16xf32> to vector<8x16xf32>
    %368 = vector.shape_cast %365 : vector<8x16xf32> to vector<1x8x16xf32>
    tpu.vector_store %arg20[%c6_144, %c0_145, %c0_146], %368 {strides = array<i32>} : memref<8x8x16xf32, #tpu.memory_space<vmem>>, vector<1x8x16xf32>,
    %cst_147 = arith.constant dense<0.000000e+00> : vector<8x8xf32>
    %369 = tpu.matmul %365, %352, %cst_147 {dimension_numbers = #tpu.dot_dimension_numbers<[1], [0], [0], [1], [0, 0, 1, 1], [], []>} : vector<8x16xf32>, vector<16x8xf32>, vector<8x8xf32> -> vector<8x8xf32>
    %370 = vector.extract_strided_slice %222 {offsets = [8, 24], sizes = [8, 8], strides = [1, 1]} : vector<16x32xf32> to vector<8x8xf32>
    %371 = vector.extract_strided_slice %228 {offsets = [16, 24], sizes = [16, 8], strides = [1, 1]} : vector<32x32xf32> to vector<16x8xf32>
    %372 = vector.extract_strided_slice %229 {offsets = [16, 24], sizes = [16, 8], strides = [1, 1]} : vector<32x32xf32> to vector<16x8xf32>
    %cst_148 = arith.constant dense<0.000000e+00> : vector<8x16xf32>
    %373 = tpu.matmul %370, %371, %cst_148 {dimension_numbers = #tpu.dot_dimension_numbers<[1], [1], [0], [0], [0, 0, 1, 0], [], []>} : vector<8x8xf32>, vector<16x8xf32>, vector<8x16xf32> -> vector<8x16xf32>
    %cst_149 = arith.constant 0.353553385 : f32
    %374 = vector.broadcast %cst_149 : f32 to vector<8x16xf32>
    %375 = arith.mulf %373, %374 : vector<8x16xf32>
    %cst_150 = arith.constant dense<0xFF800000> : vector<8xf32>
    %376 = vector.multi_reduction <maximumf>, %375, %cst_150 [1] : vector<8x16xf32> to vector<8xf32>
    %377 = vector.shape_cast %376 : vector<8xf32> to vector<8x1xf32>
    %378 = vector.broadcast %377 : vector<8x1xf32> to vector<8x16xf32>
    %379 = arith.subf %375, %378 : vector<8x16xf32>
    %380 = math.exp %379 : vector<8x16xf32>
    %cst_151 = arith.constant dense<0.000000e+00> : vector<8xf32>
    %381 = vector.multi_reduction <add>, %380, %cst_151 [1] : vector<8x16xf32> to vector<8xf32>
    %382 = vector.shape_cast %381 : vector<8xf32> to vector<8x1xf32>
    %383 = tpu.reciprocal %382 {approx = true} : vector<8x1xf32> -> vector<8x1xf32>
    %384 = vector.broadcast %383 : vector<8x1xf32> to vector<8x16xf32>
    %385 = arith.mulf %380, %384 : vector<8x16xf32>
    %c7_152 = arith.constant 7 : index
    %c0_153 = arith.constant 0 : index
    %c0_154 = arith.constant 0 : index
    %386 = vector.load %arg20[%c7_152, %c0_153, %c0_154] : memref<8x8x16xf32, #tpu.memory_space<vmem>>, vector<1x8x16xf32>
    %387 = vector.shape_cast %386 : vector<1x8x16xf32> to vector<8x16xf32>
    %388 = vector.shape_cast %385 : vector<8x16xf32> to vector<1x8x16xf32>
    tpu.vector_store %arg20[%c7_152, %c0_153, %c0_154], %388 {strides = array<i32>} : memref<8x8x16xf32, #tpu.memory_space<vmem>>, vector<1x8x16xf32>,
    %cst_155 = arith.constant dense<0.000000e+00> : vector<8x8xf32>
    %389 = tpu.matmul %385, %372, %cst_155 {dimension_numbers = #tpu.dot_dimension_numbers<[1], [0], [0], [1], [0, 0, 1, 1], [], []>} : vector<8x16xf32>, vector<16x8xf32>, vector<8x8xf32> -> vector<8x8xf32>
    %390 = tpu.concatenate %249, %289, %329, %369 in 1 : vector<8x8xf32>, vector<8x8xf32>, vector<8x8xf32>, vector<8x8xf32> -> vector<8x32xf32>
    %391 = tpu.concatenate %269, %309, %349, %389 in 1 : vector<8x8xf32>, vector<8x8xf32>, vector<8x8xf32>, vector<8x8xf32> -> vector<8x32xf32>
    %392 = tpu.concatenate %390, %391 in 0 : vector<8x32xf32>, vector<8x32xf32> -> vector<16x32xf32>
    %393 = arith.addf %195, %392 : vector<16x32xf32>
    %c0_156 = arith.constant 0 : index
    %c0_157 = arith.constant 0 : index
    %394 = vector.load %arg12[%c0_156, %c0_157] : memref<1x32xf32, #tpu.memory_space<vmem>>, vector<1x32xf32>
    %c0_158 = arith.constant 0 : index
    %c0_159 = arith.constant 0 : index
    %395 = vector.load %arg13[%c0_158, %c0_159] : memref<1x32xf32, #tpu.memory_space<vmem>>, vector<1x32xf32>
    %cst_160 = arith.constant dense<0.000000e+00> : vector<16xf32>
    %396 = vector.multi_reduction <add>, %393, %cst_160 [1] : vector<16x32xf32> to vector<16xf32>
    %397 = vector.shape_cast %396 : vector<16xf32> to vector<16x1xf32>
    %cst_161 = arith.constant 3.125000e-02 : f32
    %398 = vector.broadcast %cst_161 : f32 to vector<16x1xf32>
    %399 = arith.mulf %397, %398 : vector<16x1xf32>
    %400 = vector.broadcast %399 : vector<16x1xf32> to vector<16x32xf32>
    %401 = arith.subf %393, %400 : vector<16x32xf32>
    %402 = arith.mulf %401, %401 : vector<16x32xf32>
    %cst_162 = arith.constant dense<0.000000e+00> : vector<16xf32>
    %403 = vector.multi_reduction <add>, %402, %cst_162 [1] : vector<16x32xf32> to vector<16xf32>
    %404 = vector.shape_cast %403 : vector<16xf32> to vector<16x1xf32>
    %cst_163 = arith.constant 3.125000e-02 : f32
    %405 = vector.broadcast %cst_163 : f32 to vector<16x1xf32>
    %406 = arith.mulf %404, %405 : vector<16x1xf32>
    %cst_164 = arith.constant 9.99999974E-6 : f32
    %407 = vector.broadcast %cst_164 : f32 to vector<16x1xf32>
    %408 = arith.addf %406, %407 : vector<16x1xf32>
    %409 = math.rsqrt %408 : vector<16x1xf32>
    %410 = vector.broadcast %409 : vector<16x1xf32> to vector<16x32xf32>
    %411 = arith.mulf %401, %410 : vector<16x32xf32>
    %412 = vector.broadcast %394 : vector<1x32xf32> to vector<16x32xf32>
    %413 = arith.mulf %411, %412 : vector<16x32xf32>
    %414 = vector.broadcast %395 : vector<1x32xf32> to vector<16x32xf32>
    %415 = arith.addf %413, %414 : vector<16x32xf32>
    %c0_165 = arith.constant 0 : index
    %c0_166 = arith.constant 0 : index
    %416 = vector.load %arg14[%c0_165, %c0_166] : memref<32x64xf32, #tpu.memory_space<vmem>>, vector<32x64xf32>
    %cst_167 = arith.constant dense<0.000000e+00> : vector<16x64xf32>
    %417 = tpu.matmul %415, %416, %cst_167 {dimension_numbers = #tpu.dot_dimension_numbers<[1], [0], [0], [1], [0, 0, 1, 1], [], []>} : vector<16x32xf32>, vector<32x64xf32>, vector<16x64xf32> -> vector<16x64xf32>
    %c0_168 = arith.constant 0 : index
    %c0_169 = arith.constant 0 : index
    %418 = vector.load %arg15[%c0_168, %c0_169] : memref<1x64xf32, #tpu.memory_space<vmem>>, vector<1x64xf32>
    %419 = vector.broadcast %418 : vector<1x64xf32> to vector<16x64xf32>
    %420 = arith.addf %417, %419 : vector<16x64xf32>
    %cst_170 = arith.constant 0.000000e+00 : f32
    %421 = vector.broadcast %cst_170 : f32 to vector<16x64xf32>
    %422 = arith.maximumf %420, %421 : vector<16x64xf32>
    %c0_171 = arith.constant 0 : index
    %c0_172 = arith.constant 0 : index
    %423 = vector.load %arg16[%c0_171, %c0_172] : memref<64x32xf32, #tpu.memory_space<vmem>>, vector<64x32xf32>
    %cst_173 = arith.constant dense<0.000000e+00> : vector<16x32xf32>
    %424 = tpu.matmul %422, %423, %cst_173 {dimension_numbers = #tpu.dot_dimension_numbers<[1], [0], [0], [1], [0, 0, 1, 1], [], []>} : vector<16x64xf32>, vector<64x32xf32>, vector<16x32xf32> -> vector<16x32xf32>
    %c0_174 = arith.constant 0 : index
    %c0_175 = arith.constant 0 : index
    %425 = vector.load %arg17[%c0_174, %c0_175] : memref<1x32xf32, #tpu.memory_space<vmem>>, vector<1x32xf32>
    %426 = vector.broadcast %425 : vector<1x32xf32> to vector<16x32xf32>
    %427 = arith.addf %424, %426 : vector<16x32xf32>
    %428 = arith.addf %393, %427 : vector<16x32xf32>
    %c0_176 = arith.constant 0 : index
    %c0_177 = arith.constant 0 : index
    %429 = vector.load %arg18[%c0_176, %c0_177] : memref<16x32xf32, #tpu.memory_space<vmem>>, vector<16x32xf32>
    tpu.vector_store %arg18[%c0_176, %c0_177], %428 {strides = array<i32>} : memref<16x32xf32, #tpu.memory_space<vmem>>, vector<16x32xf32>,
    return
  }
}

</mosaic_0001>

<llo_original>
// kernel: transformer_decoder_layer.1
$region0: #{transformer_decoder_layer.1}
  #allocation0 [shape = 'u32[]', space=smem, size = 0x4, offset = 0x4, fixed_abs, tag = 'smem constant byte address 0x4 - core index']
  #allocation1 [shape = 'u32[144,128]{1,0:T(1,128)}', space=vmem, size = 0x12000, scoped, tag = 'internal scratch']
  %s0 = inlined_call_operand.hbm [shape: f32[16,32], index: 0, kind: input, shape index: {}]
  %s1 = inlined_call_operand.vmem [shape: f32[32,32], index: 1, kind: input, shape index: {}]
  %s2 = inlined_call_operand.hbm [shape: f32[1,32], index: 2, kind: input, shape index: {}]
  %s3 = inlined_call_operand.hbm [shape: f32[1,32], index: 3, kind: input, shape index: {}]
  %s4 = inlined_call_operand.vmem [shape: f32[32,96], index: 4, kind: input, shape index: {}]
  %s5 = inlined_call_operand.hbm [shape: f32[1,96], index: 5, kind: input, shape index: {}]
  %s6 = inlined_call_operand.hbm [shape: f32[1,32], index: 6, kind: input, shape index: {}]
  %s7 = inlined_call_operand.hbm [shape: f32[1,32], index: 7, kind: input, shape index: {}]
  %s8 = inlined_call_operand.vmem [shape: f32[32,32], index: 8, kind: input, shape index: {}]
  %s9 = inlined_call_operand.hbm [shape: f32[1,32], index: 9, kind: input, shape index: {}]
  %s10 = inlined_call_operand.vmem [shape: f32[32,64], index: 10, kind: input, shape index: {}]
  %s11 = inlined_call_operand.hbm [shape: f32[1,64], index: 11, kind: input, shape index: {}]
  %s12 = inlined_call_operand.hbm [shape: f32[1,32], index: 12, kind: input, shape index: {}]
  %s13 = inlined_call_operand.hbm [shape: f32[1,32], index: 13, kind: input, shape index: {}]
  %s14 = inlined_call_operand.hbm [shape: f32[32,64], index: 14, kind: input, shape index: {}]
  %s15 = inlined_call_operand.hbm [shape: f32[1,64], index: 15, kind: input, shape index: {}]
  %s16 = inlined_call_operand.vmem [shape: f32[64,32], index: 16, kind: input, shape index: {}]
  %s17 = inlined_call_operand.hbm [shape: f32[1,32], index: 17, kind: input, shape index: {}]
  %s18 = inlined_call_operand.hbm [shape: f32[16,32], index: 18, kind: output, shape index: {0}]
  %s19 = inlined_call_operand.hbm [shape: f32[8,8,8], index: 19, kind: output, shape index: {1}]
  %s20 = inlined_call_operand.hbm [shape: f32[8,8,16], index: 20, kind: output, shape index: {2}]
  %21 = xla_tuple %s18, %s19, %s20
  %s22 = sld [smem:[#allocation0]]
  $region150: #{transformer_decoder_layer.1} parent=0
    _
  %s24 = ssub.s32 1, %s22
  %s25 = scalar_select 0, %s24, %s22
  $region1: #{transformer_decoder_layer.1} parent=0
    #allocation2 [shape = 'u8[8192]{0}', space=vmem, size = 0x2000, scoped, tag = 'input window, operand 0, single buffered']
    #allocation3 [shape = 's32[1]{0}', space=sflag, size = 0x4, scoped, tag = 'scoped memory for transformer_decoder_layer.1']
    #allocation4 [shape = 's32[1]{0}', space=sflag, size = 0x4, scoped, tag = 'scoped memory for transformer_decoder_layer.1']
    #allocation5 [shape = 'u8[512]{0}', space=vmem, size = 0x400, scoped, tag = 'input window, operand 2, single buffered']
    #allocation6 [shape = 's32[1]{0}', space=sflag, size = 0x4, scoped, tag = 'scoped memory for transformer_decoder_layer.1']
    #allocation7 [shape = 'u8[512]{0}', space=vmem, size = 0x400, scoped, tag = 'input window, operand 3, single buffered']
    #allocation8 [shape = 'u8[512]{0}', space=vmem, size = 0x400, scoped, tag = 'input window, operand 5, single buffered']
    #allocation9 [shape = 's32[1]{0}', space=sflag, size = 0x4, scoped, tag = 'scoped memory for transformer_decoder_layer.1']
    #allocation10 [shape = 'u8[512]{0}', space=vmem, size = 0x400, scoped, tag = 'input window, operand 6, single buffered']
    #allocation11 [shape = 'u8[512]{0}', space=vmem, size = 0x400, scoped, tag = 'input window, operand 7, single buffered']
    #allocation12 [shape = 's32[1]{0}', space=sflag, size = 0x4, scoped, tag = 'scoped memory for transformer_decoder_layer.1']
    #allocation13 [shape = 'u8[512]{0}', space=vmem, size = 0x400, scoped, tag = 'input window, operand 9, single buffered']
    #allocation14 [shape = 'u8[512]{0}', space=vmem, size = 0x400, scoped, tag = 'input window, operand 11, single buffered']
    #allocation15 [shape = 's32[1]{0}', space=sflag, size = 0x4, scoped, tag = 'scoped memory for transformer_decoder_layer.1']
    #allocation16 [shape = 'u8[512]{0}', space=vmem, size = 0x400, scoped, tag = 'input window, operand 12, single buffered']
    #allocation17 [shape = 'u8[512]{0}', space=vmem, size = 0x400, scoped, tag = 'input window, operand 13, single buffered']
    #allocation18 [shape = 's32[1]{0}', space=sflag, size = 0x4, scoped, tag = 'scoped memory for transformer_decoder_layer.1']
    #allocation19 [shape = 'u8[16384]{0}', space=vmem, size = 0x4000, scoped, tag = 'input window, operand 14, single buffered']
    #allocation20 [shape = 'u8[512]{0}', space=vmem, size = 0x400, scoped, tag = 'input window, operand 15, single buffered']
    #allocation21 [shape = 's32[1]{0}', space=sflag, size = 0x4, scoped, tag = 'scoped memory for transformer_decoder_layer.1']
    #allocation22 [shape = 'u8[512]{0}', space=vmem, size = 0x400, scoped, tag = 'input window, operand 17, single buffered']
    #allocation23 [shape = 'u8[8192]{0}', space=vmem, size = 0x2000, scoped, tag = 'output window, operand 0, single buffered']
    #allocation24 [shape = 'u8[32768]{0}', space=vmem, size = 0x8000, scoped, tag = 'output window, operand 1, single buffered']
    #allocation25 [shape = 's32[1]{0}', space=sflag, size = 0x4, scoped, tag = 'scoped memory for transformer_decoder_layer.1']
    #allocation26 [shape = 'u8[32768]{0}', space=vmem, size = 0x8000, scoped, tag = 'output window, operand 2, single buffered']
    %26 = vsyncpa [#allocation3], 0
    %27 = vsyncpa [#allocation6], 0
    %28 = vsyncpa [#allocation9], 0
    %29 = vsyncpa [#allocation12], 0
    %30 = vsyncpa [#allocation15], 0
    %31 = vsyncpa [#allocation18], 0
    %32 = vsyncpa [#allocation21], 0
    %33 = vsyncpa [#allocation4], 0
    %34 = vsyncpa [#allocation25], 0
    // Predicated region
    $region2: #{transformer_decoder_layer.1} parent=1 // pred_check
      _
    $region3: #{transformer_decoder_layer.1} parent=1 // pred_check_branch
      %36 = sbr.rel (0) target = $region5
    $region4: #{transformer_decoder_layer.1} parent=1 // pred_region
      %s38 = ssub.s32 256, 256
      %39 = vsyncadd [#allocation3], %s38
      %s40 = sshll.u32 [#allocation2], 4
      %s41 = int_to_ptr.vmem [resolvable:$true] %s40
      %46 = dma.hbm_to_vmem [thread:$0]  %s0, 256, %s41, [#allocation3], 128, 128, 8
    $region5: #{transformer_decoder_layer.1} parent=1 // pred_fallthru
      _
    // Predicated region
    $region6: #{transformer_decoder_layer.1} parent=1 // pred_check
      _
    $region7: #{transformer_decoder_layer.1} parent=1 // pred_check_branch
      %48 = sbr.rel (0) target = $region9
    $region8: #{transformer_decoder_layer.1} parent=1 // pred_region
      _
    $region9: #{transformer_decoder_layer.1} parent=1 // pred_fallthru
      _
    // Predicated region
    $region10: #{transformer_decoder_layer.1} parent=1 // pred_check
      _
    $region11: #{transformer_decoder_layer.1} parent=1 // pred_check_branch
      %50 = sbr.rel (0) target = $region13
    $region12: #{transformer_decoder_layer.1} parent=1 // pred_region
      %s52 = ssub.s32 16, 16
      %53 = vsyncadd [#allocation6], %s52
      %s55 = sshll.u32 [#allocation5], 4
      %s56 = int_to_ptr.vmem [resolvable:$true] %s55
      %58 = dma.hbm_to_vmem [thread:$0]  %s2, 16, %s56, [#allocation6]
    $region13: #{transformer_decoder_layer.1} parent=1 // pred_fallthru
      _
    // Predicated region
    $region14: #{transformer_decoder_layer.1} parent=1 // pred_check
      _
    $region15: #{transformer_decoder_layer.1} parent=1 // pred_check_branch
      %60 = sbr.rel (0) target = $region17
    $region16: #{transformer_decoder_layer.1} parent=1 // pred_region
      %s62 = ssub.s32 16, 16
      %63 = vsyncadd [#allocation6], %s62
      %s65 = sshll.u32 [#allocation7], 4
      %s66 = int_to_ptr.vmem [resolvable:$true] %s65
      %68 = dma.hbm_to_vmem [thread:$0]  %s3, 16, %s66, [#allocation6]
    $region17: #{transformer_decoder_layer.1} parent=1 // pred_fallthru
      _
    // Predicated region
    $region18: #{transformer_decoder_layer.1} parent=1 // pred_check
      _
    $region19: #{transformer_decoder_layer.1} parent=1 // pred_check_branch
      %70 = sbr.rel (0) target = $region21
    $region20: #{transformer_decoder_layer.1} parent=1 // pred_region
      _
    $region21: #{transformer_decoder_layer.1} parent=1 // pred_fallthru
      _
    // Predicated region
    $region22: #{transformer_decoder_layer.1} parent=1 // pred_check
      _
    $region23: #{transformer_decoder_layer.1} parent=1 // pred_check_branch
      %72 = sbr.rel (0) target = $region25
    $region24: #{transformer_decoder_layer.1} parent=1 // pred_region
      %s74 = ssub.s32 16, 16
      %75 = vsyncadd [#allocation9], %s74
      %s77 = sshll.u32 [#allocation8], 4
      %s78 = int_to_ptr.vmem [resolvable:$true] %s77
      %80 = dma.hbm_to_vmem [thread:$0]  %s5, 16, %s78, [#allocation9]
    $region25: #{transformer_decoder_layer.1} parent=1 // pred_fallthru
      _
    // Predicated region
    $region26: #{transformer_decoder_layer.1} parent=1 // pred_check
      _
    $region27: #{transformer_decoder_layer.1} parent=1 // pred_check_branch
      %82 = sbr.rel (0) target = $region29
    $region28: #{transformer_decoder_layer.1} parent=1 // pred_region
      %s84 = ssub.s32 16, 16
      %85 = vsyncadd [#allocation9], %s84
      %s87 = sshll.u32 [#allocation10], 4
      %s88 = int_to_ptr.vmem [resolvable:$true] %s87
      %90 = dma.hbm_to_vmem [thread:$0]  %s6, 16, %s88, [#allocation9]
    $region29: #{transformer_decoder_layer.1} parent=1 // pred_fallthru
      _
    // Predicated region
    $region30: #{transformer_decoder_layer.1} parent=1 // pred_check
      _
    $region31: #{transformer_decoder_layer.1} parent=1 // pred_check_branch
      %92 = sbr.rel (0) target = $region33
    $region32: #{transformer_decoder_layer.1} parent=1 // pred_region
      %s94 = ssub.s32 16, 16
      %95 = vsyncadd [#allocation12], %s94
      %s97 = sshll.u32 [#allocation11], 4
      %s98 = int_to_ptr.vmem [resolvable:$true] %s97
      %100 = dma.hbm_to_vmem [thread:$0]  %s7, 16, %s98, [#allocation12]
    $region33: #{transformer_decoder_layer.1} parent=1 // pred_fallthru
      _
    // Predicated region
    $region34: #{transformer_decoder_layer.1} parent=1 // pred_check
      _
    $region35: #{transformer_decoder_layer.1} parent=1 // pred_check_branch
      %102 = sbr.rel (0) target = $region37
    $region36: #{transformer_decoder_layer.1} parent=1 // pred_region
      _
    $region37: #{transformer_decoder_layer.1} parent=1 // pred_fallthru
      _
    // Predicated region
    $region38: #{transformer_decoder_layer.1} parent=1 // pred_check
      _
    $region39: #{transformer_decoder_layer.1} parent=1 // pred_check_branch
      %104 = sbr.rel (0) target = $region41
    $region40: #{transformer_decoder_layer.1} parent=1 // pred_region
      %s106 = ssub.s32 16, 16
      %107 = vsyncadd [#allocation12], %s106
      %s109 = sshll.u32 [#allocation13], 4
      %s110 = int_to_ptr.vmem [resolvable:$true] %s109
      %112 = dma.hbm_to_vmem [thread:$0]  %s9, 16, %s110, [#allocation12]
    $region41: #{transformer_decoder_layer.1} parent=1 // pred_fallthru
      _
    // Predicated region
    $region42: #{transformer_decoder_layer.1} parent=1 // pred_check
      _
    $region43: #{transformer_decoder_layer.1} parent=1 // pred_check_branch
      %114 = sbr.rel (0) target = $region45
    $region44: #{transformer_decoder_layer.1} parent=1 // pred_region
      _
    $region45: #{transformer_decoder_layer.1} parent=1 // pred_fallthru
      _
    // Predicated region
    $region46: #{transformer_decoder_layer.1} parent=1 // pred_check
      _
    $region47: #{transformer_decoder_layer.1} parent=1 // pred_check_branch
      %116 = sbr.rel (0) target = $region49
    $region48: #{transformer_decoder_layer.1} parent=1 // pred_region
      %s118 = ssub.s32 16, 16
      %119 = vsyncadd [#allocation15], %s118
      %s121 = sshll.u32 [#allocation14], 4
      %s122 = int_to_ptr.vmem [resolvable:$true] %s121
      %124 = dma.hbm_to_vmem [thread:$0]  %s11, 16, %s122, [#allocation15]
    $region49: #{transformer_decoder_layer.1} parent=1 // pred_fallthru
      _
    // Predicated region
    $region50: #{transformer_decoder_layer.1} parent=1 // pred_check
      _
    $region51: #{transformer_decoder_layer.1} parent=1 // pred_check_branch
      %126 = sbr.rel (0) target = $region53
    $region52: #{transformer_decoder_layer.1} parent=1 // pred_region
      %s128 = ssub.s32 16, 16
      %129 = vsyncadd [#allocation15], %s128
      %s131 = sshll.u32 [#allocation16], 4
      %s132 = int_to_ptr.vmem [resolvable:$true] %s131
      %134 = dma.hbm_to_vmem [thread:$0]  %s12, 16, %s132, [#allocation15]
    $region53: #{transformer_decoder_layer.1} parent=1 // pred_fallthru
      _
    // Predicated region
    $region54: #{transformer_decoder_layer.1} parent=1 // pred_check
      _
    $region55: #{transformer_decoder_layer.1} parent=1 // pred_check_branch
      %136 = sbr.rel (0) target = $region57
    $region56: #{transformer_decoder_layer.1} parent=1 // pred_region
      %s138 = ssub.s32 16, 16
      %139 = vsyncadd [#allocation18], %s138
      %s141 = sshll.u32 [#allocation17], 4
      %s142 = int_to_ptr.vmem [resolvable:$true] %s141
      %144 = dma.hbm_to_vmem [thread:$0]  %s13, 16, %s142, [#allocation18]
    $region57: #{transformer_decoder_layer.1} parent=1 // pred_fallthru
      _
    // Predicated region
    $region58: #{transformer_decoder_layer.1} parent=1 // pred_check
      _
    $region59: #{transformer_decoder_layer.1} parent=1 // pred_check_branch
      %146 = sbr.rel (0) target = $region61
    $region60: #{transformer_decoder_layer.1} parent=1 // pred_region
      %s148 = ssub.s32 512, 512
      %149 = vsyncadd [#allocation18], %s148
      %s150 = sshll.u32 [#allocation19], 4
      %s151 = int_to_ptr.vmem [resolvable:$true] %s150
      %156 = dma.hbm_to_vmem [thread:$0]  %s14, 512, %s151, [#allocation18], 128, 128, 8
    $region61: #{transformer_decoder_layer.1} parent=1 // pred_fallthru
      _
    // Predicated region
    $region62: #{transformer_decoder_layer.1} parent=1 // pred_check
      _
    $region63: #{transformer_decoder_layer.1} parent=1 // pred_check_branch
      %158 = sbr.rel (0) target = $region65
    $region64: #{transformer_decoder_layer.1} parent=1 // pred_region
      %s160 = ssub.s32 16, 16
      %161 = vsyncadd [#allocation21], %s160
      %s163 = sshll.u32 [#allocation20], 4
      %s164 = int_to_ptr.vmem [resolvable:$true] %s163
      %166 = dma.hbm_to_vmem [thread:$0]  %s15, 16, %s164, [#allocation21]
    $region65: #{transformer_decoder_layer.1} parent=1 // pred_fallthru
      _
    // Predicated region
    $region66: #{transformer_decoder_layer.1} parent=1 // pred_check
      _
    $region67: #{transformer_decoder_layer.1} parent=1 // pred_check_branch
      %168 = sbr.rel (0) target = $region69
    $region68: #{transformer_decoder_layer.1} parent=1 // pred_region
      _
    $region69: #{transformer_decoder_layer.1} parent=1 // pred_fallthru
      _
    // Predicated region
    $region70: #{transformer_decoder_layer.1} parent=1 // pred_check
      _
    $region71: #{transformer_decoder_layer.1} parent=1 // pred_check_branch
      %170 = sbr.rel (0) target = $region73
    $region72: #{transformer_decoder_layer.1} parent=1 // pred_region
      %s172 = ssub.s32 16, 16
      %173 = vsyncadd [#allocation21], %s172
      %s175 = sshll.u32 [#allocation22], 4
      %s176 = int_to_ptr.vmem [resolvable:$true] %s175
      %178 = dma.hbm_to_vmem [thread:$0]  %s17, 16, %s176, [#allocation21]
    $region73: #{transformer_decoder_layer.1} parent=1 // pred_fallthru
      _
    // Predicated region
    $region74: #{transformer_decoder_layer.1} parent=1 // pred_check
      _
    $region75: #{transformer_decoder_layer.1} parent=1 // pred_check_branch
      %180 = sbr.rel (0) target = $region77
    $region76: #{transformer_decoder_layer.1} parent=1 // pred_region
      %181 = dma.done [#allocation3], 256
    $region77: #{transformer_decoder_layer.1} parent=1 // pred_fallthru
      _
    // Predicated region
    $region78: #{transformer_decoder_layer.1} parent=1 // pred_check
      _
    $region79: #{transformer_decoder_layer.1} parent=1 // pred_check_branch
      %183 = sbr.rel (0) target = $region81
    $region80: #{transformer_decoder_layer.1} parent=1 // pred_region
      %184 = dma.done [#allocation6], 16
    $region81: #{transformer_decoder_layer.1} parent=1 // pred_fallthru
      _
    // Predicated region
    $region82: #{transformer_decoder_layer.1} parent=1 // pred_check
      _
    $region83: #{transformer_decoder_layer.1} parent=1 // pred_check_branch
      %186 = sbr.rel (0) target = $region85
    $region84: #{transformer_decoder_layer.1} parent=1 // pred_region
      %187 = dma.done [#allocation6], 16
    $region85: #{transformer_decoder_layer.1} parent=1 // pred_fallthru
      _
    // Predicated region
    $region86: #{transformer_decoder_layer.1} parent=1 // pred_check
      _
    $region87: #{transformer_decoder_layer.1} parent=1 // pred_check_branch
      %189 = sbr.rel (0) target = $region89
    $region88: #{transformer_decoder_layer.1} parent=1 // pred_region
      %190 = dma.done [#allocation9], 16
    $region89: #{transformer_decoder_layer.1} parent=1 // pred_fallthru
      _
    // Predicated region
    $region90: #{transformer_decoder_layer.1} parent=1 // pred_check
      _
    $region91: #{transformer_decoder_layer.1} parent=1 // pred_check_branch
      %192 = sbr.rel (0) target = $region93
    $region92: #{transformer_decoder_layer.1} parent=1 // pred_region
      %193 = dma.done [#allocation9], 16
    $region93: #{transformer_decoder_layer.1} parent=1 // pred_fallthru
      _
    // Predicated region
    $region94: #{transformer_decoder_layer.1} parent=1 // pred_check
      _
    $region95: #{transformer_decoder_layer.1} parent=1 // pred_check_branch
      %195 = sbr.rel (0) target = $region97
    $region96: #{transformer_decoder_layer.1} parent=1 // pred_region
      %196 = dma.done [#allocation12], 16
    $region97: #{transformer_decoder_layer.1} parent=1 // pred_fallthru
      _
    // Predicated region
    $region98: #{transformer_decoder_layer.1} parent=1 // pred_check
      _
    $region99: #{transformer_decoder_layer.1} parent=1 // pred_check_branch
      %198 = sbr.rel (0) target = $region101
    $region100: #{transformer_decoder_layer.1} parent=1 // pred_region
      %199 = dma.done [#allocation12], 16
    $region101: #{transformer_decoder_layer.1} parent=1 // pred_fallthru
      _
    // Predicated region
    $region102: #{transformer_decoder_layer.1} parent=1 // pred_check
      _
    $region103: #{transformer_decoder_layer.1} parent=1 // pred_check_branch
      %201 = sbr.rel (0) target = $region105
    $region104: #{transformer_decoder_layer.1} parent=1 // pred_region
      %202 = dma.done [#allocation15], 16
    $region105: #{transformer_decoder_layer.1} parent=1 // pred_fallthru
      _
    // Predicated region
    $region106: #{transformer_decoder_layer.1} parent=1 // pred_check
      _
    $region107: #{transformer_decoder_layer.1} parent=1 // pred_check_branch
      %204 = sbr.rel (0) target = $region109
    $region108: #{transformer_decoder_layer.1} parent=1 // pred_region
      %205 = dma.done [#allocation15], 16
    $region109: #{transformer_decoder_layer.1} parent=1 // pred_fallthru
      _
    // Predicated region
    $region110: #{transformer_decoder_layer.1} parent=1 // pred_check
      _
    $region111: #{transformer_decoder_layer.1} parent=1 // pred_check_branch
      %207 = sbr.rel (0) target = $region113
    $region112: #{transformer_decoder_layer.1} parent=1 // pred_region
      %208 = dma.done [#allocation18], 16
    $region113: #{transformer_decoder_layer.1} parent=1 // pred_fallthru
      _
    // Predicated region
    $region114: #{transformer_decoder_layer.1} parent=1 // pred_check
      _
    $region115: #{transformer_decoder_layer.1} parent=1 // pred_check_branch
      %210 = sbr.rel (0) target = $region117
    $region116: #{transformer_decoder_layer.1} parent=1 // pred_region
      %211 = dma.done [#allocation18], 512
    $region117: #{transformer_decoder_layer.1} parent=1 // pred_fallthru
      _
    // Predicated region
    $region118: #{transformer_decoder_layer.1} parent=1 // pred_check
      _
    $region119: #{transformer_decoder_layer.1} parent=1 // pred_check_branch
      %213 = sbr.rel (0) target = $region121
    $region120: #{transformer_decoder_layer.1} parent=1 // pred_region
      %214 = dma.done [#allocation21], 16
    $region121: #{transformer_decoder_layer.1} parent=1 // pred_fallthru
      _
    // Predicated region
    $region122: #{transformer_decoder_layer.1} parent=1 // pred_check
      _
    $region123: #{transformer_decoder_layer.1} parent=1 // pred_check_branch
      %216 = sbr.rel (0) target = $region125
    $region124: #{transformer_decoder_layer.1} parent=1 // pred_region
      %217 = dma.done [#allocation21], 16
    $region125: #{transformer_decoder_layer.1} parent=1 // pred_fallthru
      _
    %v218 = vld [vmem:[#allocation2] sm:$0xff]
    %v219 = vld [vmem:[#allocation2 + $0x8] sm:$0xff]
    %v220 = vld [vmem:[%s1] sm:$0xff]
    %v221 = vld [vmem:[%s1 + $0x8] sm:$0xff]
    %v222 = vld [vmem:[%s1 + $0x10] sm:$0xff]
    %v223 = vld [vmem:[%s1 + $0x18] sm:$0xff]
    %v224 = vld [vmem:[#allocation5] sm:$0x1]
    %v225 = vld [vmem:[#allocation7] sm:$0x1]
    %vm226 = vcmask 261120
    %v227 = vsel %vm226, %v218, 0.0
    %228 = vadd.xlane.f32.xlu0 %v227
    %v229 = vpop.xlane.xlu0 %228
    %v230 = vsel %vm226, %v219, 0.0
    %231 = vadd.xlane.f32.xlu0 %v230
    %v232 = vpop.xlane.xlu0 %231
    %v233 = vmul.f32 %v229, 0.03125
    %v234 = vmul.f32 %v232, 0.03125
    %v235 = vsub.f32 %v218, %v233
    %v236 = vsub.f32 %v219, %v234
    %v237 = vmul.f32 %v235, %v235
    %v238 = vmul.f32 %v236, %v236
    %v239 = vsel %vm226, %v237, 0.0
    %240 = vadd.xlane.f32.xlu0 %v239
    %v241 = vpop.xlane.xlu0 %240
    %v242 = vsel %vm226, %v238, 0.0
    %243 = vadd.xlane.f32.xlu0 %v242
    %v244 = vpop.xlane.xlu0 %243
    %v245 = vmul.f32 %v241, 0.03125
    %v246 = vmul.f32 %v244, 0.03125
    %v247 = vadd.f32 %v245, 1e-05
    %v248 = vadd.f32 %v246, 1e-05
    %v249 = vrsqrt.pop %v247
    %v250 = vrsqrt.pop %v248
    %v251 = vmul.f32 %v235, %v249
    %v252 = vmul.f32 %v236, %v250
    %v254 = vlaneseq
    %v255 = vshrl.u32 %v254, 7
    %v256 = vsub.s32 0, %v255
    %v257 = vrot.slane %v224, %v256
    %v259 = vmul.f32 %v251, %v257
    %v260 = vmul.f32 %v252, %v257
    %v262 = vlaneseq
    %v263 = vshrl.u32 %v262, 7
    %v264 = vsub.s32 0, %v263
    %v265 = vrot.slane %v225, %v264
    %v267 = vadd.f32 %v259, %v265
    %v268 = vadd.f32 %v260, %v265
    %v269 = vld [vmem:[%s4] sm:$0xff]
    %v270 = vld [vmem:[%s4 + $0x8] sm:$0xff]
    %v271 = vld [vmem:[%s4 + $0x10] sm:$0xff]
    %v272 = vld [vmem:[%s4 + $0x18] sm:$0xff]
    %v273 = vld [vmem:[#allocation8] sm:$0x1]
    %v275 = vlaneseq
    %v276 = vshrl.u32 %v275, 7
    %v277 = vsub.s32 0, %v276
    %v278 = vrot.slane %v273, %v277
    %v281 = vsel %vm226, %v267, 0
    %v284 = vsel %vm226, %v268, 0
    %286 = vmatprep.subr.mxu0 0.0
    %287 = vmatpush1.msra.mxu0 %v269
    %288 = vmatprep.subr.mxu0 0.0
    %289 = vmatpush1.msra.mxu0 %v270
    %290 = vmatprep.subr.mxu0 0.0
    %291 = vmatpush1.msra.mxu0 %v271
    %292 = vmatprep.subr.mxu0 0.0
    %293 = vmatpush1.msra.mxu0 %v272
    %294 = vmatprep.subr.mxu0 0.0
    %295 = vmatpush1.msra.mxu0 0.0
    %296 = vmatprep.subr.mxu0 0.0
    %297 = vmatpush1.msra.mxu0 0.0
    %298 = vmatprep.subr.mxu0 0.0
    %299 = vmatpush1.msra.mxu0 0.0
    %300 = vmatprep.subr.mxu0 0.0
    %301 = vmatpush1.msra.mxu0 0.0
    %302 = vmatprep.subr.mxu0 0.0
    %303 = vmatpush1.msra.mxu0 0.0
    %304 = vmatprep.subr.mxu0 0.0
    %305 = vmatpush1.msra.mxu0 0.0
    %306 = vmatprep.subr.mxu0 0.0
    %307 = vmatpush1.msra.mxu0 0.0
    %308 = vmatprep.subr.mxu0 0.0
    %309 = vmatpush1.msra.mxu0 0.0
    %310 = vmatprep.subr.mxu0 0.0
    %311 = vmatpush1.msra.mxu0 0.0
    %312 = vmatprep.subr.mxu0 0.0
    %313 = vmatpush1.msra.mxu0 0.0
    %314 = vmatprep.subr.mxu0 0.0
    %315 = vmatpush1.msra.mxu0 0.0
    %316 = vmatprep.subr.mxu0 0.0
    %317 = vmatpush1.msra.mxu0 0.0
    %318 = vmatprep.subr.mxu0 0.0
    %319 = vmatpush1.msra.mxu0 0.0
    %320 = vmatprep.subr.mxu0 0.0
    %321 = vmatpush1.msra.mxu0 0.0
    %322 = vmatprep.subr.mxu0 0.0
    %323 = vmatpush1.msra.mxu0 0.0
    %324 = vmatprep.subr.mxu0 0.0
    %325 = vmatpush1.msra.mxu0 0.0
    %326 = vmatprep.subr.mxu0 0.0
    %327 = vmatpush1.msra.mxu0 0.0
    %328 = vmatprep.subr.mxu0 0.0
    %329 = vmatpush1.msra.mxu0 0.0
    %330 = vmatprep.subr.mxu0 0.0
    %331 = vmatpush1.msra.mxu0 0.0
    %332 = vmatprep.subr.mxu0 0.0
    %333 = vmatpush1.msra.mxu0 0.0
    %334 = vmatprep.subr.mxu0 0.0
    %335 = vmatpush1.msra.mxu0 0.0
    %336 = vmatprep.subr.mxu0 0.0
    %337 = vmatpush1.msra.mxu0 0.0
    %338 = vmatprep.subr.mxu0 0.0
    %339 = vmatpush1.msra.mxu0 0.0
    %340 = vmatprep.subr.mxu0 0.0
    %341 = vmatpush1.msra.mxu0 0.0
    %342 = vmatprep.subr.mxu0 0.0
    %343 = vmatpush1.msra.mxu0 0.0
    %344 = vmatprep.subr.mxu0 0.0
    %345 = vmatpush1.msra.mxu0 0.0
    %346 = vmatprep.subr.mxu0 0.0
    %347 = vmatpush1.msra.mxu0 0.0
    %348 = vmatprep.subr.mxu0 0.0
    %349 = vmatpush1.msra.mxu0 0.0
    %350 = vmatprep.mubr.f32.mxu0 0.0
    %351 = vmatmul.mubr.f32.gmra.mrb[0].mxu0 %v281
    %v352 = vpop.f32.mrb[0].mxu0
    %v353 = vadd.f32 %v278, %v352
    %v354 = vpop.f32.mrb[0].mxu0
    %355 = vmatprep.mubr.f32.mxu0 0.0
    %356 = vmatmul.mubr.f32.gmra.mrb[0].mxu0 %v284
    %v357 = vpop.f32.mrb[0].mxu0
    %v358 = vadd.f32 %v278, %v357
    %v359 = vpop.f32.mrb[0].mxu0
    %360 = vdwg.mxu0
    %362 = vrot.lane.b32.xlu0 %v353, 96
    %v363 = vpop.permute.xlu0 %362
    %vm364 = vcmask 64512
    %v365 = vsel %vm364, %v353, 0
    %v367 = vsel %vm364, %v363, 0
    %369 = vmatprep.subr.mxu0 0.0
    %370 = vmatpush1.xpose.msra.mxu0 %v367
    %371 = vmatprep.subr.mxu0 0.0
    %372 = vmatpush1.xpose.msra.mxu0 0.0
    %373 = vmatprep.subr.mxu0 0.0
    %374 = vmatpush1.xpose.msra.mxu0 0.0
    %375 = vmatprep.subr.mxu0 0.0
    %376 = vmatpush1.xpose.msra.mxu0 0.0
    %377 = vmatprep.subr.mxu0 0.0
    %378 = vmatpush1.xpose.msra.mxu0 0.0
    %379 = vmatprep.subr.mxu0 0.0
    %380 = vmatpush1.xpose.msra.mxu0 0.0
    %381 = vmatprep.subr.mxu0 0.0
    %382 = vmatpush1.xpose.msra.mxu0 0.0
    %383 = vmatprep.subr.mxu0 0.0
    %384 = vmatpush1.xpose.msra.mxu0 0.0
    %385 = vmatprep.subr.mxu0 0.0
    %386 = vmatpush1.xpose.msra.mxu0 0.0
    %387 = vmatprep.subr.mxu0 0.0
    %388 = vmatpush1.xpose.msra.mxu0 0.0
    %389 = vmatprep.subr.mxu0 0.0
    %390 = vmatpush1.xpose.msra.mxu0 0.0
    %391 = vmatprep.subr.mxu0 0.0
    %392 = vmatpush1.xpose.msra.mxu0 0.0
    %393 = vmatprep.subr.mxu0 0.0
    %394 = vmatpush1.xpose.msra.mxu0 0.0
    %395 = vmatprep.subr.mxu0 0.0
    %396 = vmatpush1.xpose.msra.mxu0 0.0
    %397 = vmatprep.subr.mxu0 0.0
    %398 = vmatpush1.xpose.msra.mxu0 0.0
    %399 = vmatprep.subr.mxu0 0.0
    %400 = vmatpush1.xpose.msra.mxu0 0.0
    %401 = vmatprep.subr.mxu0 0.0
    %402 = vmatpush1.xpose.msra.mxu0 0.0
    %403 = vmatprep.subr.mxu0 0.0
    %404 = vmatpush1.xpose.msra.mxu0 0.0
    %405 = vmatprep.subr.mxu0 0.0
    %406 = vmatpush1.xpose.msra.mxu0 0.0
    %407 = vmatprep.subr.mxu0 0.0
    %408 = vmatpush1.xpose.msra.mxu0 0.0
    %409 = vmatprep.subr.mxu0 0.0
    %410 = vmatpush1.xpose.msra.mxu0 0.0
    %411 = vmatprep.subr.mxu0 0.0
    %412 = vmatpush1.xpose.msra.mxu0 0.0
    %413 = vmatprep.subr.mxu0 0.0
    %414 = vmatpush1.xpose.msra.mxu0 0.0
    %415 = vmatprep.subr.mxu0 0.0
    %416 = vmatpush1.xpose.msra.mxu0 0.0
    %417 = vmatprep.subr.mxu0 0.0
    %418 = vmatpush1.xpose.msra.mxu0 0.0
    %419 = vmatprep.subr.mxu0 0.0
    %420 = vmatpush1.xpose.msra.mxu0 0.0
    %421 = vmatprep.subr.mxu0 0.0
    %422 = vmatpush1.xpose.msra.mxu0 0.0
    %423 = vmatprep.subr.mxu0 0.0
    %424 = vmatpush1.xpose.msra.mxu0 0.0
    %425 = vmatprep.subr.mxu0 0.0
    %426 = vmatpush1.xpose.msra.mxu0 0.0
    %427 = vmatprep.subr.mxu0 0.0
    %428 = vmatpush1.xpose.msra.mxu0 0.0
    %429 = vmatprep.subr.mxu0 0.0
    %430 = vmatpush1.xpose.msra.mxu0 0.0
    %431 = vmatprep.subr.mxu0 0.0
    %432 = vmatpush1.xpose.msra.mxu0 0.0
    %433 = vmatprep.mubr.f32.mxu0 0.0
    %434 = vmatmul.mubr.f32.gmra.mrb[0].mxu0 %v365
    %v435 = vpop.f32.mrb[0].mxu0
    %v436 = vadd.f32 0.0, %v435
    %v437 = vpop.f32.mrb[0].mxu0
    %438 = vdwg.mxu0
    %v439 = vmul.f32 %v436, 0.35355338
    %v440 = vsel %vm364, %v439, -inf
    %441 = vmax.xlane.f32.xlu0 %v440
    %v442 = vpop.xlane.xlu0 %441
    %v443 = vsub.f32 %v439, %v442
    %v444 = vmul.f32 %v443, 1.442695
    %v445 = vpow.pop %v444
    %v446 = vsel %vm364, %v445, 0.0
    %447 = vadd.xlane.f32.xlu0 %v446
    %v448 = vpop.xlane.xlu0 %447
    %v449 = vrcp.pop %v448
    %v450 = vmul.f32 %v445, %v449
    %451 = vst.msk [vmem:[#allocation24] sm:$0xff] %vm364, %v450
    %452 = vrot.lane.b32.xlu0 %v353, 64
    %v453 = vpop.permute.xlu0 %452
    %v456 = vsel %vm364, %v450, 0
    %458 = vmatprep.subr.mxu0 0.0
    %459 = vmatpush1.msra.mxu0 %v453
    %460 = vmatprep.subr.mxu0 0.0
    %461 = vmatpush1.msra.mxu0 0.0
    %462 = vmatprep.subr.mxu0 0.0
    %463 = vmatpush1.msra.mxu0 0.0
    %464 = vmatprep.subr.mxu0 0.0
    %465 = vmatpush1.msra.mxu0 0.0
    %466 = vmatprep.subr.mxu0 0.0
    %467 = vmatpush1.msra.mxu0 0.0
    %468 = vmatprep.subr.mxu0 0.0
    %469 = vmatpush1.msra.mxu0 0.0
    %470 = vmatprep.subr.mxu0 0.0
    %471 = vmatpush1.msra.mxu0 0.0
    %472 = vmatprep.subr.mxu0 0.0
    %473 = vmatpush1.msra.mxu0 0.0
    %474 = vmatprep.subr.mxu0 0.0
    %475 = vmatpush1.msra.mxu0 0.0
    %476 = vmatprep.subr.mxu0 0.0
    %477 = vmatpush1.msra.mxu0 0.0
    %478 = vmatprep.subr.mxu0 0.0
    %479 = vmatpush1.msra.mxu0 0.0
    %480 = vmatprep.subr.mxu0 0.0
    %481 = vmatpush1.msra.mxu0 0.0
    %482 = vmatprep.subr.mxu0 0.0
    %483 = vmatpush1.msra.mxu0 0.0
    %484 = vmatprep.subr.mxu0 0.0
    %485 = vmatpush1.msra.mxu0 0.0
    %486 = vmatprep.subr.mxu0 0.0
    %487 = vmatpush1.msra.mxu0 0.0
    %488 = vmatprep.subr.mxu0 0.0
    %489 = vmatpush1.msra.mxu0 0.0
    %490 = vmatprep.subr.mxu0 0.0
    %491 = vmatpush1.msra.mxu0 0.0
    %492 = vmatprep.subr.mxu0 0.0
    %493 = vmatpush1.msra.mxu0 0.0
    %494 = vmatprep.subr.mxu0 0.0
    %495 = vmatpush1.msra.mxu0 0.0
    %496 = vmatprep.subr.mxu0 0.0
    %497 = vmatpush1.msra.mxu0 0.0
    %498 = vmatprep.subr.mxu0 0.0
    %499 = vmatpush1.msra.mxu0 0.0
    %500 = vmatprep.subr.mxu0 0.0
    %501 = vmatpush1.msra.mxu0 0.0
    %502 = vmatprep.subr.mxu0 0.0
    %503 = vmatpush1.msra.mxu0 0.0
    %504 = vmatprep.subr.mxu0 0.0
    %505 = vmatpush1.msra.mxu0 0.0
    %506 = vmatprep.subr.mxu0 0.0
    %507 = vmatpush1.msra.mxu0 0.0
    %508 = vmatprep.subr.mxu0 0.0
    %509 = vmatpush1.msra.mxu0 0.0
    %510 = vmatprep.subr.mxu0 0.0
    %511 = vmatpush1.msra.mxu0 0.0
    %512 = vmatprep.subr.mxu0 0.0
    %513 = vmatpush1.msra.mxu0 0.0
    %514 = vmatprep.subr.mxu0 0.0
    %515 = vmatpush1.msra.mxu0 0.0
    %516 = vmatprep.subr.mxu0 0.0
    %517 = vmatpush1.msra.mxu0 0.0
    %518 = vmatprep.subr.mxu0 0.0
    %519 = vmatpush1.msra.mxu0 0.0
    %520 = vmatprep.subr.mxu0 0.0
    %521 = vmatpush1.msra.mxu0 0.0
    %522 = vmatprep.mubr.f32.mxu0 0.0
    %523 = vmatmul.mubr.f32.gmra.mrb[0].mxu0 %v456
    %v524 = vpop.f32.mrb[0].mxu0
    %v525 = vadd.f32 0.0, %v524
    %v526 = vpop.f32.mrb[0].mxu0
    %527 = vdwg.mxu0
    %529 = vrot.lane.b32.xlu0 %v358, 96
    %v530 = vpop.permute.xlu0 %529
    %v531 = vsel %vm364, %v358, 0
    %v533 = vsel %vm364, %v530, 0
    %535 = vmatprep.subr.mxu0 0.0
    %536 = vmatpush1.xpose.msra.mxu0 %v533
    %537 = vmatprep.subr.mxu0 0.0
    %538 = vmatpush1.xpose.msra.mxu0 0.0
    %539 = vmatprep.subr.mxu0 0.0
    %540 = vmatpush1.xpose.msra.mxu0 0.0
    %541 = vmatprep.subr.mxu0 0.0
    %542 = vmatpush1.xpose.msra.mxu0 0.0
    %543 = vmatprep.subr.mxu0 0.0
    %544 = vmatpush1.xpose.msra.mxu0 0.0
    %545 = vmatprep.subr.mxu0 0.0
    %546 = vmatpush1.xpose.msra.mxu0 0.0
    %547 = vmatprep.subr.mxu0 0.0
    %548 = vmatpush1.xpose.msra.mxu0 0.0
    %549 = vmatprep.subr.mxu0 0.0
    %550 = vmatpush1.xpose.msra.mxu0 0.0
    %551 = vmatprep.subr.mxu0 0.0
    %552 = vmatpush1.xpose.msra.mxu0 0.0
    %553 = vmatprep.subr.mxu0 0.0
    %554 = vmatpush1.xpose.msra.mxu0 0.0
    %555 = vmatprep.subr.mxu0 0.0
    %556 = vmatpush1.xpose.msra.mxu0 0.0
    %557 = vmatprep.subr.mxu0 0.0
    %558 = vmatpush1.xpose.msra.mxu0 0.0
    %559 = vmatprep.subr.mxu0 0.0
    %560 = vmatpush1.xpose.msra.mxu0 0.0
    %561 = vmatprep.subr.mxu0 0.0
    %562 = vmatpush1.xpose.msra.mxu0 0.0
    %563 = vmatprep.subr.mxu0 0.0
    %564 = vmatpush1.xpose.msra.mxu0 0.0
    %565 = vmatprep.subr.mxu0 0.0
    %566 = vmatpush1.xpose.msra.mxu0 0.0
    %567 = vmatprep.subr.mxu0 0.0
    %568 = vmatpush1.xpose.msra.mxu0 0.0
    %569 = vmatprep.subr.mxu0 0.0
    %570 = vmatpush1.xpose.msra.mxu0 0.0
    %571 = vmatprep.subr.mxu0 0.0
    %572 = vmatpush1.xpose.msra.mxu0 0.0
    %573 = vmatprep.subr.mxu0 0.0
    %574 = vmatpush1.xpose.msra.mxu0 0.0
    %575 = vmatprep.subr.mxu0 0.0
    %576 = vmatpush1.xpose.msra.mxu0 0.0
    %577 = vmatprep.subr.mxu0 0.0
    %578 = vmatpush1.xpose.msra.mxu0 0.0
    %579 = vmatprep.subr.mxu0 0.0
    %580 = vmatpush1.xpose.msra.mxu0 0.0
    %581 = vmatprep.subr.mxu0 0.0
    %582 = vmatpush1.xpose.msra.mxu0 0.0
    %583 = vmatprep.subr.mxu0 0.0
    %584 = vmatpush1.xpose.msra.mxu0 0.0
    %585 = vmatprep.subr.mxu0 0.0
    %586 = vmatpush1.xpose.msra.mxu0 0.0
    %587 = vmatprep.subr.mxu0 0.0
    %588 = vmatpush1.xpose.msra.mxu0 0.0
    %589 = vmatprep.subr.mxu0 0.0
    %590 = vmatpush1.xpose.msra.mxu0 0.0
    %591 = vmatprep.subr.mxu0 0.0
    %592 = vmatpush1.xpose.msra.mxu0 0.0
    %593 = vmatprep.subr.mxu0 0.0
    %594 = vmatpush1.xpose.msra.mxu0 0.0
    %595 = vmatprep.subr.mxu0 0.0
    %596 = vmatpush1.xpose.msra.mxu0 0.0
    %597 = vmatprep.subr.mxu0 0.0
    %598 = vmatpush1.xpose.msra.mxu0 0.0
    %599 = vmatprep.mubr.f32.mxu0 0.0
    %600 = vmatmul.mubr.f32.gmra.mrb[0].mxu0 %v531
    %v601 = vpop.f32.mrb[0].mxu0
    %v602 = vadd.f32 0.0, %v601
    %v603 = vpop.f32.mrb[0].mxu0
    %604 = vdwg.mxu0
    %v605 = vmul.f32 %v602, 0.35355338
    %v606 = vsel %vm364, %v605, -inf
    %607 = vmax.xlane.f32.xlu0 %v606
    %v608 = vpop.xlane.xlu0 %607
    %v609 = vsub.f32 %v605, %v608
    %v610 = vmul.f32 %v609, 1.442695
    %v611 = vpow.pop %v610
    %v612 = vsel %vm364, %v611, 0.0
    %613 = vadd.xlane.f32.xlu0 %v612
    %v614 = vpop.xlane.xlu0 %613
    %v615 = vrcp.pop %v614
    %v616 = vmul.f32 %v611, %v615
    %s617 = scalar_lea.vmem [#allocation24], 8
    %618 = vst.msk [vmem:[%s617] sm:$0xff] %vm364, %v616
    %619 = vrot.lane.b32.xlu0 %v358, 64
    %v620 = vpop.permute.xlu0 %619
    %v623 = vsel %vm364, %v616, 0
    %625 = vmatprep.subr.mxu0 0.0
    %626 = vmatpush1.msra.mxu0 %v620
    %627 = vmatprep.subr.mxu0 0.0
    %628 = vmatpush1.msra.mxu0 0.0
    %629 = vmatprep.subr.mxu0 0.0
    %630 = vmatpush1.msra.mxu0 0.0
    %631 = vmatprep.subr.mxu0 0.0
    %632 = vmatpush1.msra.mxu0 0.0
    %633 = vmatprep.subr.mxu0 0.0
    %634 = vmatpush1.msra.mxu0 0.0
    %635 = vmatprep.subr.mxu0 0.0
    %636 = vmatpush1.msra.mxu0 0.0
    %637 = vmatprep.subr.mxu0 0.0
    %638 = vmatpush1.msra.mxu0 0.0
    %639 = vmatprep.subr.mxu0 0.0
    %640 = vmatpush1.msra.mxu0 0.0
    %641 = vmatprep.subr.mxu0 0.0
    %642 = vmatpush1.msra.mxu0 0.0
    %643 = vmatprep.subr.mxu0 0.0
    %644 = vmatpush1.msra.mxu0 0.0
    %645 = vmatprep.subr.mxu0 0.0
    %646 = vmatpush1.msra.mxu0 0.0
    %647 = vmatprep.subr.mxu0 0.0
    %648 = vmatpush1.msra.mxu0 0.0
    %649 = vmatprep.subr.mxu0 0.0
    %650 = vmatpush1.msra.mxu0 0.0
    %651 = vmatprep.subr.mxu0 0.0
    %652 = vmatpush1.msra.mxu0 0.0
    %653 = vmatprep.subr.mxu0 0.0
    %654 = vmatpush1.msra.mxu0 0.0
    %655 = vmatprep.subr.mxu0 0.0
    %656 = vmatpush1.msra.mxu0 0.0
    %657 = vmatprep.subr.mxu0 0.0
    %658 = vmatpush1.msra.mxu0 0.0
    %659 = vmatprep.subr.mxu0 0.0
    %660 = vmatpush1.msra.mxu0 0.0
    %661 = vmatprep.subr.mxu0 0.0
    %662 = vmatpush1.msra.mxu0 0.0
    %663 = vmatprep.subr.mxu0 0.0
    %664 = vmatpush1.msra.mxu0 0.0
    %665 = vmatprep.subr.mxu0 0.0
    %666 = vmatpush1.msra.mxu0 0.0
    %667 = vmatprep.subr.mxu0 0.0
    %668 = vmatpush1.msra.mxu0 0.0
    %669 = vmatprep.subr.mxu0 0.0
    %670 = vmatpush1.msra.mxu0 0.0
    %671 = vmatprep.subr.mxu0 0.0
    %672 = vmatpush1.msra.mxu0 0.0
    %673 = vmatprep.subr.mxu0 0.0
    %674 = vmatpush1.msra.mxu0 0.0
    %675 = vmatprep.subr.mxu0 0.0
    %676 = vmatpush1.msra.mxu0 0.0
    %677 = vmatprep.subr.mxu0 0.0
    %678 = vmatpush1.msra.mxu0 0.0
    %679 = vmatprep.subr.mxu0 0.0
    %680 = vmatpush1.msra.mxu0 0.0
    %681 = vmatprep.subr.mxu0 0.0
    %682 = vmatpush1.msra.mxu0 0.0
    %683 = vmatprep.subr.mxu0 0.0
    %684 = vmatpush1.msra.mxu0 0.0
    %685 = vmatprep.subr.mxu0 0.0
    %686 = vmatpush1.msra.mxu0 0.0
    %687 = vmatprep.subr.mxu0 0.0
    %688 = vmatpush1.msra.mxu0 0.0
    %689 = vmatprep.mubr.f32.mxu0 0.0
    %690 = vmatmul.mubr.f32.gmra.mrb[0].mxu0 %v623
    %v691 = vpop.f32.mrb[0].mxu0
    %v692 = vadd.f32 0.0, %v691
    %v693 = vpop.f32.mrb[0].mxu0
    %694 = vdwg.mxu0
    %695 = vrot.lane.b32.xlu0 %v353, 120
    %v696 = vpop.permute.xlu0 %695
    %697 = vrot.lane.b32.xlu0 %v353, 88
    %v698 = vpop.permute.xlu0 %697
    %v699 = vsel %vm364, %v696, 0
    %v701 = vsel %vm364, %v698, 0
    %703 = vmatprep.subr.mxu0 0.0
    %704 = vmatpush1.xpose.msra.mxu0 %v701
    %705 = vmatprep.subr.mxu0 0.0
    %706 = vmatpush1.xpose.msra.mxu0 0.0
    %707 = vmatprep.subr.mxu0 0.0
    %708 = vmatpush1.xpose.msra.mxu0 0.0
    %709 = vmatprep.subr.mxu0 0.0
    %710 = vmatpush1.xpose.msra.mxu0 0.0
    %711 = vmatprep.subr.mxu0 0.0
    %712 = vmatpush1.xpose.msra.mxu0 0.0
    %713 = vmatprep.subr.mxu0 0.0
    %714 = vmatpush1.xpose.msra.mxu0 0.0
    %715 = vmatprep.subr.mxu0 0.0
    %716 = vmatpush1.xpose.msra.mxu0 0.0
    %717 = vmatprep.subr.mxu0 0.0
    %718 = vmatpush1.xpose.msra.mxu0 0.0
    %719 = vmatprep.subr.mxu0 0.0
    %720 = vmatpush1.xpose.msra.mxu0 0.0
    %721 = vmatprep.subr.mxu0 0.0
    %722 = vmatpush1.xpose.msra.mxu0 0.0
    %723 = vmatprep.subr.mxu0 0.0
    %724 = vmatpush1.xpose.msra.mxu0 0.0
    %725 = vmatprep.subr.mxu0 0.0
    %726 = vmatpush1.xpose.msra.mxu0 0.0
    %727 = vmatprep.subr.mxu0 0.0
    %728 = vmatpush1.xpose.msra.mxu0 0.0
    %729 = vmatprep.subr.mxu0 0.0
    %730 = vmatpush1.xpose.msra.mxu0 0.0
    %731 = vmatprep.subr.mxu0 0.0
    %732 = vmatpush1.xpose.msra.mxu0 0.0
    %733 = vmatprep.subr.mxu0 0.0
    %734 = vmatpush1.xpose.msra.mxu0 0.0
    %735 = vmatprep.subr.mxu0 0.0
    %736 = vmatpush1.xpose.msra.mxu0 0.0
    %737 = vmatprep.subr.mxu0 0.0
    %738 = vmatpush1.xpose.msra.mxu0 0.0
    %739 = vmatprep.subr.mxu0 0.0
    %740 = vmatpush1.xpose.msra.mxu0 0.0
    %741 = vmatprep.subr.mxu0 0.0
    %742 = vmatpush1.xpose.msra.mxu0 0.0
    %743 = vmatprep.subr.mxu0 0.0
    %744 = vmatpush1.xpose.msra.mxu0 0.0
    %745 = vmatprep.subr.mxu0 0.0
    %746 = vmatpush1.xpose.msra.mxu0 0.0
    %747 = vmatprep.subr.mxu0 0.0
    %748 = vmatpush1.xpose.msra.mxu0 0.0
    %749 = vmatprep.subr.mxu0 0.0
    %750 = vmatpush1.xpose.msra.mxu0 0.0
    %751 = vmatprep.subr.mxu0 0.0
    %752 = vmatpush1.xpose.msra.mxu0 0.0
    %753 = vmatprep.subr.mxu0 0.0
    %754 = vmatpush1.xpose.msra.mxu0 0.0
    %755 = vmatprep.subr.mxu0 0.0
    %756 = vmatpush1.xpose.msra.mxu0 0.0
    %757 = vmatprep.subr.mxu0 0.0
    %758 = vmatpush1.xpose.msra.mxu0 0.0
    %759 = vmatprep.subr.mxu0 0.0
    %760 = vmatpush1.xpose.msra.mxu0 0.0
    %761 = vmatprep.subr.mxu0 0.0
    %762 = vmatpush1.xpose.msra.mxu0 0.0
    %763 = vmatprep.subr.mxu0 0.0
    %764 = vmatpush1.xpose.msra.mxu0 0.0
    %765 = vmatprep.subr.mxu0 0.0
    %766 = vmatpush1.xpose.msra.mxu0 0.0
    %767 = vmatprep.mubr.f32.mxu0 0.0
    %768 = vmatmul.mubr.f32.gmra.mrb[0].mxu0 %v699
    %v769 = vpop.f32.mrb[0].mxu0
    %v770 = vadd.f32 0.0, %v769
    %v771 = vpop.f32.mrb[0].mxu0
    %772 = vdwg.mxu0
    %v773 = vmul.f32 %v770, 0.35355338
    %v774 = vsel %vm364, %v773, -inf
    %775 = vmax.xlane.f32.xlu0 %v774
    %v776 = vpop.xlane.xlu0 %775
    %v777 = vsub.f32 %v773, %v776
    %v778 = vmul.f32 %v777, 1.442695
    %v779 = vpow.pop %v778
    %v780 = vsel %vm364, %v779, 0.0
    %781 = vadd.xlane.f32.xlu0 %v780
    %v782 = vpop.xlane.xlu0 %781
    %v783 = vrcp.pop %v782
    %v784 = vmul.f32 %v779, %v783
    %s785 = scalar_lea.vmem [#allocation24], 16
    %786 = vst.msk [vmem:[%s785] sm:$0xff] %vm364, %v784
    %787 = vrot.lane.b32.xlu0 %v353, 56
    %v788 = vpop.permute.xlu0 %787
    %v791 = vsel %vm364, %v784, 0
    %793 = vmatprep.subr.mxu0 0.0
    %794 = vmatpush1.msra.mxu0 %v788
    %795 = vmatprep.subr.mxu0 0.0
    %796 = vmatpush1.msra.mxu0 0.0
    %797 = vmatprep.subr.mxu0 0.0
    %798 = vmatpush1.msra.mxu0 0.0
    %799 = vmatprep.subr.mxu0 0.0
    %800 = vmatpush1.msra.mxu0 0.0
    %801 = vmatprep.subr.mxu0 0.0
    %802 = vmatpush1.msra.mxu0 0.0
    %803 = vmatprep.subr.mxu0 0.0
    %804 = vmatpush1.msra.mxu0 0.0
    %805 = vmatprep.subr.mxu0 0.0
    %806 = vmatpush1.msra.mxu0 0.0
    %807 = vmatprep.subr.mxu0 0.0
    %808 = vmatpush1.msra.mxu0 0.0
    %809 = vmatprep.subr.mxu0 0.0
    %810 = vmatpush1.msra.mxu0 0.0
    %811 = vmatprep.subr.mxu0 0.0
    %812 = vmatpush1.msra.mxu0 0.0
    %813 = vmatprep.subr.mxu0 0.0
    %814 = vmatpush1.msra.mxu0 0.0
    %815 = vmatprep.subr.mxu0 0.0
    %816 = vmatpush1.msra.mxu0 0.0
    %817 = vmatprep.subr.mxu0 0.0
    %818 = vmatpush1.msra.mxu0 0.0
    %819 = vmatprep.subr.mxu0 0.0
    %820 = vmatpush1.msra.mxu0 0.0
    %821 = vmatprep.subr.mxu0 0.0
    %822 = vmatpush1.msra.mxu0 0.0
    %823 = vmatprep.subr.mxu0 0.0
    %824 = vmatpush1.msra.mxu0 0.0
    %825 = vmatprep.subr.mxu0 0.0
    %826 = vmatpush1.msra.mxu0 0.0
    %827 = vmatprep.subr.mxu0 0.0
    %828 = vmatpush1.msra.mxu0 0.0
    %829 = vmatprep.subr.mxu0 0.0
    %830 = vmatpush1.msra.mxu0 0.0
    %831 = vmatprep.subr.mxu0 0.0
    %832 = vmatpush1.msra.mxu0 0.0
    %833 = vmatprep.subr.mxu0 0.0
    %834 = vmatpush1.msra.mxu0 0.0
    %835 = vmatprep.subr.mxu0 0.0
    %836 = vmatpush1.msra.mxu0 0.0
    %837 = vmatprep.subr.mxu0 0.0
    %838 = vmatpush1.msra.mxu0 0.0
    %839 = vmatprep.subr.mxu0 0.0
    %840 = vmatpush1.msra.mxu0 0.0
    %841 = vmatprep.subr.mxu0 0.0
    %842 = vmatpush1.msra.mxu0 0.0
    %843 = vmatprep.subr.mxu0 0.0
    %844 = vmatpush1.msra.mxu0 0.0
    %845 = vmatprep.subr.mxu0 0.0
    %846 = vmatpush1.msra.mxu0 0.0
    %847 = vmatprep.subr.mxu0 0.0
    %848 = vmatpush1.msra.mxu0 0.0
    %849 = vmatprep.subr.mxu0 0.0
    %850 = vmatpush1.msra.mxu0 0.0
    %851 = vmatprep.subr.mxu0 0.0
    %852 = vmatpush1.msra.mxu0 0.0
    %853 = vmatprep.subr.mxu0 0.0
    %854 = vmatpush1.msra.mxu0 0.0
    %855 = vmatprep.subr.mxu0 0.0
    %856 = vmatpush1.msra.mxu0 0.0
    %857 = vmatprep.mubr.f32.mxu0 0.0
    %858 = vmatmul.mubr.f32.gmra.mrb[0].mxu0 %v791
    %v859 = vpop.f32.mrb[0].mxu0
    %v860 = vadd.f32 0.0, %v859
    %v861 = vpop.f32.mrb[0].mxu0
    %862 = vdwg.mxu0
    %863 = vrot.lane.b32.xlu0 %v358, 120
    %v864 = vpop.permute.xlu0 %863
    %865 = vrot.lane.b32.xlu0 %v358, 88
    %v866 = vpop.permute.xlu0 %865
    %v867 = vsel %vm364, %v864, 0
    %v869 = vsel %vm364, %v866, 0
    %871 = vmatprep.subr.mxu0 0.0
    %872 = vmatpush1.xpose.msra.mxu0 %v869
    %873 = vmatprep.subr.mxu0 0.0
    %874 = vmatpush1.xpose.msra.mxu0 0.0
    %875 = vmatprep.subr.mxu0 0.0
    %876 = vmatpush1.xpose.msra.mxu0 0.0
    %877 = vmatprep.subr.mxu0 0.0
    %878 = vmatpush1.xpose.msra.mxu0 0.0
    %879 = vmatprep.subr.mxu0 0.0
    %880 = vmatpush1.xpose.msra.mxu0 0.0
    %881 = vmatprep.subr.mxu0 0.0
    %882 = vmatpush1.xpose.msra.mxu0 0.0
    %883 = vmatprep.subr.mxu0 0.0
    %884 = vmatpush1.xpose.msra.mxu0 0.0
    %885 = vmatprep.subr.mxu0 0.0
    %886 = vmatpush1.xpose.msra.mxu0 0.0
    %887 = vmatprep.subr.mxu0 0.0
    %888 = vmatpush1.xpose.msra.mxu0 0.0
    %889 = vmatprep.subr.mxu0 0.0
    %890 = vmatpush1.xpose.msra.mxu0 0.0
    %891 = vmatprep.subr.mxu0 0.0
    %892 = vmatpush1.xpose.msra.mxu0 0.0
    %893 = vmatprep.subr.mxu0 0.0
    %894 = vmatpush1.xpose.msra.mxu0 0.0
    %895 = vmatprep.subr.mxu0 0.0
    %896 = vmatpush1.xpose.msra.mxu0 0.0
    %897 = vmatprep.subr.mxu0 0.0
    %898 = vmatpush1.xpose.msra.mxu0 0.0
    %899 = vmatprep.subr.mxu0 0.0
    %900 = vmatpush1.xpose.msra.mxu0 0.0
    %901 = vmatprep.subr.mxu0 0.0
    %902 = vmatpush1.xpose.msra.mxu0 0.0
    %903 = vmatprep.subr.mxu0 0.0
    %904 = vmatpush1.xpose.msra.mxu0 0.0
    %905 = vmatprep.subr.mxu0 0.0
    %906 = vmatpush1.xpose.msra.mxu0 0.0
    %907 = vmatprep.subr.mxu0 0.0
    %908 = vmatpush1.xpose.msra.mxu0 0.0
    %909 = vmatprep.subr.mxu0 0.0
    %910 = vmatpush1.xpose.msra.mxu0 0.0
    %911 = vmatprep.subr.mxu0 0.0
    %912 = vmatpush1.xpose.msra.mxu0 0.0
    %913 = vmatprep.subr.mxu0 0.0
    %914 = vmatpush1.xpose.msra.mxu0 0.0
    %915 = vmatprep.subr.mxu0 0.0
    %916 = vmatpush1.xpose.msra.mxu0 0.0
    %917 = vmatprep.subr.mxu0 0.0
    %918 = vmatpush1.xpose.msra.mxu0 0.0
    %919 = vmatprep.subr.mxu0 0.0
    %920 = vmatpush1.xpose.msra.mxu0 0.0
    %921 = vmatprep.subr.mxu0 0.0
    %922 = vmatpush1.xpose.msra.mxu0 0.0
    %923 = vmatprep.subr.mxu0 0.0
    %924 = vmatpush1.xpose.msra.mxu0 0.0
    %925 = vmatprep.subr.mxu0 0.0
    %926 = vmatpush1.xpose.msra.mxu0 0.0
    %927 = vmatprep.subr.mxu0 0.0
    %928 = vmatpush1.xpose.msra.mxu0 0.0
    %929 = vmatprep.subr.mxu0 0.0
    %930 = vmatpush1.xpose.msra.mxu0 0.0
    %931 = vmatprep.subr.mxu0 0.0
    %932 = vmatpush1.xpose.msra.mxu0 0.0
    %933 = vmatprep.subr.mxu0 0.0
    %934 = vmatpush1.xpose.msra.mxu0 0.0
    %935 = vmatprep.mubr.f32.mxu0 0.0
    %936 = vmatmul.mubr.f32.gmra.mrb[0].mxu0 %v867
    %v937 = vpop.f32.mrb[0].mxu0
    %v938 = vadd.f32 0.0, %v937
    %v939 = vpop.f32.mrb[0].mxu0
    %940 = vdwg.mxu0
    %v941 = vmul.f32 %v938, 0.35355338
    %v942 = vsel %vm364, %v941, -inf
    %943 = vmax.xlane.f32.xlu0 %v942
    %v944 = vpop.xlane.xlu0 %943
    %v945 = vsub.f32 %v941, %v944
    %v946 = vmul.f32 %v945, 1.442695
    %v947 = vpow.pop %v946
    %v948 = vsel %vm364, %v947, 0.0
    %949 = vadd.xlane.f32.xlu0 %v948
    %v950 = vpop.xlane.xlu0 %949
    %v951 = vrcp.pop %v950
    %v952 = vmul.f32 %v947, %v951
    %s953 = scalar_lea.vmem [#allocation24], 24
    %954 = vst.msk [vmem:[%s953] sm:$0xff] %vm364, %v952
    %955 = vrot.lane.b32.xlu0 %v358, 56
    %v956 = vpop.permute.xlu0 %955
    %v959 = vsel %vm364, %v952, 0
    %961 = vmatprep.subr.mxu0 0.0
    %962 = vmatpush1.msra.mxu0 %v956
    %963 = vmatprep.subr.mxu0 0.0
    %964 = vmatpush1.msra.mxu0 0.0
    %965 = vmatprep.subr.mxu0 0.0
    %966 = vmatpush1.msra.mxu0 0.0
    %967 = vmatprep.subr.mxu0 0.0
    %968 = vmatpush1.msra.mxu0 0.0
    %969 = vmatprep.subr.mxu0 0.0
    %970 = vmatpush1.msra.mxu0 0.0
    %971 = vmatprep.subr.mxu0 0.0
    %972 = vmatpush1.msra.mxu0 0.0
    %973 = vmatprep.subr.mxu0 0.0
    %974 = vmatpush1.msra.mxu0 0.0
    %975 = vmatprep.subr.mxu0 0.0
    %976 = vmatpush1.msra.mxu0 0.0
    %977 = vmatprep.subr.mxu0 0.0
    %978 = vmatpush1.msra.mxu0 0.0
    %979 = vmatprep.subr.mxu0 0.0
    %980 = vmatpush1.msra.mxu0 0.0
    %981 = vmatprep.subr.mxu0 0.0
    %982 = vmatpush1.msra.mxu0 0.0
    %983 = vmatprep.subr.mxu0 0.0
    %984 = vmatpush1.msra.mxu0 0.0
    %985 = vmatprep.subr.mxu0 0.0
    %986 = vmatpush1.msra.mxu0 0.0
    %987 = vmatprep.subr.mxu0 0.0
    %988 = vmatpush1.msra.mxu0 0.0
    %989 = vmatprep.subr.mxu0 0.0
    %990 = vmatpush1.msra.mxu0 0.0
    %991 = vmatprep.subr.mxu0 0.0
    %992 = vmatpush1.msra.mxu0 0.0
    %993 = vmatprep.subr.mxu0 0.0
    %994 = vmatpush1.msra.mxu0 0.0
    %995 = vmatprep.subr.mxu0 0.0
    %996 = vmatpush1.msra.mxu0 0.0
    %997 = vmatprep.subr.mxu0 0.0
    %998 = vmatpush1.msra.mxu0 0.0
    %999 = vmatprep.subr.mxu0 0.0
    %1000 = vmatpush1.msra.mxu0 0.0
    %1001 = vmatprep.subr.mxu0 0.0
    %1002 = vmatpush1.msra.mxu0 0.0
    %1003 = vmatprep.subr.mxu0 0.0
    %1004 = vmatpush1.msra.mxu0 0.0
    %1005 = vmatprep.subr.mxu0 0.0
    %1006 = vmatpush1.msra.mxu0 0.0
    %1007 = vmatprep.subr.mxu0 0.0
    %1008 = vmatpush1.msra.mxu0 0.0
    %1009 = vmatprep.subr.mxu0 0.0
    %1010 = vmatpush1.msra.mxu0 0.0
    %1011 = vmatprep.subr.mxu0 0.0
    %1012 = vmatpush1.msra.mxu0 0.0
    %1013 = vmatprep.subr.mxu0 0.0
    %1014 = vmatpush1.msra.mxu0 0.0
    %1015 = vmatprep.subr.mxu0 0.0
    %1016 = vmatpush1.msra.mxu0 0.0
    %1017 = vmatprep.subr.mxu0 0.0
    %1018 = vmatpush1.msra.mxu0 0.0
    %1019 = vmatprep.subr.mxu0 0.0
    %1020 = vmatpush1.msra.mxu0 0.0
    %1021 = vmatprep.subr.mxu0 0.0
    %1022 = vmatpush1.msra.mxu0 0.0
    %1023 = vmatprep.subr.mxu0 0.0
    %1024 = vmatpush1.msra.mxu0 0.0
    %1025 = vmatprep.mubr.f32.mxu0 0.0
    %1026 = vmatmul.mubr.f32.gmra.mrb[0].mxu0 %v959
    %v1027 = vpop.f32.mrb[0].mxu0
    %v1028 = vadd.f32 0.0, %v1027
    %v1029 = vpop.f32.mrb[0].mxu0
    %1030 = vdwg.mxu0
    %1031 = vrot.lane.b32.xlu0 %v353, 112
    %v1032 = vpop.permute.xlu0 %1031
    %1033 = vrot.lane.b32.xlu0 %v353, 80
    %v1034 = vpop.permute.xlu0 %1033
    %v1035 = vsel %vm364, %v1032, 0
    %v1037 = vsel %vm364, %v1034, 0
    %1039 = vmatprep.subr.mxu0 0.0
    %1040 = vmatpush1.xpose.msra.mxu0 %v1037
    %1041 = vmatprep.subr.mxu0 0.0
    %1042 = vmatpush1.xpose.msra.mxu0 0.0
    %1043 = vmatprep.subr.mxu0 0.0
    %1044 = vmatpush1.xpose.msra.mxu0 0.0
    %1045 = vmatprep.subr.mxu0 0.0
    %1046 = vmatpush1.xpose.msra.mxu0 0.0
    %1047 = vmatprep.subr.mxu0 0.0
    %1048 = vmatpush1.xpose.msra.mxu0 0.0
    %1049 = vmatprep.subr.mxu0 0.0
    %1050 = vmatpush1.xpose.msra.mxu0 0.0
    %1051 = vmatprep.subr.mxu0 0.0
    %1052 = vmatpush1.xpose.msra.mxu0 0.0
    %1053 = vmatprep.subr.mxu0 0.0
    %1054 = vmatpush1.xpose.msra.mxu0 0.0
    %1055 = vmatprep.subr.mxu0 0.0
    %1056 = vmatpush1.xpose.msra.mxu0 0.0
    %1057 = vmatprep.subr.mxu0 0.0
    %1058 = vmatpush1.xpose.msra.mxu0 0.0
    %1059 = vmatprep.subr.mxu0 0.0
    %1060 = vmatpush1.xpose.msra.mxu0 0.0
    %1061 = vmatprep.subr.mxu0 0.0
    %1062 = vmatpush1.xpose.msra.mxu0 0.0
    %1063 = vmatprep.subr.mxu0 0.0
    %1064 = vmatpush1.xpose.msra.mxu0 0.0
    %1065 = vmatprep.subr.mxu0 0.0
    %1066 = vmatpush1.xpose.msra.mxu0 0.0
    %1067 = vmatprep.subr.mxu0 0.0
    %1068 = vmatpush1.xpose.msra.mxu0 0.0
    %1069 = vmatprep.subr.mxu0 0.0
    %1070 = vmatpush1.xpose.msra.mxu0 0.0
    %1071 = vmatprep.subr.mxu0 0.0
    %1072 = vmatpush1.xpose.msra.mxu0 0.0
    %1073 = vmatprep.subr.mxu0 0.0
    %1074 = vmatpush1.xpose.msra.mxu0 0.0
    %1075 = vmatprep.subr.mxu0 0.0
    %1076 = vmatpush1.xpose.msra.mxu0 0.0
    %1077 = vmatprep.subr.mxu0 0.0
    %1078 = vmatpush1.xpose.msra.mxu0 0.0
    %1079 = vmatprep.subr.mxu0 0.0
    %1080 = vmatpush1.xpose.msra.mxu0 0.0
    %1081 = vmatprep.subr.mxu0 0.0
    %1082 = vmatpush1.xpose.msra.mxu0 0.0
    %1083 = vmatprep.subr.mxu0 0.0
    %1084 = vmatpush1.xpose.msra.mxu0 0.0
    %1085 = vmatprep.subr.mxu0 0.0
    %1086 = vmatpush1.xpose.msra.mxu0 0.0
    %1087 = vmatprep.subr.mxu0 0.0
    %1088 = vmatpush1.xpose.msra.mxu0 0.0
    %1089 = vmatprep.subr.mxu0 0.0
    %1090 = vmatpush1.xpose.msra.mxu0 0.0
    %1091 = vmatprep.subr.mxu0 0.0
    %1092 = vmatpush1.xpose.msra.mxu0 0.0
    %1093 = vmatprep.subr.mxu0 0.0
    %1094 = vmatpush1.xpose.msra.mxu0 0.0
    %1095 = vmatprep.subr.mxu0 0.0
    %1096 = vmatpush1.xpose.msra.mxu0 0.0
    %1097 = vmatprep.subr.mxu0 0.0
    %1098 = vmatpush1.xpose.msra.mxu0 0.0
    %1099 = vmatprep.subr.mxu0 0.0
    %1100 = vmatpush1.xpose.msra.mxu0 0.0
    %1101 = vmatprep.subr.mxu0 0.0
    %1102 = vmatpush1.xpose.msra.mxu0 0.0
    %1103 = vmatprep.mubr.f32.mxu0 0.0
    %1104 = vmatmul.mubr.f32.gmra.mrb[0].mxu0 %v1035
    %v1105 = vpop.f32.mrb[0].mxu0
    %v1106 = vadd.f32 0.0, %v1105
    %v1107 = vpop.f32.mrb[0].mxu0
    %1108 = vdwg.mxu0
    %v1109 = vmul.f32 %v1106, 0.35355338
    %v1110 = vsel %vm364, %v1109, -inf
    %1111 = vmax.xlane.f32.xlu0 %v1110
    %v1112 = vpop.xlane.xlu0 %1111
    %v1113 = vsub.f32 %v1109, %v1112
    %v1114 = vmul.f32 %v1113, 1.442695
    %v1115 = vpow.pop %v1114
    %v1116 = vsel %vm364, %v1115, 0.0
    %1117 = vadd.xlane.f32.xlu0 %v1116
    %v1118 = vpop.xlane.xlu0 %1117
    %v1119 = vrcp.pop %v1118
    %v1120 = vmul.f32 %v1115, %v1119
    %s1121 = scalar_lea.vmem [#allocation24], 32
    %1122 = vst.msk [vmem:[%s1121] sm:$0xff] %vm364, %v1120
    %1123 = vrot.lane.b32.xlu0 %v353, 48
    %v1124 = vpop.permute.xlu0 %1123
    %v1127 = vsel %vm364, %v1120, 0
    %1129 = vmatprep.subr.mxu0 0.0
    %1130 = vmatpush1.msra.mxu0 %v1124
    %1131 = vmatprep.subr.mxu0 0.0
    %1132 = vmatpush1.msra.mxu0 0.0
    %1133 = vmatprep.subr.mxu0 0.0
    %1134 = vmatpush1.msra.mxu0 0.0
    %1135 = vmatprep.subr.mxu0 0.0
    %1136 = vmatpush1.msra.mxu0 0.0
    %1137 = vmatprep.subr.mxu0 0.0
    %1138 = vmatpush1.msra.mxu0 0.0
    %1139 = vmatprep.subr.mxu0 0.0
    %1140 = vmatpush1.msra.mxu0 0.0
    %1141 = vmatprep.subr.mxu0 0.0
    %1142 = vmatpush1.msra.mxu0 0.0
    %1143 = vmatprep.subr.mxu0 0.0
    %1144 = vmatpush1.msra.mxu0 0.0
    %1145 = vmatprep.subr.mxu0 0.0
    %1146 = vmatpush1.msra.mxu0 0.0
    %1147 = vmatprep.subr.mxu0 0.0
    %1148 = vmatpush1.msra.mxu0 0.0
    %1149 = vmatprep.subr.mxu0 0.0
    %1150 = vmatpush1.msra.mxu0 0.0
    %1151 = vmatprep.subr.mxu0 0.0
    %1152 = vmatpush1.msra.mxu0 0.0
    %1153 = vmatprep.subr.mxu0 0.0
    %1154 = vmatpush1.msra.mxu0 0.0
    %1155 = vmatprep.subr.mxu0 0.0
    %1156 = vmatpush1.msra.mxu0 0.0
    %1157 = vmatprep.subr.mxu0 0.0
    %1158 = vmatpush1.msra.mxu0 0.0
    %1159 = vmatprep.subr.mxu0 0.0
    %1160 = vmatpush1.msra.mxu0 0.0
    %1161 = vmatprep.subr.mxu0 0.0
    %1162 = vmatpush1.msra.mxu0 0.0
    %1163 = vmatprep.subr.mxu0 0.0
    %1164 = vmatpush1.msra.mxu0 0.0
    %1165 = vmatprep.subr.mxu0 0.0
    %1166 = vmatpush1.msra.mxu0 0.0
    %1167 = vmatprep.subr.mxu0 0.0
    %1168 = vmatpush1.msra.mxu0 0.0
    %1169 = vmatprep.subr.mxu0 0.0
    %1170 = vmatpush1.msra.mxu0 0.0
    %1171 = vmatprep.subr.mxu0 0.0
    %1172 = vmatpush1.msra.mxu0 0.0
    %1173 = vmatprep.subr.mxu0 0.0
    %1174 = vmatpush1.msra.mxu0 0.0
    %1175 = vmatprep.subr.mxu0 0.0
    %1176 = vmatpush1.msra.mxu0 0.0
    %1177 = vmatprep.subr.mxu0 0.0
    %1178 = vmatpush1.msra.mxu0 0.0
    %1179 = vmatprep.subr.mxu0 0.0
    %1180 = vmatpush1.msra.mxu0 0.0
    %1181 = vmatprep.subr.mxu0 0.0
    %1182 = vmatpush1.msra.mxu0 0.0
    %1183 = vmatprep.subr.mxu0 0.0
    %1184 = vmatpush1.msra.mxu0 0.0
    %1185 = vmatprep.subr.mxu0 0.0
    %1186 = vmatpush1.msra.mxu0 0.0
    %1187 = vmatprep.subr.mxu0 0.0
    %1188 = vmatpush1.msra.mxu0 0.0
    %1189 = vmatprep.subr.mxu0 0.0
    %1190 = vmatpush1.msra.mxu0 0.0
    %1191 = vmatprep.subr.mxu0 0.0
    %1192 = vmatpush1.msra.mxu0 0.0
    %1193 = vmatprep.mubr.f32.mxu0 0.0
    %1194 = vmatmul.mubr.f32.gmra.mrb[0].mxu0 %v1127
    %v1195 = vpop.f32.mrb[0].mxu0
    %v1196 = vadd.f32 0.0, %v1195
    %v1197 = vpop.f32.mrb[0].mxu0
    %1198 = vdwg.mxu0
    %1199 = vrot.lane.b32.xlu0 %v358, 112
    %v1200 = vpop.permute.xlu0 %1199
    %1201 = vrot.lane.b32.xlu0 %v358, 80
    %v1202 = vpop.permute.xlu0 %1201
    %v1203 = vsel %vm364, %v1200, 0
    %v1205 = vsel %vm364, %v1202, 0
    %1207 = vmatprep.subr.mxu0 0.0
    %1208 = vmatpush1.xpose.msra.mxu0 %v1205
    %1209 = vmatprep.subr.mxu0 0.0
    %1210 = vmatpush1.xpose.msra.mxu0 0.0
    %1211 = vmatprep.subr.mxu0 0.0
    %1212 = vmatpush1.xpose.msra.mxu0 0.0
    %1213 = vmatprep.subr.mxu0 0.0
    %1214 = vmatpush1.xpose.msra.mxu0 0.0
    %1215 = vmatprep.subr.mxu0 0.0
    %1216 = vmatpush1.xpose.msra.mxu0 0.0
    %1217 = vmatprep.subr.mxu0 0.0
    %1218 = vmatpush1.xpose.msra.mxu0 0.0
    %1219 = vmatprep.subr.mxu0 0.0
    %1220 = vmatpush1.xpose.msra.mxu0 0.0
    %1221 = vmatprep.subr.mxu0 0.0
    %1222 = vmatpush1.xpose.msra.mxu0 0.0
    %1223 = vmatprep.subr.mxu0 0.0
    %1224 = vmatpush1.xpose.msra.mxu0 0.0
    %1225 = vmatprep.subr.mxu0 0.0
    %1226 = vmatpush1.xpose.msra.mxu0 0.0
    %1227 = vmatprep.subr.mxu0 0.0
    %1228 = vmatpush1.xpose.msra.mxu0 0.0
    %1229 = vmatprep.subr.mxu0 0.0
    %1230 = vmatpush1.xpose.msra.mxu0 0.0
    %1231 = vmatprep.subr.mxu0 0.0
    %1232 = vmatpush1.xpose.msra.mxu0 0.0
    %1233 = vmatprep.subr.mxu0 0.0
    %1234 = vmatpush1.xpose.msra.mxu0 0.0
    %1235 = vmatprep.subr.mxu0 0.0
    %1236 = vmatpush1.xpose.msra.mxu0 0.0
    %1237 = vmatprep.subr.mxu0 0.0
    %1238 = vmatpush1.xpose.msra.mxu0 0.0
    %1239 = vmatprep.subr.mxu0 0.0
    %1240 = vmatpush1.xpose.msra.mxu0 0.0
    %1241 = vmatprep.subr.mxu0 0.0
    %1242 = vmatpush1.xpose.msra.mxu0 0.0
    %1243 = vmatprep.subr.mxu0 0.0
    %1244 = vmatpush1.xpose.msra.mxu0 0.0
    %1245 = vmatprep.subr.mxu0 0.0
    %1246 = vmatpush1.xpose.msra.mxu0 0.0
    %1247 = vmatprep.subr.mxu0 0.0
    %1248 = vmatpush1.xpose.msra.mxu0 0.0
    %1249 = vmatprep.subr.mxu0 0.0
    %1250 = vmatpush1.xpose.msra.mxu0 0.0
    %1251 = vmatprep.subr.mxu0 0.0
    %1252 = vmatpush1.xpose.msra.mxu0 0.0
    %1253 = vmatprep.subr.mxu0 0.0
    %1254 = vmatpush1.xpose.msra.mxu0 0.0
    %1255 = vmatprep.subr.mxu0 0.0
    %1256 = vmatpush1.xpose.msra.mxu0 0.0
    %1257 = vmatprep.subr.mxu0 0.0
    %1258 = vmatpush1.xpose.msra.mxu0 0.0
    %1259 = vmatprep.subr.mxu0 0.0
    %1260 = vmatpush1.xpose.msra.mxu0 0.0
    %1261 = vmatprep.subr.mxu0 0.0
    %1262 = vmatpush1.xpose.msra.mxu0 0.0
    %1263 = vmatprep.subr.mxu0 0.0
    %1264 = vmatpush1.xpose.msra.mxu0 0.0
    %1265 = vmatprep.subr.mxu0 0.0
    %1266 = vmatpush1.xpose.msra.mxu0 0.0
    %1267 = vmatprep.subr.mxu0 0.0
    %1268 = vmatpush1.xpose.msra.mxu0 0.0
    %1269 = vmatprep.subr.mxu0 0.0
    %1270 = vmatpush1.xpose.msra.mxu0 0.0
    %1271 = vmatprep.mubr.f32.mxu0 0.0
    %1272 = vmatmul.mubr.f32.gmra.mrb[0].mxu0 %v1203
    %v1273 = vpop.f32.mrb[0].mxu0
    %v1274 = vadd.f32 0.0, %v1273
    %v1275 = vpop.f32.mrb[0].mxu0
    %1276 = vdwg.mxu0
    %v1277 = vmul.f32 %v1274, 0.35355338
    %v1278 = vsel %vm364, %v1277, -inf
    %1279 = vmax.xlane.f32.xlu0 %v1278
    %v1280 = vpop.xlane.xlu0 %1279
    %v1281 = vsub.f32 %v1277, %v1280
    %v1282 = vmul.f32 %v1281, 1.442695
    %v1283 = vpow.pop %v1282
    %v1284 = vsel %vm364, %v1283, 0.0
    %1285 = vadd.xlane.f32.xlu0 %v1284
    %v1286 = vpop.xlane.xlu0 %1285
    %v1287 = vrcp.pop %v1286
    %v1288 = vmul.f32 %v1283, %v1287
    %s1289 = scalar_lea.vmem [#allocation24], 40
    %1290 = vst.msk [vmem:[%s1289] sm:$0xff] %vm364, %v1288
    %1291 = vrot.lane.b32.xlu0 %v358, 48
    %v1292 = vpop.permute.xlu0 %1291
    %v1295 = vsel %vm364, %v1288, 0
    %1297 = vmatprep.subr.mxu0 0.0
    %1298 = vmatpush1.msra.mxu0 %v1292
    %1299 = vmatprep.subr.mxu0 0.0
    %1300 = vmatpush1.msra.mxu0 0.0
    %1301 = vmatprep.subr.mxu0 0.0
    %1302 = vmatpush1.msra.mxu0 0.0
    %1303 = vmatprep.subr.mxu0 0.0
    %1304 = vmatpush1.msra.mxu0 0.0
    %1305 = vmatprep.subr.mxu0 0.0
    %1306 = vmatpush1.msra.mxu0 0.0
    %1307 = vmatprep.subr.mxu0 0.0
    %1308 = vmatpush1.msra.mxu0 0.0
    %1309 = vmatprep.subr.mxu0 0.0
    %1310 = vmatpush1.msra.mxu0 0.0
    %1311 = vmatprep.subr.mxu0 0.0
    %1312 = vmatpush1.msra.mxu0 0.0
    %1313 = vmatprep.subr.mxu0 0.0
    %1314 = vmatpush1.msra.mxu0 0.0
    %1315 = vmatprep.subr.mxu0 0.0
    %1316 = vmatpush1.msra.mxu0 0.0
    %1317 = vmatprep.subr.mxu0 0.0
    %1318 = vmatpush1.msra.mxu0 0.0
    %1319 = vmatprep.subr.mxu0 0.0
    %1320 = vmatpush1.msra.mxu0 0.0
    %1321 = vmatprep.subr.mxu0 0.0
    %1322 = vmatpush1.msra.mxu0 0.0
    %1323 = vmatprep.subr.mxu0 0.0
    %1324 = vmatpush1.msra.mxu0 0.0
    %1325 = vmatprep.subr.mxu0 0.0
    %1326 = vmatpush1.msra.mxu0 0.0
    %1327 = vmatprep.subr.mxu0 0.0
    %1328 = vmatpush1.msra.mxu0 0.0
    %1329 = vmatprep.subr.mxu0 0.0
    %1330 = vmatpush1.msra.mxu0 0.0
    %1331 = vmatprep.subr.mxu0 0.0
    %1332 = vmatpush1.msra.mxu0 0.0
    %1333 = vmatprep.subr.mxu0 0.0
    %1334 = vmatpush1.msra.mxu0 0.0
    %1335 = vmatprep.subr.mxu0 0.0
    %1336 = vmatpush1.msra.mxu0 0.0
    %1337 = vmatprep.subr.mxu0 0.0
    %1338 = vmatpush1.msra.mxu0 0.0
    %1339 = vmatprep.subr.mxu0 0.0
    %1340 = vmatpush1.msra.mxu0 0.0
    %1341 = vmatprep.subr.mxu0 0.0
    %1342 = vmatpush1.msra.mxu0 0.0
    %1343 = vmatprep.subr.mxu0 0.0
    %1344 = vmatpush1.msra.mxu0 0.0
    %1345 = vmatprep.subr.mxu0 0.0
    %1346 = vmatpush1.msra.mxu0 0.0
    %1347 = vmatprep.subr.mxu0 0.0
    %1348 = vmatpush1.msra.mxu0 0.0
    %1349 = vmatprep.subr.mxu0 0.0
    %1350 = vmatpush1.msra.mxu0 0.0
    %1351 = vmatprep.subr.mxu0 0.0
    %1352 = vmatpush1.msra.mxu0 0.0
    %1353 = vmatprep.subr.mxu0 0.0
    %1354 = vmatpush1.msra.mxu0 0.0
    %1355 = vmatprep.subr.mxu0 0.0
    %1356 = vmatpush1.msra.mxu0 0.0
    %1357 = vmatprep.subr.mxu0 0.0
    %1358 = vmatpush1.msra.mxu0 0.0
    %1359 = vmatprep.subr.mxu0 0.0
    %1360 = vmatpush1.msra.mxu0 0.0
    %1361 = vmatprep.mubr.f32.mxu0 0.0
    %1362 = vmatmul.mubr.f32.gmra.mrb[0].mxu0 %v1295
    %v1363 = vpop.f32.mrb[0].mxu0
    %v1364 = vadd.f32 0.0, %v1363
    %v1365 = vpop.f32.mrb[0].mxu0
    %1366 = vdwg.mxu0
    %1367 = vrot.lane.b32.xlu0 %v353, 104
    %v1368 = vpop.permute.xlu0 %1367
    %1369 = vrot.lane.b32.xlu0 %v353, 72
    %v1370 = vpop.permute.xlu0 %1369
    %v1371 = vsel %vm364, %v1368, 0
    %v1373 = vsel %vm364, %v1370, 0
    %1375 = vmatprep.subr.mxu0 0.0
    %1376 = vmatpush1.xpose.msra.mxu0 %v1373
    %1377 = vmatprep.subr.mxu0 0.0
    %1378 = vmatpush1.xpose.msra.mxu0 0.0
    %1379 = vmatprep.subr.mxu0 0.0
    %1380 = vmatpush1.xpose.msra.mxu0 0.0
    %1381 = vmatprep.subr.mxu0 0.0
    %1382 = vmatpush1.xpose.msra.mxu0 0.0
    %1383 = vmatprep.subr.mxu0 0.0
    %1384 = vmatpush1.xpose.msra.mxu0 0.0
    %1385 = vmatprep.subr.mxu0 0.0
    %1386 = vmatpush1.xpose.msra.mxu0 0.0
    %1387 = vmatprep.subr.mxu0 0.0
    %1388 = vmatpush1.xpose.msra.mxu0 0.0
    %1389 = vmatprep.subr.mxu0 0.0
    %1390 = vmatpush1.xpose.msra.mxu0 0.0
    %1391 = vmatprep.subr.mxu0 0.0
    %1392 = vmatpush1.xpose.msra.mxu0 0.0
    %1393 = vmatprep.subr.mxu0 0.0
    %1394 = vmatpush1.xpose.msra.mxu0 0.0
    %1395 = vmatprep.subr.mxu0 0.0
    %1396 = vmatpush1.xpose.msra.mxu0 0.0
    %1397 = vmatprep.subr.mxu0 0.0
    %1398 = vmatpush1.xpose.msra.mxu0 0.0
    %1399 = vmatprep.subr.mxu0 0.0
    %1400 = vmatpush1.xpose.msra.mxu0 0.0
    %1401 = vmatprep.subr.mxu0 0.0
    %1402 = vmatpush1.xpose.msra.mxu0 0.0
    %1403 = vmatprep.subr.mxu0 0.0
    %1404 = vmatpush1.xpose.msra.mxu0 0.0
    %1405 = vmatprep.subr.mxu0 0.0
    %1406 = vmatpush1.xpose.msra.mxu0 0.0
    %1407 = vmatprep.subr.mxu0 0.0
    %1408 = vmatpush1.xpose.msra.mxu0 0.0
    %1409 = vmatprep.subr.mxu0 0.0
    %1410 = vmatpush1.xpose.msra.mxu0 0.0
    %1411 = vmatprep.subr.mxu0 0.0
    %1412 = vmatpush1.xpose.msra.mxu0 0.0
    %1413 = vmatprep.subr.mxu0 0.0
    %1414 = vmatpush1.xpose.msra.mxu0 0.0
    %1415 = vmatprep.subr.mxu0 0.0
    %1416 = vmatpush1.xpose.msra.mxu0 0.0
    %1417 = vmatprep.subr.mxu0 0.0
    %1418 = vmatpush1.xpose.msra.mxu0 0.0
    %1419 = vmatprep.subr.mxu0 0.0
    %1420 = vmatpush1.xpose.msra.mxu0 0.0
    %1421 = vmatprep.subr.mxu0 0.0
    %1422 = vmatpush1.xpose.msra.mxu0 0.0
    %1423 = vmatprep.subr.mxu0 0.0
    %1424 = vmatpush1.xpose.msra.mxu0 0.0
    %1425 = vmatprep.subr.mxu0 0.0
    %1426 = vmatpush1.xpose.msra.mxu0 0.0
    %1427 = vmatprep.subr.mxu0 0.0
    %1428 = vmatpush1.xpose.msra.mxu0 0.0
    %1429 = vmatprep.subr.mxu0 0.0
    %1430 = vmatpush1.xpose.msra.mxu0 0.0
    %1431 = vmatprep.subr.mxu0 0.0
    %1432 = vmatpush1.xpose.msra.mxu0 0.0
    %1433 = vmatprep.subr.mxu0 0.0
    %1434 = vmatpush1.xpose.msra.mxu0 0.0
    %1435 = vmatprep.subr.mxu0 0.0
    %1436 = vmatpush1.xpose.msra.mxu0 0.0
    %1437 = vmatprep.subr.mxu0 0.0
    %1438 = vmatpush1.xpose.msra.mxu0 0.0
    %1439 = vmatprep.mubr.f32.mxu0 0.0
    %1440 = vmatmul.mubr.f32.gmra.mrb[0].mxu0 %v1371
    %v1441 = vpop.f32.mrb[0].mxu0
    %v1442 = vadd.f32 0.0, %v1441
    %v1443 = vpop.f32.mrb[0].mxu0
    %1444 = vdwg.mxu0
    %v1445 = vmul.f32 %v1442, 0.35355338
    %v1446 = vsel %vm364, %v1445, -inf
    %1447 = vmax.xlane.f32.xlu0 %v1446
    %v1448 = vpop.xlane.xlu0 %1447
    %v1449 = vsub.f32 %v1445, %v1448
    %v1450 = vmul.f32 %v1449, 1.442695
    %v1451 = vpow.pop %v1450
    %v1452 = vsel %vm364, %v1451, 0.0
    %1453 = vadd.xlane.f32.xlu0 %v1452
    %v1454 = vpop.xlane.xlu0 %1453
    %v1455 = vrcp.pop %v1454
    %v1456 = vmul.f32 %v1451, %v1455
    %s1457 = scalar_lea.vmem [#allocation24], 48
    %1458 = vst.msk [vmem:[%s1457] sm:$0xff] %vm364, %v1456
    %1459 = vrot.lane.b32.xlu0 %v353, 40
    %v1460 = vpop.permute.xlu0 %1459
    %v1463 = vsel %vm364, %v1456, 0
    %1465 = vmatprep.subr.mxu0 0.0
    %1466 = vmatpush1.msra.mxu0 %v1460
    %1467 = vmatprep.subr.mxu0 0.0
    %1468 = vmatpush1.msra.mxu0 0.0
    %1469 = vmatprep.subr.mxu0 0.0
    %1470 = vmatpush1.msra.mxu0 0.0
    %1471 = vmatprep.subr.mxu0 0.0
    %1472 = vmatpush1.msra.mxu0 0.0
    %1473 = vmatprep.subr.mxu0 0.0
    %1474 = vmatpush1.msra.mxu0 0.0
    %1475 = vmatprep.subr.mxu0 0.0
    %1476 = vmatpush1.msra.mxu0 0.0
    %1477 = vmatprep.subr.mxu0 0.0
    %1478 = vmatpush1.msra.mxu0 0.0
    %1479 = vmatprep.subr.mxu0 0.0
    %1480 = vmatpush1.msra.mxu0 0.0
    %1481 = vmatprep.subr.mxu0 0.0
    %1482 = vmatpush1.msra.mxu0 0.0
    %1483 = vmatprep.subr.mxu0 0.0
    %1484 = vmatpush1.msra.mxu0 0.0
    %1485 = vmatprep.subr.mxu0 0.0
    %1486 = vmatpush1.msra.mxu0 0.0
    %1487 = vmatprep.subr.mxu0 0.0
    %1488 = vmatpush1.msra.mxu0 0.0
    %1489 = vmatprep.subr.mxu0 0.0
    %1490 = vmatpush1.msra.mxu0 0.0
    %1491 = vmatprep.subr.mxu0 0.0
    %1492 = vmatpush1.msra.mxu0 0.0
    %1493 = vmatprep.subr.mxu0 0.0
    %1494 = vmatpush1.msra.mxu0 0.0
    %1495 = vmatprep.subr.mxu0 0.0
    %1496 = vmatpush1.msra.mxu0 0.0
    %1497 = vmatprep.subr.mxu0 0.0
    %1498 = vmatpush1.msra.mxu0 0.0
    %1499 = vmatprep.subr.mxu0 0.0
    %1500 = vmatpush1.msra.mxu0 0.0
    %1501 = vmatprep.subr.mxu0 0.0
    %1502 = vmatpush1.msra.mxu0 0.0
    %1503 = vmatprep.subr.mxu0 0.0
    %1504 = vmatpush1.msra.mxu0 0.0
    %1505 = vmatprep.subr.mxu0 0.0
    %1506 = vmatpush1.msra.mxu0 0.0
    %1507 = vmatprep.subr.mxu0 0.0
    %1508 = vmatpush1.msra.mxu0 0.0
    %1509 = vmatprep.subr.mxu0 0.0
    %1510 = vmatpush1.msra.mxu0 0.0
    %1511 = vmatprep.subr.mxu0 0.0
    %1512 = vmatpush1.msra.mxu0 0.0
    %1513 = vmatprep.subr.mxu0 0.0
    %1514 = vmatpush1.msra.mxu0 0.0
    %1515 = vmatprep.subr.mxu0 0.0
    %1516 = vmatpush1.msra.mxu0 0.0
    %1517 = vmatprep.subr.mxu0 0.0
    %1518 = vmatpush1.msra.mxu0 0.0
    %1519 = vmatprep.subr.mxu0 0.0
    %1520 = vmatpush1.msra.mxu0 0.0
    %1521 = vmatprep.subr.mxu0 0.0
    %1522 = vmatpush1.msra.mxu0 0.0
    %1523 = vmatprep.subr.mxu0 0.0
    %1524 = vmatpush1.msra.mxu0 0.0
    %1525 = vmatprep.subr.mxu0 0.0
    %1526 = vmatpush1.msra.mxu0 0.0
    %1527 = vmatprep.subr.mxu0 0.0
    %1528 = vmatpush1.msra.mxu0 0.0
    %1529 = vmatprep.mubr.f32.mxu0 0.0
    %1530 = vmatmul.mubr.f32.gmra.mrb[0].mxu0 %v1463
    %v1531 = vpop.f32.mrb[0].mxu0
    %v1532 = vadd.f32 0.0, %v1531
    %v1533 = vpop.f32.mrb[0].mxu0
    %1534 = vdwg.mxu0
    %1535 = vrot.lane.b32.xlu0 %v358, 104
    %v1536 = vpop.permute.xlu0 %1535
    %1537 = vrot.lane.b32.xlu0 %v358, 72
    %v1538 = vpop.permute.xlu0 %1537
    %v1539 = vsel %vm364, %v1536, 0
    %v1541 = vsel %vm364, %v1538, 0
    %1543 = vmatprep.subr.mxu0 0.0
    %1544 = vmatpush1.xpose.msra.mxu0 %v1541
    %1545 = vmatprep.subr.mxu0 0.0
    %1546 = vmatpush1.xpose.msra.mxu0 0.0
    %1547 = vmatprep.subr.mxu0 0.0
    %1548 = vmatpush1.xpose.msra.mxu0 0.0
    %1549 = vmatprep.subr.mxu0 0.0
    %1550 = vmatpush1.xpose.msra.mxu0 0.0
    %1551 = vmatprep.subr.mxu0 0.0
    %1552 = vmatpush1.xpose.msra.mxu0 0.0
    %1553 = vmatprep.subr.mxu0 0.0
    %1554 = vmatpush1.xpose.msra.mxu0 0.0
    %1555 = vmatprep.subr.mxu0 0.0
    %1556 = vmatpush1.xpose.msra.mxu0 0.0
    %1557 = vmatprep.subr.mxu0 0.0
    %1558 = vmatpush1.xpose.msra.mxu0 0.0
    %1559 = vmatprep.subr.mxu0 0.0
    %1560 = vmatpush1.xpose.msra.mxu0 0.0
    %1561 = vmatprep.subr.mxu0 0.0
    %1562 = vmatpush1.xpose.msra.mxu0 0.0
    %1563 = vmatprep.subr.mxu0 0.0
    %1564 = vmatpush1.xpose.msra.mxu0 0.0
    %1565 = vmatprep.subr.mxu0 0.0
    %1566 = vmatpush1.xpose.msra.mxu0 0.0
    %1567 = vmatprep.subr.mxu0 0.0
    %1568 = vmatpush1.xpose.msra.mxu0 0.0
    %1569 = vmatprep.subr.mxu0 0.0
    %1570 = vmatpush1.xpose.msra.mxu0 0.0
    %1571 = vmatprep.subr.mxu0 0.0
    %1572 = vmatpush1.xpose.msra.mxu0 0.0
    %1573 = vmatprep.subr.mxu0 0.0
    %1574 = vmatpush1.xpose.msra.mxu0 0.0
    %1575 = vmatprep.subr.mxu0 0.0
    %1576 = vmatpush1.xpose.msra.mxu0 0.0
    %1577 = vmatprep.subr.mxu0 0.0
    %1578 = vmatpush1.xpose.msra.mxu0 0.0
    %1579 = vmatprep.subr.mxu0 0.0
    %1580 = vmatpush1.xpose.msra.mxu0 0.0
    %1581 = vmatprep.subr.mxu0 0.0
    %1582 = vmatpush1.xpose.msra.mxu0 0.0
    %1583 = vmatprep.subr.mxu0 0.0
    %1584 = vmatpush1.xpose.msra.mxu0 0.0
    %1585 = vmatprep.subr.mxu0 0.0
    %1586 = vmatpush1.xpose.msra.mxu0 0.0
    %1587 = vmatprep.subr.mxu0 0.0
    %1588 = vmatpush1.xpose.msra.mxu0 0.0
    %1589 = vmatprep.subr.mxu0 0.0
    %1590 = vmatpush1.xpose.msra.mxu0 0.0
    %1591 = vmatprep.subr.mxu0 0.0
    %1592 = vmatpush1.xpose.msra.mxu0 0.0
    %1593 = vmatprep.subr.mxu0 0.0
    %1594 = vmatpush1.xpose.msra.mxu0 0.0
    %1595 = vmatprep.subr.mxu0 0.0
    %1596 = vmatpush1.xpose.msra.mxu0 0.0
    %1597 = vmatprep.subr.mxu0 0.0
    %1598 = vmatpush1.xpose.msra.mxu0 0.0
    %1599 = vmatprep.subr.mxu0 0.0
    %1600 = vmatpush1.xpose.msra.mxu0 0.0
    %1601 = vmatprep.subr.mxu0 0.0
    %1602 = vmatpush1.xpose.msra.mxu0 0.0
    %1603 = vmatprep.subr.mxu0 0.0
    %1604 = vmatpush1.xpose.msra.mxu0 0.0
    %1605 = vmatprep.subr.mxu0 0.0
    %1606 = vmatpush1.xpose.msra.mxu0 0.0
    %1607 = vmatprep.mubr.f32.mxu0 0.0
    %1608 = vmatmul.mubr.f32.gmra.mrb[0].mxu0 %v1539
    %v1609 = vpop.f32.mrb[0].mxu0
    %v1610 = vadd.f32 0.0, %v1609
    %v1611 = vpop.f32.mrb[0].mxu0
    %1612 = vdwg.mxu0
    %v1613 = vmul.f32 %v1610, 0.35355338
    %v1614 = vsel %vm364, %v1613, -inf
    %1615 = vmax.xlane.f32.xlu0 %v1614
    %v1616 = vpop.xlane.xlu0 %1615
    %v1617 = vsub.f32 %v1613, %v1616
    %v1618 = vmul.f32 %v1617, 1.442695
    %v1619 = vpow.pop %v1618
    %v1620 = vsel %vm364, %v1619, 0.0
    %1621 = vadd.xlane.f32.xlu0 %v1620
    %v1622 = vpop.xlane.xlu0 %1621
    %v1623 = vrcp.pop %v1622
    %v1624 = vmul.f32 %v1619, %v1623
    %s1625 = scalar_lea.vmem [#allocation24], 56
    %1626 = vst.msk [vmem:[%s1625] sm:$0xff] %vm364, %v1624
    %1627 = vrot.lane.b32.xlu0 %v358, 40
    %v1628 = vpop.permute.xlu0 %1627
    %v1631 = vsel %vm364, %v1624, 0
    %1633 = vmatprep.subr.mxu0 0.0
    %1634 = vmatpush1.msra.mxu0 %v1628
    %1635 = vmatprep.subr.mxu0 0.0
    %1636 = vmatpush1.msra.mxu0 0.0
    %1637 = vmatprep.subr.mxu0 0.0
    %1638 = vmatpush1.msra.mxu0 0.0
    %1639 = vmatprep.subr.mxu0 0.0
    %1640 = vmatpush1.msra.mxu0 0.0
    %1641 = vmatprep.subr.mxu0 0.0
    %1642 = vmatpush1.msra.mxu0 0.0
    %1643 = vmatprep.subr.mxu0 0.0
    %1644 = vmatpush1.msra.mxu0 0.0
    %1645 = vmatprep.subr.mxu0 0.0
    %1646 = vmatpush1.msra.mxu0 0.0
    %1647 = vmatprep.subr.mxu0 0.0
    %1648 = vmatpush1.msra.mxu0 0.0
    %1649 = vmatprep.subr.mxu0 0.0
    %1650 = vmatpush1.msra.mxu0 0.0
    %1651 = vmatprep.subr.mxu0 0.0
    %1652 = vmatpush1.msra.mxu0 0.0
    %1653 = vmatprep.subr.mxu0 0.0
    %1654 = vmatpush1.msra.mxu0 0.0
    %1655 = vmatprep.subr.mxu0 0.0
    %1656 = vmatpush1.msra.mxu0 0.0
    %1657 = vmatprep.subr.mxu0 0.0
    %1658 = vmatpush1.msra.mxu0 0.0
    %1659 = vmatprep.subr.mxu0 0.0
    %1660 = vmatpush1.msra.mxu0 0.0
    %1661 = vmatprep.subr.mxu0 0.0
    %1662 = vmatpush1.msra.mxu0 0.0
    %1663 = vmatprep.subr.mxu0 0.0
    %1664 = vmatpush1.msra.mxu0 0.0
    %1665 = vmatprep.subr.mxu0 0.0
    %1666 = vmatpush1.msra.mxu0 0.0
    %1667 = vmatprep.subr.mxu0 0.0
    %1668 = vmatpush1.msra.mxu0 0.0
    %1669 = vmatprep.subr.mxu0 0.0
    %1670 = vmatpush1.msra.mxu0 0.0
    %1671 = vmatprep.subr.mxu0 0.0
    %1672 = vmatpush1.msra.mxu0 0.0
    %1673 = vmatprep.subr.mxu0 0.0
    %1674 = vmatpush1.msra.mxu0 0.0
    %1675 = vmatprep.subr.mxu0 0.0
    %1676 = vmatpush1.msra.mxu0 0.0
    %1677 = vmatprep.subr.mxu0 0.0
    %1678 = vmatpush1.msra.mxu0 0.0
    %1679 = vmatprep.subr.mxu0 0.0
    %1680 = vmatpush1.msra.mxu0 0.0
    %1681 = vmatprep.subr.mxu0 0.0
    %1682 = vmatpush1.msra.mxu0 0.0
    %1683 = vmatprep.subr.mxu0 0.0
    %1684 = vmatpush1.msra.mxu0 0.0
    %1685 = vmatprep.subr.mxu0 0.0
    %1686 = vmatpush1.msra.mxu0 0.0
    %1687 = vmatprep.subr.mxu0 0.0
    %1688 = vmatpush1.msra.mxu0 0.0
    %1689 = vmatprep.subr.mxu0 0.0
    %1690 = vmatpush1.msra.mxu0 0.0
    %1691 = vmatprep.subr.mxu0 0.0
    %1692 = vmatpush1.msra.mxu0 0.0
    %1693 = vmatprep.subr.mxu0 0.0
    %1694 = vmatpush1.msra.mxu0 0.0
    %1695 = vmatprep.subr.mxu0 0.0
    %1696 = vmatpush1.msra.mxu0 0.0
    %1697 = vmatprep.mubr.f32.mxu0 0.0
    %1698 = vmatmul.mubr.f32.gmra.mrb[0].mxu0 %v1631
    %v1699 = vpop.f32.mrb[0].mxu0
    %v1700 = vadd.f32 0.0, %v1699
    %v1701 = vpop.f32.mrb[0].mxu0
    %1702 = vdwg.mxu0
    %1704 = vrot.lane.b32.xlu0 %v860, 8
    %v1705 = vpop.permute.xlu0 %1704
    %1708 = vrot.lane.b32.xlu0 %v1196, 16
    %v1709 = vpop.permute.xlu0 %1708
    %1712 = vrot.lane.b32.xlu0 %v1532, 24
    %v1713 = vpop.permute.xlu0 %1712
    %v1715 = vsel %vm364, %v525, %v1705
    %vm1716 = vcmask 130048
    %v1717 = vsel %vm1716, %v1715, %v1709
    %vm1718 = vcmask 195584
    %v1719 = vsel %vm1718, %v1717, %v1713
    %1721 = vrot.lane.b32.xlu0 %v1028, 8
    %v1722 = vpop.permute.xlu0 %1721
    %1725 = vrot.lane.b32.xlu0 %v1364, 16
    %v1726 = vpop.permute.xlu0 %1725
    %1729 = vrot.lane.b32.xlu0 %v1700, 24
    %v1730 = vpop.permute.xlu0 %1729
    %v1732 = vsel %vm364, %v692, %v1722
    %v1733 = vsel %vm1716, %v1732, %v1726
    %v1734 = vsel %vm1718, %v1733, %v1730
    %v1735 = vadd.f32 %v218, %v1719
    %v1736 = vadd.f32 %v219, %v1734
    %v1737 = vld [vmem:[#allocation10] sm:$0x1]
    %v1738 = vld [vmem:[#allocation11] sm:$0x1]
    %v1739 = vsel %vm226, %v1735, 0.0
    %1740 = vadd.xlane.f32.xlu0 %v1739
    %v1741 = vpop.xlane.xlu0 %1740
    %v1742 = vsel %vm226, %v1736, 0.0
    %1743 = vadd.xlane.f32.xlu0 %v1742
    %v1744 = vpop.xlane.xlu0 %1743
    %v1745 = vmul.f32 %v1741, 0.03125
    %v1746 = vmul.f32 %v1744, 0.03125
    %v1747 = vsub.f32 %v1735, %v1745
    %v1748 = vsub.f32 %v1736, %v1746
    %v1749 = vmul.f32 %v1747, %v1747
    %v1750 = vmul.f32 %v1748, %v1748
    %v1751 = vsel %vm226, %v1749, 0.0
    %1752 = vadd.xlane.f32.xlu0 %v1751
    %v1753 = vpop.xlane.xlu0 %1752
    %v1754 = vsel %vm226, %v1750, 0.0
    %1755 = vadd.xlane.f32.xlu0 %v1754
    %v1756 = vpop.xlane.xlu0 %1755
    %v1757 = vmul.f32 %v1753, 0.03125
    %v1758 = vmul.f32 %v1756, 0.03125
    %v1759 = vadd.f32 %v1757, 1e-05
    %v1760 = vadd.f32 %v1758, 1e-05
    %v1761 = vrsqrt.pop %v1759
    %v1762 = vrsqrt.pop %v1760
    %v1763 = vmul.f32 %v1747, %v1761
    %v1764 = vmul.f32 %v1748, %v1762
    %v1766 = vlaneseq
    %v1767 = vshrl.u32 %v1766, 7
    %v1768 = vsub.s32 0, %v1767
    %v1769 = vrot.slane %v1737, %v1768
    %v1771 = vmul.f32 %v1763, %v1769
    %v1772 = vmul.f32 %v1764, %v1769
    %v1774 = vlaneseq
    %v1775 = vshrl.u32 %v1774, 7
    %v1776 = vsub.s32 0, %v1775
    %v1777 = vrot.slane %v1738, %v1776
    %v1779 = vadd.f32 %v1771, %v1777
    %v1780 = vadd.f32 %v1772, %v1777
    %v1781 = vld [vmem:[%s8] sm:$0xff]
    %v1782 = vld [vmem:[%s8 + $0x8] sm:$0xff]
    %v1783 = vld [vmem:[%s8 + $0x10] sm:$0xff]
    %v1784 = vld [vmem:[%s8 + $0x18] sm:$0xff]
    %v1785 = vld [vmem:[#allocation13] sm:$0x1]
    %v1787 = vlaneseq
    %v1788 = vshrl.u32 %v1787, 7
    %v1789 = vsub.s32 0, %v1788
    %v1790 = vrot.slane %v1785, %v1789
    %v1793 = vsel %vm226, %v1779, 0
    %v1796 = vsel %vm226, %v1780, 0
    %1798 = vmatprep.subr.mxu0 0.0
    %1799 = vmatpush1.msra.mxu0 %v1781
    %1800 = vmatprep.subr.mxu0 0.0
    %1801 = vmatpush1.msra.mxu0 %v1782
    %1802 = vmatprep.subr.mxu0 0.0
    %1803 = vmatpush1.msra.mxu0 %v1783
    %1804 = vmatprep.subr.mxu0 0.0
    %1805 = vmatpush1.msra.mxu0 %v1784
    %1806 = vmatprep.subr.mxu0 0.0
    %1807 = vmatpush1.msra.mxu0 0.0
    %1808 = vmatprep.subr.mxu0 0.0
    %1809 = vmatpush1.msra.mxu0 0.0
    %1810 = vmatprep.subr.mxu0 0.0
    %1811 = vmatpush1.msra.mxu0 0.0
    %1812 = vmatprep.subr.mxu0 0.0
    %1813 = vmatpush1.msra.mxu0 0.0
    %1814 = vmatprep.subr.mxu0 0.0
    %1815 = vmatpush1.msra.mxu0 0.0
    %1816 = vmatprep.subr.mxu0 0.0
    %1817 = vmatpush1.msra.mxu0 0.0
    %1818 = vmatprep.subr.mxu0 0.0
    %1819 = vmatpush1.msra.mxu0 0.0
    %1820 = vmatprep.subr.mxu0 0.0
    %1821 = vmatpush1.msra.mxu0 0.0
    %1822 = vmatprep.subr.mxu0 0.0
    %1823 = vmatpush1.msra.mxu0 0.0
    %1824 = vmatprep.subr.mxu0 0.0
    %1825 = vmatpush1.msra.mxu0 0.0
    %1826 = vmatprep.subr.mxu0 0.0
    %1827 = vmatpush1.msra.mxu0 0.0
    %1828 = vmatprep.subr.mxu0 0.0
    %1829 = vmatpush1.msra.mxu0 0.0
    %1830 = vmatprep.subr.mxu0 0.0
    %1831 = vmatpush1.msra.mxu0 0.0
    %1832 = vmatprep.subr.mxu0 0.0
    %1833 = vmatpush1.msra.mxu0 0.0
    %1834 = vmatprep.subr.mxu0 0.0
    %1835 = vmatpush1.msra.mxu0 0.0
    %1836 = vmatprep.subr.mxu0 0.0
    %1837 = vmatpush1.msra.mxu0 0.0
    %1838 = vmatprep.subr.mxu0 0.0
    %1839 = vmatpush1.msra.mxu0 0.0
    %1840 = vmatprep.subr.mxu0 0.0
    %1841 = vmatpush1.msra.mxu0 0.0
    %1842 = vmatprep.subr.mxu0 0.0
    %1843 = vmatpush1.msra.mxu0 0.0
    %1844 = vmatprep.subr.mxu0 0.0
    %1845 = vmatpush1.msra.mxu0 0.0
    %1846 = vmatprep.subr.mxu0 0.0
    %1847 = vmatpush1.msra.mxu0 0.0
    %1848 = vmatprep.subr.mxu0 0.0
    %1849 = vmatpush1.msra.mxu0 0.0
    %1850 = vmatprep.subr.mxu0 0.0
    %1851 = vmatpush1.msra.mxu0 0.0
    %1852 = vmatprep.subr.mxu0 0.0
    %1853 = vmatpush1.msra.mxu0 0.0
    %1854 = vmatprep.subr.mxu0 0.0
    %1855 = vmatpush1.msra.mxu0 0.0
    %1856 = vmatprep.subr.mxu0 0.0
    %1857 = vmatpush1.msra.mxu0 0.0
    %1858 = vmatprep.subr.mxu0 0.0
    %1859 = vmatpush1.msra.mxu0 0.0
    %1860 = vmatprep.subr.mxu0 0.0
    %1861 = vmatpush1.msra.mxu0 0.0
    %1862 = vmatprep.mubr.f32.mxu0 0.0
    %1863 = vmatmul.mubr.f32.gmra.mrb[0].mxu0 %v1793
    %v1864 = vpop.f32.mrb[0].mxu0
    %v1865 = vadd.f32 %v1790, %v1864
    %v1866 = vpop.f32.mrb[0].mxu0
    %1867 = vmatprep.mubr.f32.mxu0 0.0
    %1868 = vmatmul.mubr.f32.gmra.mrb[0].mxu0 %v1796
    %v1869 = vpop.f32.mrb[0].mxu0
    %v1870 = vadd.f32 %v1790, %v1869
    %v1871 = vpop.f32.mrb[0].mxu0
    %1872 = vdwg.mxu0
    %v1873 = vld [vmem:[%s10] sm:$0xff]
    %v1874 = vld [vmem:[%s10 + $0x8] sm:$0xff]
    %v1875 = vld [vmem:[%s10 + $0x10] sm:$0xff]
    %v1876 = vld [vmem:[%s10 + $0x18] sm:$0xff]
    %v1877 = vld [vmem:[#allocation14] sm:$0x1]
    %v1879 = vlaneseq
    %v1880 = vshrl.u32 %v1879, 7
    %v1881 = vsub.s32 0, %v1880
    %v1882 = vrot.slane %v1877, %v1881
    %v1885 = vsel %vm226, %v220, 0
    %v1888 = vsel %vm226, %v221, 0
    %v1891 = vsel %vm226, %v222, 0
    %v1894 = vsel %vm226, %v223, 0
    %1896 = vmatprep.subr.mxu0 0.0
    %1897 = vmatpush1.msra.mxu0 %v1873
    %1898 = vmatprep.subr.mxu0 0.0
    %1899 = vmatpush1.msra.mxu0 %v1874
    %1900 = vmatprep.subr.mxu0 0.0
    %1901 = vmatpush1.msra.mxu0 %v1875
    %1902 = vmatprep.subr.mxu0 0.0
    %1903 = vmatpush1.msra.mxu0 %v1876
    %1904 = vmatprep.subr.mxu0 0.0
    %1905 = vmatpush1.msra.mxu0 0.0
    %1906 = vmatprep.subr.mxu0 0.0
    %1907 = vmatpush1.msra.mxu0 0.0
    %1908 = vmatprep.subr.mxu0 0.0
    %1909 = vmatpush1.msra.mxu0 0.0
    %1910 = vmatprep.subr.mxu0 0.0
    %1911 = vmatpush1.msra.mxu0 0.0
    %1912 = vmatprep.subr.mxu0 0.0
    %1913 = vmatpush1.msra.mxu0 0.0
    %1914 = vmatprep.subr.mxu0 0.0
    %1915 = vmatpush1.msra.mxu0 0.0
    %1916 = vmatprep.subr.mxu0 0.0
    %1917 = vmatpush1.msra.mxu0 0.0
    %1918 = vmatprep.subr.mxu0 0.0
    %1919 = vmatpush1.msra.mxu0 0.0
    %1920 = vmatprep.subr.mxu0 0.0
    %1921 = vmatpush1.msra.mxu0 0.0
    %1922 = vmatprep.subr.mxu0 0.0
    %1923 = vmatpush1.msra.mxu0 0.0
    %1924 = vmatprep.subr.mxu0 0.0
    %1925 = vmatpush1.msra.mxu0 0.0
    %1926 = vmatprep.subr.mxu0 0.0
    %1927 = vmatpush1.msra.mxu0 0.0
    %1928 = vmatprep.subr.mxu0 0.0
    %1929 = vmatpush1.msra.mxu0 0.0
    %1930 = vmatprep.subr.mxu0 0.0
    %1931 = vmatpush1.msra.mxu0 0.0
    %1932 = vmatprep.subr.mxu0 0.0
    %1933 = vmatpush1.msra.mxu0 0.0
    %1934 = vmatprep.subr.mxu0 0.0
    %1935 = vmatpush1.msra.mxu0 0.0
    %1936 = vmatprep.subr.mxu0 0.0
    %1937 = vmatpush1.msra.mxu0 0.0
    %1938 = vmatprep.subr.mxu0 0.0
    %1939 = vmatpush1.msra.mxu0 0.0
    %1940 = vmatprep.subr.mxu0 0.0
    %1941 = vmatpush1.msra.mxu0 0.0
    %1942 = vmatprep.subr.mxu0 0.0
    %1943 = vmatpush1.msra.mxu0 0.0
    %1944 = vmatprep.subr.mxu0 0.0
    %1945 = vmatpush1.msra.mxu0 0.0
    %1946 = vmatprep.subr.mxu0 0.0
    %1947 = vmatpush1.msra.mxu0 0.0
    %1948 = vmatprep.subr.mxu0 0.0
    %1949 = vmatpush1.msra.mxu0 0.0
    %1950 = vmatprep.subr.mxu0 0.0
    %1951 = vmatpush1.msra.mxu0 0.0
    %1952 = vmatprep.subr.mxu0 0.0
    %1953 = vmatpush1.msra.mxu0 0.0
    %1954 = vmatprep.subr.mxu0 0.0
    %1955 = vmatpush1.msra.mxu0 0.0
    %1956 = vmatprep.subr.mxu0 0.0
    %1957 = vmatpush1.msra.mxu0 0.0
    %1958 = vmatprep.subr.mxu0 0.0
    %1959 = vmatpush1.msra.mxu0 0.0
    %1960 = vmatprep.mubr.f32.mxu0 0.0
    %1961 = vmatmul.mubr.f32.gmra.mrb[0].mxu0 %v1885
    %v1962 = vpop.f32.mrb[0].mxu0
    %v1963 = vadd.f32 %v1882, %v1962
    %v1964 = vpop.f32.mrb[0].mxu0
    %1965 = vmatprep.mubr.f32.mxu0 0.0
    %1966 = vmatmul.mubr.f32.gmra.mrb[0].mxu0 %v1888
    %v1967 = vpop.f32.mrb[0].mxu0
    %v1968 = vadd.f32 %v1882, %v1967
    %v1969 = vpop.f32.mrb[0].mxu0
    %1970 = vmatprep.mubr.f32.mxu0 0.0
    %1971 = vmatmul.mubr.f32.gmra.mrb[0].mxu0 %v1891
    %v1972 = vpop.f32.mrb[0].mxu0
    %v1973 = vadd.f32 %v1882, %v1972
    %v1974 = vpop.f32.mrb[0].mxu0
    %1975 = vmatprep.mubr.f32.mxu0 0.0
    %1976 = vmatmul.mubr.f32.gmra.mrb[0].mxu0 %v1894
    %v1977 = vpop.f32.mrb[0].mxu0
    %v1978 = vadd.f32 %v1882, %v1977
    %v1979 = vpop.f32.mrb[0].mxu0
    %1980 = vdwg.mxu0
    %v1982 = vsel %vm364, %v1865, 0
    %v1985 = vsel %vm364, %v1963, 0
    %v1988 = vsel %vm364, %v1968, 0
    %1990 = vmatprep.subr.mxu0 0.0
    %1991 = vmatpush1.xpose.msra.mxu0 %v1985
    %1992 = vmatprep.subr.mxu0 0.0
    %1993 = vmatpush1.xpose.msra.mxu0 %v1988
    %1994 = vmatprep.subr.mxu0 0.0
    %1995 = vmatpush1.xpose.msra.mxu0 0.0
    %1996 = vmatprep.subr.mxu0 0.0
    %1997 = vmatpush1.xpose.msra.mxu0 0.0
    %1998 = vmatprep.subr.mxu0 0.0
    %1999 = vmatpush1.xpose.msra.mxu0 0.0
    %2000 = vmatprep.subr.mxu0 0.0
    %2001 = vmatpush1.xpose.msra.mxu0 0.0
    %2002 = vmatprep.subr.mxu0 0.0
    %2003 = vmatpush1.xpose.msra.mxu0 0.0
    %2004 = vmatprep.subr.mxu0 0.0
    %2005 = vmatpush1.xpose.msra.mxu0 0.0
    %2006 = vmatprep.subr.mxu0 0.0
    %2007 = vmatpush1.xpose.msra.mxu0 0.0
    %2008 = vmatprep.subr.mxu0 0.0
    %2009 = vmatpush1.xpose.msra.mxu0 0.0
    %2010 = vmatprep.subr.mxu0 0.0
    %2011 = vmatpush1.xpose.msra.mxu0 0.0
    %2012 = vmatprep.subr.mxu0 0.0
    %2013 = vmatpush1.xpose.msra.mxu0 0.0
    %2014 = vmatprep.subr.mxu0 0.0
    %2015 = vmatpush1.xpose.msra.mxu0 0.0
    %2016 = vmatprep.subr.mxu0 0.0
    %2017 = vmatpush1.xpose.msra.mxu0 0.0
    %2018 = vmatprep.subr.mxu0 0.0
    %2019 = vmatpush1.xpose.msra.mxu0 0.0
    %2020 = vmatprep.subr.mxu0 0.0
    %2021 = vmatpush1.xpose.msra.mxu0 0.0
    %2022 = vmatprep.subr.mxu0 0.0
    %2023 = vmatpush1.xpose.msra.mxu0 0.0
    %2024 = vmatprep.subr.mxu0 0.0
    %2025 = vmatpush1.xpose.msra.mxu0 0.0
    %2026 = vmatprep.subr.mxu0 0.0
    %2027 = vmatpush1.xpose.msra.mxu0 0.0
    %2028 = vmatprep.subr.mxu0 0.0
    %2029 = vmatpush1.xpose.msra.mxu0 0.0
    %2030 = vmatprep.subr.mxu0 0.0
    %2031 = vmatpush1.xpose.msra.mxu0 0.0
    %2032 = vmatprep.subr.mxu0 0.0
    %2033 = vmatpush1.xpose.msra.mxu0 0.0
    %2034 = vmatprep.subr.mxu0 0.0
    %2035 = vmatpush1.xpose.msra.mxu0 0.0
    %2036 = vmatprep.subr.mxu0 0.0
    %2037 = vmatpush1.xpose.msra.mxu0 0.0
    %2038 = vmatprep.subr.mxu0 0.0
    %2039 = vmatpush1.xpose.msra.mxu0 0.0
    %2040 = vmatprep.subr.mxu0 0.0
    %2041 = vmatpush1.xpose.msra.mxu0 0.0
    %2042 = vmatprep.subr.mxu0 0.0
    %2043 = vmatpush1.xpose.msra.mxu0 0.0
    %2044 = vmatprep.subr.mxu0 0.0
    %2045 = vmatpush1.xpose.msra.mxu0 0.0
    %2046 = vmatprep.subr.mxu0 0.0
    %2047 = vmatpush1.xpose.msra.mxu0 0.0
    %2048 = vmatprep.subr.mxu0 0.0
    %2049 = vmatpush1.xpose.msra.mxu0 0.0
    %2050 = vmatprep.subr.mxu0 0.0
    %2051 = vmatpush1.xpose.msra.mxu0 0.0
    %2052 = vmatprep.subr.mxu0 0.0
    %2053 = vmatpush1.xpose.msra.mxu0 0.0
    %2054 = vmatprep.mubr.f32.mxu0 0.0
    %2055 = vmatmul.mubr.f32.gmra.mrb[0].mxu0 %v1982
    %v2056 = vpop.f32.mrb[0].mxu0
    %v2057 = vadd.f32 0.0, %v2056
    %v2058 = vpop.f32.mrb[0].mxu0
    %2059 = vdwg.mxu0
    %v2060 = vmul.f32 %v2057, 0.35355338
    %v2061 = vsel %vm1716, %v2060, -inf
    %2062 = vmax.xlane.f32.xlu0 %v2061
    %v2063 = vpop.xlane.xlu0 %2062
    %v2064 = vsub.f32 %v2060, %v2063
    %v2065 = vmul.f32 %v2064, 1.442695
    %v2066 = vpow.pop %v2065
    %v2067 = vsel %vm1716, %v2066, 0.0
    %2068 = vadd.xlane.f32.xlu0 %v2067
    %v2069 = vpop.xlane.xlu0 %2068
    %v2070 = vrcp.pop %v2069
    %v2071 = vmul.f32 %v2066, %v2070
    %2072 = vst.msk [vmem:[#allocation26] sm:$0xff] %vm1716, %v2071
    %2073 = vrot.lane.b32.xlu0 %v1963, 96
    %v2074 = vpop.permute.xlu0 %2073
    %2075 = vrot.lane.b32.xlu0 %v1968, 96
    %v2076 = vpop.permute.xlu0 %2075
    %v2080 = vsel %vm1716, %v2071, 0
    %2082 = vmatprep.subr.mxu0 0.0
    %2083 = vmatpush1.msra.mxu0 %v2074
    %2084 = vmatprep.subr.mxu0 0.0
    %2085 = vmatpush1.msra.mxu0 %v2076
    %2086 = vmatprep.subr.mxu0 0.0
    %2087 = vmatpush1.msra.mxu0 0.0
    %2088 = vmatprep.subr.mxu0 0.0
    %2089 = vmatpush1.msra.mxu0 0.0
    %2090 = vmatprep.subr.mxu0 0.0
    %2091 = vmatpush1.msra.mxu0 0.0
    %2092 = vmatprep.subr.mxu0 0.0
    %2093 = vmatpush1.msra.mxu0 0.0
    %2094 = vmatprep.subr.mxu0 0.0
    %2095 = vmatpush1.msra.mxu0 0.0
    %2096 = vmatprep.subr.mxu0 0.0
    %2097 = vmatpush1.msra.mxu0 0.0
    %2098 = vmatprep.subr.mxu0 0.0
    %2099 = vmatpush1.msra.mxu0 0.0
    %2100 = vmatprep.subr.mxu0 0.0
    %2101 = vmatpush1.msra.mxu0 0.0
    %2102 = vmatprep.subr.mxu0 0.0
    %2103 = vmatpush1.msra.mxu0 0.0
    %2104 = vmatprep.subr.mxu0 0.0
    %2105 = vmatpush1.msra.mxu0 0.0
    %2106 = vmatprep.subr.mxu0 0.0
    %2107 = vmatpush1.msra.mxu0 0.0
    %2108 = vmatprep.subr.mxu0 0.0
    %2109 = vmatpush1.msra.mxu0 0.0
    %2110 = vmatprep.subr.mxu0 0.0
    %2111 = vmatpush1.msra.mxu0 0.0
    %2112 = vmatprep.subr.mxu0 0.0
    %2113 = vmatpush1.msra.mxu0 0.0
    %2114 = vmatprep.subr.mxu0 0.0
    %2115 = vmatpush1.msra.mxu0 0.0
    %2116 = vmatprep.subr.mxu0 0.0
    %2117 = vmatpush1.msra.mxu0 0.0
    %2118 = vmatprep.subr.mxu0 0.0
    %2119 = vmatpush1.msra.mxu0 0.0
    %2120 = vmatprep.subr.mxu0 0.0
    %2121 = vmatpush1.msra.mxu0 0.0
    %2122 = vmatprep.subr.mxu0 0.0
    %2123 = vmatpush1.msra.mxu0 0.0
    %2124 = vmatprep.subr.mxu0 0.0
    %2125 = vmatpush1.msra.mxu0 0.0
    %2126 = vmatprep.subr.mxu0 0.0
    %2127 = vmatpush1.msra.mxu0 0.0
    %2128 = vmatprep.subr.mxu0 0.0
    %2129 = vmatpush1.msra.mxu0 0.0
    %2130 = vmatprep.subr.mxu0 0.0
    %2131 = vmatpush1.msra.mxu0 0.0
    %2132 = vmatprep.subr.mxu0 0.0
    %2133 = vmatpush1.msra.mxu0 0.0
    %2134 = vmatprep.subr.mxu0 0.0
    %2135 = vmatpush1.msra.mxu0 0.0
    %2136 = vmatprep.subr.mxu0 0.0
    %2137 = vmatpush1.msra.mxu0 0.0
    %2138 = vmatprep.subr.mxu0 0.0
    %2139 = vmatpush1.msra.mxu0 0.0
    %2140 = vmatprep.subr.mxu0 0.0
    %2141 = vmatpush1.msra.mxu0 0.0
    %2142 = vmatprep.subr.mxu0 0.0
    %2143 = vmatpush1.msra.mxu0 0.0
    %2144 = vmatprep.subr.mxu0 0.0
    %2145 = vmatpush1.msra.mxu0 0.0
    %2146 = vmatprep.mubr.f32.mxu0 0.0
    %2147 = vmatmul.mubr.f32.gmra.mrb[0].mxu0 %v2080
    %v2148 = vpop.f32.mrb[0].mxu0
    %v2149 = vadd.f32 0.0, %v2148
    %v2150 = vpop.f32.mrb[0].mxu0
    %2151 = vdwg.mxu0
    %v2153 = vsel %vm364, %v1870, 0
    %v2156 = vsel %vm364, %v1973, 0
    %v2159 = vsel %vm364, %v1978, 0
    %2161 = vmatprep.subr.mxu0 0.0
    %2162 = vmatpush1.xpose.msra.mxu0 %v2156
    %2163 = vmatprep.subr.mxu0 0.0
    %2164 = vmatpush1.xpose.msra.mxu0 %v2159
    %2165 = vmatprep.subr.mxu0 0.0
    %2166 = vmatpush1.xpose.msra.mxu0 0.0
    %2167 = vmatprep.subr.mxu0 0.0
    %2168 = vmatpush1.xpose.msra.mxu0 0.0
    %2169 = vmatprep.subr.mxu0 0.0
    %2170 = vmatpush1.xpose.msra.mxu0 0.0
    %2171 = vmatprep.subr.mxu0 0.0
    %2172 = vmatpush1.xpose.msra.mxu0 0.0
    %2173 = vmatprep.subr.mxu0 0.0
    %2174 = vmatpush1.xpose.msra.mxu0 0.0
    %2175 = vmatprep.subr.mxu0 0.0
    %2176 = vmatpush1.xpose.msra.mxu0 0.0
    %2177 = vmatprep.subr.mxu0 0.0
    %2178 = vmatpush1.xpose.msra.mxu0 0.0
    %2179 = vmatprep.subr.mxu0 0.0
    %2180 = vmatpush1.xpose.msra.mxu0 0.0
    %2181 = vmatprep.subr.mxu0 0.0
    %2182 = vmatpush1.xpose.msra.mxu0 0.0
    %2183 = vmatprep.subr.mxu0 0.0
    %2184 = vmatpush1.xpose.msra.mxu0 0.0
    %2185 = vmatprep.subr.mxu0 0.0
    %2186 = vmatpush1.xpose.msra.mxu0 0.0
    %2187 = vmatprep.subr.mxu0 0.0
    %2188 = vmatpush1.xpose.msra.mxu0 0.0
    %2189 = vmatprep.subr.mxu0 0.0
    %2190 = vmatpush1.xpose.msra.mxu0 0.0
    %2191 = vmatprep.subr.mxu0 0.0
    %2192 = vmatpush1.xpose.msra.mxu0 0.0
    %2193 = vmatprep.subr.mxu0 0.0
    %2194 = vmatpush1.xpose.msra.mxu0 0.0
    %2195 = vmatprep.subr.mxu0 0.0
    %2196 = vmatpush1.xpose.msra.mxu0 0.0
    %2197 = vmatprep.subr.mxu0 0.0
    %2198 = vmatpush1.xpose.msra.mxu0 0.0
    %2199 = vmatprep.subr.mxu0 0.0
    %2200 = vmatpush1.xpose.msra.mxu0 0.0
    %2201 = vmatprep.subr.mxu0 0.0
    %2202 = vmatpush1.xpose.msra.mxu0 0.0
    %2203 = vmatprep.subr.mxu0 0.0
    %2204 = vmatpush1.xpose.msra.mxu0 0.0
    %2205 = vmatprep.subr.mxu0 0.0
    %2206 = vmatpush1.xpose.msra.mxu0 0.0
    %2207 = vmatprep.subr.mxu0 0.0
    %2208 = vmatpush1.xpose.msra.mxu0 0.0
    %2209 = vmatprep.subr.mxu0 0.0
    %2210 = vmatpush1.xpose.msra.mxu0 0.0
    %2211 = vmatprep.subr.mxu0 0.0
    %2212 = vmatpush1.xpose.msra.mxu0 0.0
    %2213 = vmatprep.subr.mxu0 0.0
    %2214 = vmatpush1.xpose.msra.mxu0 0.0
    %2215 = vmatprep.subr.mxu0 0.0
    %2216 = vmatpush1.xpose.msra.mxu0 0.0
    %2217 = vmatprep.subr.mxu0 0.0
    %2218 = vmatpush1.xpose.msra.mxu0 0.0
    %2219 = vmatprep.subr.mxu0 0.0
    %2220 = vmatpush1.xpose.msra.mxu0 0.0
    %2221 = vmatprep.subr.mxu0 0.0
    %2222 = vmatpush1.xpose.msra.mxu0 0.0
    %2223 = vmatprep.subr.mxu0 0.0
    %2224 = vmatpush1.xpose.msra.mxu0 0.0
    %2225 = vmatprep.mubr.f32.mxu0 0.0
    %2226 = vmatmul.mubr.f32.gmra.mrb[0].mxu0 %v2153
    %v2227 = vpop.f32.mrb[0].mxu0
    %v2228 = vadd.f32 0.0, %v2227
    %v2229 = vpop.f32.mrb[0].mxu0
    %2230 = vdwg.mxu0
    %v2231 = vmul.f32 %v2228, 0.35355338
    %v2232 = vsel %vm1716, %v2231, -inf
    %2233 = vmax.xlane.f32.xlu0 %v2232
    %v2234 = vpop.xlane.xlu0 %2233
    %v2235 = vsub.f32 %v2231, %v2234
    %v2236 = vmul.f32 %v2235, 1.442695
    %v2237 = vpow.pop %v2236
    %v2238 = vsel %vm1716, %v2237, 0.0
    %2239 = vadd.xlane.f32.xlu0 %v2238
    %v2240 = vpop.xlane.xlu0 %2239
    %v2241 = vrcp.pop %v2240
    %v2242 = vmul.f32 %v2237, %v2241
    %s2243 = scalar_lea.vmem [#allocation26], 8
    %2244 = vst.msk [vmem:[%s2243] sm:$0xff] %vm1716, %v2242
    %2245 = vrot.lane.b32.xlu0 %v1973, 96
    %v2246 = vpop.permute.xlu0 %2245
    %2247 = vrot.lane.b32.xlu0 %v1978, 96
    %v2248 = vpop.permute.xlu0 %2247
    %v2252 = vsel %vm1716, %v2242, 0
    %2254 = vmatprep.subr.mxu0 0.0
    %2255 = vmatpush1.msra.mxu0 %v2246
    %2256 = vmatprep.subr.mxu0 0.0
    %2257 = vmatpush1.msra.mxu0 %v2248
    %2258 = vmatprep.subr.mxu0 0.0
    %2259 = vmatpush1.msra.mxu0 0.0
    %2260 = vmatprep.subr.mxu0 0.0
    %2261 = vmatpush1.msra.mxu0 0.0
    %2262 = vmatprep.subr.mxu0 0.0
    %2263 = vmatpush1.msra.mxu0 0.0
    %2264 = vmatprep.subr.mxu0 0.0
    %2265 = vmatpush1.msra.mxu0 0.0
    %2266 = vmatprep.subr.mxu0 0.0
    %2267 = vmatpush1.msra.mxu0 0.0
    %2268 = vmatprep.subr.mxu0 0.0
    %2269 = vmatpush1.msra.mxu0 0.0
    %2270 = vmatprep.subr.mxu0 0.0
    %2271 = vmatpush1.msra.mxu0 0.0
    %2272 = vmatprep.subr.mxu0 0.0
    %2273 = vmatpush1.msra.mxu0 0.0
    %2274 = vmatprep.subr.mxu0 0.0
    %2275 = vmatpush1.msra.mxu0 0.0
    %2276 = vmatprep.subr.mxu0 0.0
    %2277 = vmatpush1.msra.mxu0 0.0
    %2278 = vmatprep.subr.mxu0 0.0
    %2279 = vmatpush1.msra.mxu0 0.0
    %2280 = vmatprep.subr.mxu0 0.0
    %2281 = vmatpush1.msra.mxu0 0.0
    %2282 = vmatprep.subr.mxu0 0.0
    %2283 = vmatpush1.msra.mxu0 0.0
    %2284 = vmatprep.subr.mxu0 0.0
    %2285 = vmatpush1.msra.mxu0 0.0
    %2286 = vmatprep.subr.mxu0 0.0
    %2287 = vmatpush1.msra.mxu0 0.0
    %2288 = vmatprep.subr.mxu0 0.0
    %2289 = vmatpush1.msra.mxu0 0.0
    %2290 = vmatprep.subr.mxu0 0.0
    %2291 = vmatpush1.msra.mxu0 0.0
    %2292 = vmatprep.subr.mxu0 0.0
    %2293 = vmatpush1.msra.mxu0 0.0
    %2294 = vmatprep.subr.mxu0 0.0
    %2295 = vmatpush1.msra.mxu0 0.0
    %2296 = vmatprep.subr.mxu0 0.0
    %2297 = vmatpush1.msra.mxu0 0.0
    %2298 = vmatprep.subr.mxu0 0.0
    %2299 = vmatpush1.msra.mxu0 0.0
    %2300 = vmatprep.subr.mxu0 0.0
    %2301 = vmatpush1.msra.mxu0 0.0
    %2302 = vmatprep.subr.mxu0 0.0
    %2303 = vmatpush1.msra.mxu0 0.0
    %2304 = vmatprep.subr.mxu0 0.0
    %2305 = vmatpush1.msra.mxu0 0.0
    %2306 = vmatprep.subr.mxu0 0.0
    %2307 = vmatpush1.msra.mxu0 0.0
    %2308 = vmatprep.subr.mxu0 0.0
    %2309 = vmatpush1.msra.mxu0 0.0
    %2310 = vmatprep.subr.mxu0 0.0
    %2311 = vmatpush1.msra.mxu0 0.0
    %2312 = vmatprep.subr.mxu0 0.0
    %2313 = vmatpush1.msra.mxu0 0.0
    %2314 = vmatprep.subr.mxu0 0.0
    %2315 = vmatpush1.msra.mxu0 0.0
    %2316 = vmatprep.subr.mxu0 0.0
    %2317 = vmatpush1.msra.mxu0 0.0
    %2318 = vmatprep.mubr.f32.mxu0 0.0
    %2319 = vmatmul.mubr.f32.gmra.mrb[0].mxu0 %v2252
    %v2320 = vpop.f32.mrb[0].mxu0
    %v2321 = vadd.f32 0.0, %v2320
    %v2322 = vpop.f32.mrb[0].mxu0
    %2323 = vdwg.mxu0
    %2324 = vrot.lane.b32.xlu0 %v1865, 120
    %v2325 = vpop.permute.xlu0 %2324
    %2326 = vrot.lane.b32.xlu0 %v1963, 120
    %v2327 = vpop.permute.xlu0 %2326
    %2328 = vrot.lane.b32.xlu0 %v1968, 120
    %v2329 = vpop.permute.xlu0 %2328
    %v2330 = vsel %vm364, %v2325, 0
    %v2332 = vsel %vm364, %v2327, 0
    %v2334 = vsel %vm364, %v2329, 0
    %2336 = vmatprep.subr.mxu0 0.0
    %2337 = vmatpush1.xpose.msra.mxu0 %v2332
    %2338 = vmatprep.subr.mxu0 0.0
    %2339 = vmatpush1.xpose.msra.mxu0 %v2334
    %2340 = vmatprep.subr.mxu0 0.0
    %2341 = vmatpush1.xpose.msra.mxu0 0.0
    %2342 = vmatprep.subr.mxu0 0.0
    %2343 = vmatpush1.xpose.msra.mxu0 0.0
    %2344 = vmatprep.subr.mxu0 0.0
    %2345 = vmatpush1.xpose.msra.mxu0 0.0
    %2346 = vmatprep.subr.mxu0 0.0
    %2347 = vmatpush1.xpose.msra.mxu0 0.0
    %2348 = vmatprep.subr.mxu0 0.0
    %2349 = vmatpush1.xpose.msra.mxu0 0.0
    %2350 = vmatprep.subr.mxu0 0.0
    %2351 = vmatpush1.xpose.msra.mxu0 0.0
    %2352 = vmatprep.subr.mxu0 0.0
    %2353 = vmatpush1.xpose.msra.mxu0 0.0
    %2354 = vmatprep.subr.mxu0 0.0
    %2355 = vmatpush1.xpose.msra.mxu0 0.0
    %2356 = vmatprep.subr.mxu0 0.0
    %2357 = vmatpush1.xpose.msra.mxu0 0.0
    %2358 = vmatprep.subr.mxu0 0.0
    %2359 = vmatpush1.xpose.msra.mxu0 0.0
    %2360 = vmatprep.subr.mxu0 0.0
    %2361 = vmatpush1.xpose.msra.mxu0 0.0
    %2362 = vmatprep.subr.mxu0 0.0
    %2363 = vmatpush1.xpose.msra.mxu0 0.0
    %2364 = vmatprep.subr.mxu0 0.0
    %2365 = vmatpush1.xpose.msra.mxu0 0.0
    %2366 = vmatprep.subr.mxu0 0.0
    %2367 = vmatpush1.xpose.msra.mxu0 0.0
    %2368 = vmatprep.subr.mxu0 0.0
    %2369 = vmatpush1.xpose.msra.mxu0 0.0
    %2370 = vmatprep.subr.mxu0 0.0
    %2371 = vmatpush1.xpose.msra.mxu0 0.0
    %2372 = vmatprep.subr.mxu0 0.0
    %2373 = vmatpush1.xpose.msra.mxu0 0.0
    %2374 = vmatprep.subr.mxu0 0.0
    %2375 = vmatpush1.xpose.msra.mxu0 0.0
    %2376 = vmatprep.subr.mxu0 0.0
    %2377 = vmatpush1.xpose.msra.mxu0 0.0
    %2378 = vmatprep.subr.mxu0 0.0
    %2379 = vmatpush1.xpose.msra.mxu0 0.0
    %2380 = vmatprep.subr.mxu0 0.0
    %2381 = vmatpush1.xpose.msra.mxu0 0.0
    %2382 = vmatprep.subr.mxu0 0.0
    %2383 = vmatpush1.xpose.msra.mxu0 0.0
    %2384 = vmatprep.subr.mxu0 0.0
    %2385 = vmatpush1.xpose.msra.mxu0 0.0
    %2386 = vmatprep.subr.mxu0 0.0
    %2387 = vmatpush1.xpose.msra.mxu0 0.0
    %2388 = vmatprep.subr.mxu0 0.0
    %2389 = vmatpush1.xpose.msra.mxu0 0.0
    %2390 = vmatprep.subr.mxu0 0.0
    %2391 = vmatpush1.xpose.msra.mxu0 0.0
    %2392 = vmatprep.subr.mxu0 0.0
    %2393 = vmatpush1.xpose.msra.mxu0 0.0
    %2394 = vmatprep.subr.mxu0 0.0
    %2395 = vmatpush1.xpose.msra.mxu0 0.0
    %2396 = vmatprep.subr.mxu0 0.0
    %2397 = vmatpush1.xpose.msra.mxu0 0.0
    %2398 = vmatprep.subr.mxu0 0.0
    %2399 = vmatpush1.xpose.msra.mxu0 0.0
    %2400 = vmatprep.mubr.f32.mxu0 0.0
    %2401 = vmatmul.mubr.f32.gmra.mrb[0].mxu0 %v2330
    %v2402 = vpop.f32.mrb[0].mxu0
    %v2403 = vadd.f32 0.0, %v2402
    %v2404 = vpop.f32.mrb[0].mxu0
    %2405 = vdwg.mxu0
    %v2406 = vmul.f32 %v2403, 0.35355338
    %v2407 = vsel %vm1716, %v2406, -inf
    %2408 = vmax.xlane.f32.xlu0 %v2407
    %v2409 = vpop.xlane.xlu0 %2408
    %v2410 = vsub.f32 %v2406, %v2409
    %v2411 = vmul.f32 %v2410, 1.442695
    %v2412 = vpow.pop %v2411
    %v2413 = vsel %vm1716, %v2412, 0.0
    %2414 = vadd.xlane.f32.xlu0 %v2413
    %v2415 = vpop.xlane.xlu0 %2414
    %v2416 = vrcp.pop %v2415
    %v2417 = vmul.f32 %v2412, %v2416
    %s2418 = scalar_lea.vmem [#allocation26], 16
    %2419 = vst.msk [vmem:[%s2418] sm:$0xff] %vm1716, %v2417
    %2420 = vrot.lane.b32.xlu0 %v1963, 88
    %v2421 = vpop.permute.xlu0 %2420
    %2422 = vrot.lane.b32.xlu0 %v1968, 88
    %v2423 = vpop.permute.xlu0 %2422
    %v2427 = vsel %vm1716, %v2417, 0
    %2429 = vmatprep.subr.mxu0 0.0
    %2430 = vmatpush1.msra.mxu0 %v2421
    %2431 = vmatprep.subr.mxu0 0.0
    %2432 = vmatpush1.msra.mxu0 %v2423
    %2433 = vmatprep.subr.mxu0 0.0
    %2434 = vmatpush1.msra.mxu0 0.0
    %2435 = vmatprep.subr.mxu0 0.0
    %2436 = vmatpush1.msra.mxu0 0.0
    %2437 = vmatprep.subr.mxu0 0.0
    %2438 = vmatpush1.msra.mxu0 0.0
    %2439 = vmatprep.subr.mxu0 0.0
    %2440 = vmatpush1.msra.mxu0 0.0
    %2441 = vmatprep.subr.mxu0 0.0
    %2442 = vmatpush1.msra.mxu0 0.0
    %2443 = vmatprep.subr.mxu0 0.0
    %2444 = vmatpush1.msra.mxu0 0.0
    %2445 = vmatprep.subr.mxu0 0.0
    %2446 = vmatpush1.msra.mxu0 0.0
    %2447 = vmatprep.subr.mxu0 0.0
    %2448 = vmatpush1.msra.mxu0 0.0
    %2449 = vmatprep.subr.mxu0 0.0
    %2450 = vmatpush1.msra.mxu0 0.0
    %2451 = vmatprep.subr.mxu0 0.0
    %2452 = vmatpush1.msra.mxu0 0.0
    %2453 = vmatprep.subr.mxu0 0.0
    %2454 = vmatpush1.msra.mxu0 0.0
    %2455 = vmatprep.subr.mxu0 0.0
    %2456 = vmatpush1.msra.mxu0 0.0
    %2457 = vmatprep.subr.mxu0 0.0
    %2458 = vmatpush1.msra.mxu0 0.0
    %2459 = vmatprep.subr.mxu0 0.0
    %2460 = vmatpush1.msra.mxu0 0.0
    %2461 = vmatprep.subr.mxu0 0.0
    %2462 = vmatpush1.msra.mxu0 0.0
    %2463 = vmatprep.subr.mxu0 0.0
    %2464 = vmatpush1.msra.mxu0 0.0
    %2465 = vmatprep.subr.mxu0 0.0
    %2466 = vmatpush1.msra.mxu0 0.0
    %2467 = vmatprep.subr.mxu0 0.0
    %2468 = vmatpush1.msra.mxu0 0.0
    %2469 = vmatprep.subr.mxu0 0.0
    %2470 = vmatpush1.msra.mxu0 0.0
    %2471 = vmatprep.subr.mxu0 0.0
    %2472 = vmatpush1.msra.mxu0 0.0
    %2473 = vmatprep.subr.mxu0 0.0
    %2474 = vmatpush1.msra.mxu0 0.0
    %2475 = vmatprep.subr.mxu0 0.0
    %2476 = vmatpush1.msra.mxu0 0.0
    %2477 = vmatprep.subr.mxu0 0.0
    %2478 = vmatpush1.msra.mxu0 0.0
    %2479 = vmatprep.subr.mxu0 0.0
    %2480 = vmatpush1.msra.mxu0 0.0
    %2481 = vmatprep.subr.mxu0 0.0
    %2482 = vmatpush1.msra.mxu0 0.0
    %2483 = vmatprep.subr.mxu0 0.0
    %2484 = vmatpush1.msra.mxu0 0.0
    %2485 = vmatprep.subr.mxu0 0.0
    %2486 = vmatpush1.msra.mxu0 0.0
    %2487 = vmatprep.subr.mxu0 0.0
    %2488 = vmatpush1.msra.mxu0 0.0
    %2489 = vmatprep.subr.mxu0 0.0
    %2490 = vmatpush1.msra.mxu0 0.0
    %2491 = vmatprep.subr.mxu0 0.0
    %2492 = vmatpush1.msra.mxu0 0.0
    %2493 = vmatprep.mubr.f32.mxu0 0.0
    %2494 = vmatmul.mubr.f32.gmra.mrb[0].mxu0 %v2427
    %v2495 = vpop.f32.mrb[0].mxu0
    %v2496 = vadd.f32 0.0, %v2495
    %v2497 = vpop.f32.mrb[0].mxu0
    %2498 = vdwg.mxu0
    %2499 = vrot.lane.b32.xlu0 %v1870, 120
    %v2500 = vpop.permute.xlu0 %2499
    %2501 = vrot.lane.b32.xlu0 %v1973, 120
    %v2502 = vpop.permute.xlu0 %2501
    %2503 = vrot.lane.b32.xlu0 %v1978, 120
    %v2504 = vpop.permute.xlu0 %2503
    %v2505 = vsel %vm364, %v2500, 0
    %v2507 = vsel %vm364, %v2502, 0
    %v2509 = vsel %vm364, %v2504, 0
    %2511 = vmatprep.subr.mxu0 0.0
    %2512 = vmatpush1.xpose.msra.mxu0 %v2507
    %2513 = vmatprep.subr.mxu0 0.0
    %2514 = vmatpush1.xpose.msra.mxu0 %v2509
    %2515 = vmatprep.subr.mxu0 0.0
    %2516 = vmatpush1.xpose.msra.mxu0 0.0
    %2517 = vmatprep.subr.mxu0 0.0
    %2518 = vmatpush1.xpose.msra.mxu0 0.0
    %2519 = vmatprep.subr.mxu0 0.0
    %2520 = vmatpush1.xpose.msra.mxu0 0.0
    %2521 = vmatprep.subr.mxu0 0.0
    %2522 = vmatpush1.xpose.msra.mxu0 0.0
    %2523 = vmatprep.subr.mxu0 0.0
    %2524 = vmatpush1.xpose.msra.mxu0 0.0
    %2525 = vmatprep.subr.mxu0 0.0
    %2526 = vmatpush1.xpose.msra.mxu0 0.0
    %2527 = vmatprep.subr.mxu0 0.0
    %2528 = vmatpush1.xpose.msra.mxu0 0.0
    %2529 = vmatprep.subr.mxu0 0.0
    %2530 = vmatpush1.xpose.msra.mxu0 0.0
    %2531 = vmatprep.subr.mxu0 0.0
    %2532 = vmatpush1.xpose.msra.mxu0 0.0
    %2533 = vmatprep.subr.mxu0 0.0
    %2534 = vmatpush1.xpose.msra.mxu0 0.0
    %2535 = vmatprep.subr.mxu0 0.0
    %2536 = vmatpush1.xpose.msra.mxu0 0.0
    %2537 = vmatprep.subr.mxu0 0.0
    %2538 = vmatpush1.xpose.msra.mxu0 0.0
    %2539 = vmatprep.subr.mxu0 0.0
    %2540 = vmatpush1.xpose.msra.mxu0 0.0
    %2541 = vmatprep.subr.mxu0 0.0
    %2542 = vmatpush1.xpose.msra.mxu0 0.0
    %2543 = vmatprep.subr.mxu0 0.0
    %2544 = vmatpush1.xpose.msra.mxu0 0.0
    %2545 = vmatprep.subr.mxu0 0.0
    %2546 = vmatpush1.xpose.msra.mxu0 0.0
    %2547 = vmatprep.subr.mxu0 0.0
    %2548 = vmatpush1.xpose.msra.mxu0 0.0
    %2549 = vmatprep.subr.mxu0 0.0
    %2550 = vmatpush1.xpose.msra.mxu0 0.0
    %2551 = vmatprep.subr.mxu0 0.0
    %2552 = vmatpush1.xpose.msra.mxu0 0.0
    %2553 = vmatprep.subr.mxu0 0.0
    %2554 = vmatpush1.xpose.msra.mxu0 0.0
    %2555 = vmatprep.subr.mxu0 0.0
    %2556 = vmatpush1.xpose.msra.mxu0 0.0
    %2557 = vmatprep.subr.mxu0 0.0
    %2558 = vmatpush1.xpose.msra.mxu0 0.0
    %2559 = vmatprep.subr.mxu0 0.0
    %2560 = vmatpush1.xpose.msra.mxu0 0.0
    %2561 = vmatprep.subr.mxu0 0.0
    %2562 = vmatpush1.xpose.msra.mxu0 0.0
    %2563 = vmatprep.subr.mxu0 0.0
    %2564 = vmatpush1.xpose.msra.mxu0 0.0
    %2565 = vmatprep.subr.mxu0 0.0
    %2566 = vmatpush1.xpose.msra.mxu0 0.0
    %2567 = vmatprep.subr.mxu0 0.0
    %2568 = vmatpush1.xpose.msra.mxu0 0.0
    %2569 = vmatprep.subr.mxu0 0.0
    %2570 = vmatpush1.xpose.msra.mxu0 0.0
    %2571 = vmatprep.subr.mxu0 0.0
    %2572 = vmatpush1.xpose.msra.mxu0 0.0
    %2573 = vmatprep.subr.mxu0 0.0
    %2574 = vmatpush1.xpose.msra.mxu0 0.0
    %2575 = vmatprep.mubr.f32.mxu0 0.0
    %2576 = vmatmul.mubr.f32.gmra.mrb[0].mxu0 %v2505
    %v2577 = vpop.f32.mrb[0].mxu0
    %v2578 = vadd.f32 0.0, %v2577
    %v2579 = vpop.f32.mrb[0].mxu0
    %2580 = vdwg.mxu0
    %v2581 = vmul.f32 %v2578, 0.35355338
    %v2582 = vsel %vm1716, %v2581, -inf
    %2583 = vmax.xlane.f32.xlu0 %v2582
    %v2584 = vpop.xlane.xlu0 %2583
    %v2585 = vsub.f32 %v2581, %v2584
    %v2586 = vmul.f32 %v2585, 1.442695
    %v2587 = vpow.pop %v2586
    %v2588 = vsel %vm1716, %v2587, 0.0
    %2589 = vadd.xlane.f32.xlu0 %v2588
    %v2590 = vpop.xlane.xlu0 %2589
    %v2591 = vrcp.pop %v2590
    %v2592 = vmul.f32 %v2587, %v2591
    %s2593 = scalar_lea.vmem [#allocation26], 24
    %2594 = vst.msk [vmem:[%s2593] sm:$0xff] %vm1716, %v2592
    %2595 = vrot.lane.b32.xlu0 %v1973, 88
    %v2596 = vpop.permute.xlu0 %2595
    %2597 = vrot.lane.b32.xlu0 %v1978, 88
    %v2598 = vpop.permute.xlu0 %2597
    %v2602 = vsel %vm1716, %v2592, 0
    %2604 = vmatprep.subr.mxu0 0.0
    %2605 = vmatpush1.msra.mxu0 %v2596
    %2606 = vmatprep.subr.mxu0 0.0
    %2607 = vmatpush1.msra.mxu0 %v2598
    %2608 = vmatprep.subr.mxu0 0.0
    %2609 = vmatpush1.msra.mxu0 0.0
    %2610 = vmatprep.subr.mxu0 0.0
    %2611 = vmatpush1.msra.mxu0 0.0
    %2612 = vmatprep.subr.mxu0 0.0
    %2613 = vmatpush1.msra.mxu0 0.0
    %2614 = vmatprep.subr.mxu0 0.0
    %2615 = vmatpush1.msra.mxu0 0.0
    %2616 = vmatprep.subr.mxu0 0.0
    %2617 = vmatpush1.msra.mxu0 0.0
    %2618 = vmatprep.subr.mxu0 0.0
    %2619 = vmatpush1.msra.mxu0 0.0
    %2620 = vmatprep.subr.mxu0 0.0
    %2621 = vmatpush1.msra.mxu0 0.0
    %2622 = vmatprep.subr.mxu0 0.0
    %2623 = vmatpush1.msra.mxu0 0.0
    %2624 = vmatprep.subr.mxu0 0.0
    %2625 = vmatpush1.msra.mxu0 0.0
    %2626 = vmatprep.subr.mxu0 0.0
    %2627 = vmatpush1.msra.mxu0 0.0
    %2628 = vmatprep.subr.mxu0 0.0
    %2629 = vmatpush1.msra.mxu0 0.0
    %2630 = vmatprep.subr.mxu0 0.0
    %2631 = vmatpush1.msra.mxu0 0.0
    %2632 = vmatprep.subr.mxu0 0.0
    %2633 = vmatpush1.msra.mxu0 0.0
    %2634 = vmatprep.subr.mxu0 0.0
    %2635 = vmatpush1.msra.mxu0 0.0
    %2636 = vmatprep.subr.mxu0 0.0
    %2637 = vmatpush1.msra.mxu0 0.0
    %2638 = vmatprep.subr.mxu0 0.0
    %2639 = vmatpush1.msra.mxu0 0.0
    %2640 = vmatprep.subr.mxu0 0.0
    %2641 = vmatpush1.msra.mxu0 0.0
    %2642 = vmatprep.subr.mxu0 0.0
    %2643 = vmatpush1.msra.mxu0 0.0
    %2644 = vmatprep.subr.mxu0 0.0
    %2645 = vmatpush1.msra.mxu0 0.0
    %2646 = vmatprep.subr.mxu0 0.0
    %2647 = vmatpush1.msra.mxu0 0.0
    %2648 = vmatprep.subr.mxu0 0.0
    %2649 = vmatpush1.msra.mxu0 0.0
    %2650 = vmatprep.subr.mxu0 0.0
    %2651 = vmatpush1.msra.mxu0 0.0
    %2652 = vmatprep.subr.mxu0 0.0
    %2653 = vmatpush1.msra.mxu0 0.0
    %2654 = vmatprep.subr.mxu0 0.0
    %2655 = vmatpush1.msra.mxu0 0.0
    %2656 = vmatprep.subr.mxu0 0.0
    %2657 = vmatpush1.msra.mxu0 0.0
    %2658 = vmatprep.subr.mxu0 0.0
    %2659 = vmatpush1.msra.mxu0 0.0
    %2660 = vmatprep.subr.mxu0 0.0
    %2661 = vmatpush1.msra.mxu0 0.0
    %2662 = vmatprep.subr.mxu0 0.0
    %2663 = vmatpush1.msra.mxu0 0.0
    %2664 = vmatprep.subr.mxu0 0.0
    %2665 = vmatpush1.msra.mxu0 0.0
    %2666 = vmatprep.subr.mxu0 0.0
    %2667 = vmatpush1.msra.mxu0 0.0
    %2668 = vmatprep.mubr.f32.mxu0 0.0
    %2669 = vmatmul.mubr.f32.gmra.mrb[0].mxu0 %v2602
    %v2670 = vpop.f32.mrb[0].mxu0
    %v2671 = vadd.f32 0.0, %v2670
    %v2672 = vpop.f32.mrb[0].mxu0
    %2673 = vdwg.mxu0
    %2674 = vrot.lane.b32.xlu0 %v1865, 112
    %v2675 = vpop.permute.xlu0 %2674
    %2676 = vrot.lane.b32.xlu0 %v1963, 112
    %v2677 = vpop.permute.xlu0 %2676
    %2678 = vrot.lane.b32.xlu0 %v1968, 112
    %v2679 = vpop.permute.xlu0 %2678
    %v2680 = vsel %vm364, %v2675, 0
    %v2682 = vsel %vm364, %v2677, 0
    %v2684 = vsel %vm364, %v2679, 0
    %2686 = vmatprep.subr.mxu0 0.0
    %2687 = vmatpush1.xpose.msra.mxu0 %v2682
    %2688 = vmatprep.subr.mxu0 0.0
    %2689 = vmatpush1.xpose.msra.mxu0 %v2684
    %2690 = vmatprep.subr.mxu0 0.0
    %2691 = vmatpush1.xpose.msra.mxu0 0.0
    %2692 = vmatprep.subr.mxu0 0.0
    %2693 = vmatpush1.xpose.msra.mxu0 0.0
    %2694 = vmatprep.subr.mxu0 0.0
    %2695 = vmatpush1.xpose.msra.mxu0 0.0
    %2696 = vmatprep.subr.mxu0 0.0
    %2697 = vmatpush1.xpose.msra.mxu0 0.0
    %2698 = vmatprep.subr.mxu0 0.0
    %2699 = vmatpush1.xpose.msra.mxu0 0.0
    %2700 = vmatprep.subr.mxu0 0.0
    %2701 = vmatpush1.xpose.msra.mxu0 0.0
    %2702 = vmatprep.subr.mxu0 0.0
    %2703 = vmatpush1.xpose.msra.mxu0 0.0
    %2704 = vmatprep.subr.mxu0 0.0
    %2705 = vmatpush1.xpose.msra.mxu0 0.0
    %2706 = vmatprep.subr.mxu0 0.0
    %2707 = vmatpush1.xpose.msra.mxu0 0.0
    %2708 = vmatprep.subr.mxu0 0.0
    %2709 = vmatpush1.xpose.msra.mxu0 0.0
    %2710 = vmatprep.subr.mxu0 0.0
    %2711 = vmatpush1.xpose.msra.mxu0 0.0
    %2712 = vmatprep.subr.mxu0 0.0
    %2713 = vmatpush1.xpose.msra.mxu0 0.0
    %2714 = vmatprep.subr.mxu0 0.0
    %2715 = vmatpush1.xpose.msra.mxu0 0.0
    %2716 = vmatprep.subr.mxu0 0.0
    %2717 = vmatpush1.xpose.msra.mxu0 0.0
    %2718 = vmatprep.subr.mxu0 0.0
    %2719 = vmatpush1.xpose.msra.mxu0 0.0
    %2720 = vmatprep.subr.mxu0 0.0
    %2721 = vmatpush1.xpose.msra.mxu0 0.0
    %2722 = vmatprep.subr.mxu0 0.0
    %2723 = vmatpush1.xpose.msra.mxu0 0.0
    %2724 = vmatprep.subr.mxu0 0.0
    %2725 = vmatpush1.xpose.msra.mxu0 0.0
    %2726 = vmatprep.subr.mxu0 0.0
    %2727 = vmatpush1.xpose.msra.mxu0 0.0
    %2728 = vmatprep.subr.mxu0 0.0
    %2729 = vmatpush1.xpose.msra.mxu0 0.0
    %2730 = vmatprep.subr.mxu0 0.0
    %2731 = vmatpush1.xpose.msra.mxu0 0.0
    %2732 = vmatprep.subr.mxu0 0.0
    %2733 = vmatpush1.xpose.msra.mxu0 0.0
    %2734 = vmatprep.subr.mxu0 0.0
    %2735 = vmatpush1.xpose.msra.mxu0 0.0
    %2736 = vmatprep.subr.mxu0 0.0
    %2737 = vmatpush1.xpose.msra.mxu0 0.0
    %2738 = vmatprep.subr.mxu0 0.0
    %2739 = vmatpush1.xpose.msra.mxu0 0.0
    %2740 = vmatprep.subr.mxu0 0.0
    %2741 = vmatpush1.xpose.msra.mxu0 0.0
    %2742 = vmatprep.subr.mxu0 0.0
    %2743 = vmatpush1.xpose.msra.mxu0 0.0
    %2744 = vmatprep.subr.mxu0 0.0
    %2745 = vmatpush1.xpose.msra.mxu0 0.0
    %2746 = vmatprep.subr.mxu0 0.0
    %2747 = vmatpush1.xpose.msra.mxu0 0.0
    %2748 = vmatprep.subr.mxu0 0.0
    %2749 = vmatpush1.xpose.msra.mxu0 0.0
    %2750 = vmatprep.mubr.f32.mxu0 0.0
    %2751 = vmatmul.mubr.f32.gmra.mrb[0].mxu0 %v2680
    %v2752 = vpop.f32.mrb[0].mxu0
    %v2753 = vadd.f32 0.0, %v2752
    %v2754 = vpop.f32.mrb[0].mxu0
    %2755 = vdwg.mxu0
    %v2756 = vmul.f32 %v2753, 0.35355338
    %v2757 = vsel %vm1716, %v2756, -inf
    %2758 = vmax.xlane.f32.xlu0 %v2757
    %v2759 = vpop.xlane.xlu0 %2758
    %v2760 = vsub.f32 %v2756, %v2759
    %v2761 = vmul.f32 %v2760, 1.442695
    %v2762 = vpow.pop %v2761
    %v2763 = vsel %vm1716, %v2762, 0.0
    %2764 = vadd.xlane.f32.xlu0 %v2763
    %v2765 = vpop.xlane.xlu0 %2764
    %v2766 = vrcp.pop %v2765
    %v2767 = vmul.f32 %v2762, %v2766
    %s2768 = scalar_lea.vmem [#allocation26], 32
    %2769 = vst.msk [vmem:[%s2768] sm:$0xff] %vm1716, %v2767
    %2770 = vrot.lane.b32.xlu0 %v1963, 80
    %v2771 = vpop.permute.xlu0 %2770
    %2772 = vrot.lane.b32.xlu0 %v1968, 80
    %v2773 = vpop.permute.xlu0 %2772
    %v2777 = vsel %vm1716, %v2767, 0
    %2779 = vmatprep.subr.mxu0 0.0
    %2780 = vmatpush1.msra.mxu0 %v2771
    %2781 = vmatprep.subr.mxu0 0.0
    %2782 = vmatpush1.msra.mxu0 %v2773
    %2783 = vmatprep.subr.mxu0 0.0
    %2784 = vmatpush1.msra.mxu0 0.0
    %2785 = vmatprep.subr.mxu0 0.0
    %2786 = vmatpush1.msra.mxu0 0.0
    %2787 = vmatprep.subr.mxu0 0.0
    %2788 = vmatpush1.msra.mxu0 0.0
    %2789 = vmatprep.subr.mxu0 0.0
    %2790 = vmatpush1.msra.mxu0 0.0
    %2791 = vmatprep.subr.mxu0 0.0
    %2792 = vmatpush1.msra.mxu0 0.0
    %2793 = vmatprep.subr.mxu0 0.0
    %2794 = vmatpush1.msra.mxu0 0.0
    %2795 = vmatprep.subr.mxu0 0.0
    %2796 = vmatpush1.msra.mxu0 0.0
    %2797 = vmatprep.subr.mxu0 0.0
    %2798 = vmatpush1.msra.mxu0 0.0
    %2799 = vmatprep.subr.mxu0 0.0
    %2800 = vmatpush1.msra.mxu0 0.0
    %2801 = vmatprep.subr.mxu0 0.0
    %2802 = vmatpush1.msra.mxu0 0.0
    %2803 = vmatprep.subr.mxu0 0.0
    %2804 = vmatpush1.msra.mxu0 0.0
    %2805 = vmatprep.subr.mxu0 0.0
    %2806 = vmatpush1.msra.mxu0 0.0
    %2807 = vmatprep.subr.mxu0 0.0
    %2808 = vmatpush1.msra.mxu0 0.0
    %2809 = vmatprep.subr.mxu0 0.0
    %2810 = vmatpush1.msra.mxu0 0.0
    %2811 = vmatprep.subr.mxu0 0.0
    %2812 = vmatpush1.msra.mxu0 0.0
    %2813 = vmatprep.subr.mxu0 0.0
    %2814 = vmatpush1.msra.mxu0 0.0
    %2815 = vmatprep.subr.mxu0 0.0
    %2816 = vmatpush1.msra.mxu0 0.0
    %2817 = vmatprep.subr.mxu0 0.0
    %2818 = vmatpush1.msra.mxu0 0.0
    %2819 = vmatprep.subr.mxu0 0.0
    %2820 = vmatpush1.msra.mxu0 0.0
    %2821 = vmatprep.subr.mxu0 0.0
    %2822 = vmatpush1.msra.mxu0 0.0
    %2823 = vmatprep.subr.mxu0 0.0
    %2824 = vmatpush1.msra.mxu0 0.0
    %2825 = vmatprep.subr.mxu0 0.0
    %2826 = vmatpush1.msra.mxu0 0.0
    %2827 = vmatprep.subr.mxu0 0.0
    %2828 = vmatpush1.msra.mxu0 0.0
    %2829 = vmatprep.subr.mxu0 0.0
    %2830 = vmatpush1.msra.mxu0 0.0
    %2831 = vmatprep.subr.mxu0 0.0
    %2832 = vmatpush1.msra.mxu0 0.0
    %2833 = vmatprep.subr.mxu0 0.0
    %2834 = vmatpush1.msra.mxu0 0.0
    %2835 = vmatprep.subr.mxu0 0.0
    %2836 = vmatpush1.msra.mxu0 0.0
    %2837 = vmatprep.subr.mxu0 0.0
    %2838 = vmatpush1.msra.mxu0 0.0
    %2839 = vmatprep.subr.mxu0 0.0
    %2840 = vmatpush1.msra.mxu0 0.0
    %2841 = vmatprep.subr.mxu0 0.0
    %2842 = vmatpush1.msra.mxu0 0.0
    %2843 = vmatprep.mubr.f32.mxu0 0.0
    %2844 = vmatmul.mubr.f32.gmra.mrb[0].mxu0 %v2777
    %v2845 = vpop.f32.mrb[0].mxu0
    %v2846 = vadd.f32 0.0, %v2845
    %v2847 = vpop.f32.mrb[0].mxu0
    %2848 = vdwg.mxu0
    %2849 = vrot.lane.b32.xlu0 %v1870, 112
    %v2850 = vpop.permute.xlu0 %2849
    %2851 = vrot.lane.b32.xlu0 %v1973, 112
    %v2852 = vpop.permute.xlu0 %2851
    %2853 = vrot.lane.b32.xlu0 %v1978, 112
    %v2854 = vpop.permute.xlu0 %2853
    %v2855 = vsel %vm364, %v2850, 0
    %v2857 = vsel %vm364, %v2852, 0
    %v2859 = vsel %vm364, %v2854, 0
    %2861 = vmatprep.subr.mxu0 0.0
    %2862 = vmatpush1.xpose.msra.mxu0 %v2857
    %2863 = vmatprep.subr.mxu0 0.0
    %2864 = vmatpush1.xpose.msra.mxu0 %v2859
    %2865 = vmatprep.subr.mxu0 0.0
    %2866 = vmatpush1.xpose.msra.mxu0 0.0
    %2867 = vmatprep.subr.mxu0 0.0
    %2868 = vmatpush1.xpose.msra.mxu0 0.0
    %2869 = vmatprep.subr.mxu0 0.0
    %2870 = vmatpush1.xpose.msra.mxu0 0.0
    %2871 = vmatprep.subr.mxu0 0.0
    %2872 = vmatpush1.xpose.msra.mxu0 0.0
    %2873 = vmatprep.subr.mxu0 0.0
    %2874 = vmatpush1.xpose.msra.mxu0 0.0
    %2875 = vmatprep.subr.mxu0 0.0
    %2876 = vmatpush1.xpose.msra.mxu0 0.0
    %2877 = vmatprep.subr.mxu0 0.0
    %2878 = vmatpush1.xpose.msra.mxu0 0.0
    %2879 = vmatprep.subr.mxu0 0.0
    %2880 = vmatpush1.xpose.msra.mxu0 0.0
    %2881 = vmatprep.subr.mxu0 0.0
    %2882 = vmatpush1.xpose.msra.mxu0 0.0
    %2883 = vmatprep.subr.mxu0 0.0
    %2884 = vmatpush1.xpose.msra.mxu0 0.0
    %2885 = vmatprep.subr.mxu0 0.0
    %2886 = vmatpush1.xpose.msra.mxu0 0.0
    %2887 = vmatprep.subr.mxu0 0.0
    %2888 = vmatpush1.xpose.msra.mxu0 0.0
    %2889 = vmatprep.subr.mxu0 0.0
    %2890 = vmatpush1.xpose.msra.mxu0 0.0
    %2891 = vmatprep.subr.mxu0 0.0
    %2892 = vmatpush1.xpose.msra.mxu0 0.0
    %2893 = vmatprep.subr.mxu0 0.0
    %2894 = vmatpush1.xpose.msra.mxu0 0.0
    %2895 = vmatprep.subr.mxu0 0.0
    %2896 = vmatpush1.xpose.msra.mxu0 0.0
    %2897 = vmatprep.subr.mxu0 0.0
    %2898 = vmatpush1.xpose.msra.mxu0 0.0
    %2899 = vmatprep.subr.mxu0 0.0
    %2900 = vmatpush1.xpose.msra.mxu0 0.0
    %2901 = vmatprep.subr.mxu0 0.0
    %2902 = vmatpush1.xpose.msra.mxu0 0.0
    %2903 = vmatprep.subr.mxu0 0.0
    %2904 = vmatpush1.xpose.msra.mxu0 0.0
    %2905 = vmatprep.subr.mxu0 0.0
    %2906 = vmatpush1.xpose.msra.mxu0 0.0
    %2907 = vmatprep.subr.mxu0 0.0
    %2908 = vmatpush1.xpose.msra.mxu0 0.0
    %2909 = vmatprep.subr.mxu0 0.0
    %2910 = vmatpush1.xpose.msra.mxu0 0.0
    %2911 = vmatprep.subr.mxu0 0.0
    %2912 = vmatpush1.xpose.msra.mxu0 0.0
    %2913 = vmatprep.subr.mxu0 0.0
    %2914 = vmatpush1.xpose.msra.mxu0 0.0
    %2915 = vmatprep.subr.mxu0 0.0
    %2916 = vmatpush1.xpose.msra.mxu0 0.0
    %2917 = vmatprep.subr.mxu0 0.0
    %2918 = vmatpush1.xpose.msra.mxu0 0.0
    %2919 = vmatprep.subr.mxu0 0.0
    %2920 = vmatpush1.xpose.msra.mxu0 0.0
    %2921 = vmatprep.subr.mxu0 0.0
    %2922 = vmatpush1.xpose.msra.mxu0 0.0
    %2923 = vmatprep.subr.mxu0 0.0
    %2924 = vmatpush1.xpose.msra.mxu0 0.0
    %2925 = vmatprep.mubr.f32.mxu0 0.0
    %2926 = vmatmul.mubr.f32.gmra.mrb[0].mxu0 %v2855
    %v2927 = vpop.f32.mrb[0].mxu0
    %v2928 = vadd.f32 0.0, %v2927
    %v2929 = vpop.f32.mrb[0].mxu0
    %2930 = vdwg.mxu0
    %v2931 = vmul.f32 %v2928, 0.35355338
    %v2932 = vsel %vm1716, %v2931, -inf
    %2933 = vmax.xlane.f32.xlu0 %v2932
    %v2934 = vpop.xlane.xlu0 %2933
    %v2935 = vsub.f32 %v2931, %v2934
    %v2936 = vmul.f32 %v2935, 1.442695
    %v2937 = vpow.pop %v2936
    %v2938 = vsel %vm1716, %v2937, 0.0
    %2939 = vadd.xlane.f32.xlu0 %v2938
    %v2940 = vpop.xlane.xlu0 %2939
    %v2941 = vrcp.pop %v2940
    %v2942 = vmul.f32 %v2937, %v2941
    %s2943 = scalar_lea.vmem [#allocation26], 40
    %2944 = vst.msk [vmem:[%s2943] sm:$0xff] %vm1716, %v2942
    %2945 = vrot.lane.b32.xlu0 %v1973, 80
    %v2946 = vpop.permute.xlu0 %2945
    %2947 = vrot.lane.b32.xlu0 %v1978, 80
    %v2948 = vpop.permute.xlu0 %2947
    %v2952 = vsel %vm1716, %v2942, 0
    %2954 = vmatprep.subr.mxu0 0.0
    %2955 = vmatpush1.msra.mxu0 %v2946
    %2956 = vmatprep.subr.mxu0 0.0
    %2957 = vmatpush1.msra.mxu0 %v2948
    %2958 = vmatprep.subr.mxu0 0.0
    %2959 = vmatpush1.msra.mxu0 0.0
    %2960 = vmatprep.subr.mxu0 0.0
    %2961 = vmatpush1.msra.mxu0 0.0
    %2962 = vmatprep.subr.mxu0 0.0
    %2963 = vmatpush1.msra.mxu0 0.0
    %2964 = vmatprep.subr.mxu0 0.0
    %2965 = vmatpush1.msra.mxu0 0.0
    %2966 = vmatprep.subr.mxu0 0.0
    %2967 = vmatpush1.msra.mxu0 0.0
    %2968 = vmatprep.subr.mxu0 0.0
    %2969 = vmatpush1.msra.mxu0 0.0
    %2970 = vmatprep.subr.mxu0 0.0
    %2971 = vmatpush1.msra.mxu0 0.0
    %2972 = vmatprep.subr.mxu0 0.0
    %2973 = vmatpush1.msra.mxu0 0.0
    %2974 = vmatprep.subr.mxu0 0.0
    %2975 = vmatpush1.msra.mxu0 0.0
    %2976 = vmatprep.subr.mxu0 0.0
    %2977 = vmatpush1.msra.mxu0 0.0
    %2978 = vmatprep.subr.mxu0 0.0
    %2979 = vmatpush1.msra.mxu0 0.0
    %2980 = vmatprep.subr.mxu0 0.0
    %2981 = vmatpush1.msra.mxu0 0.0
    %2982 = vmatprep.subr.mxu0 0.0
    %2983 = vmatpush1.msra.mxu0 0.0
    %2984 = vmatprep.subr.mxu0 0.0
    %2985 = vmatpush1.msra.mxu0 0.0
    %2986 = vmatprep.subr.mxu0 0.0
    %2987 = vmatpush1.msra.mxu0 0.0
    %2988 = vmatprep.subr.mxu0 0.0
    %2989 = vmatpush1.msra.mxu0 0.0
    %2990 = vmatprep.subr.mxu0 0.0
    %2991 = vmatpush1.msra.mxu0 0.0
    %2992 = vmatprep.subr.mxu0 0.0
    %2993 = vmatpush1.msra.mxu0 0.0
    %2994 = vmatprep.subr.mxu0 0.0
    %2995 = vmatpush1.msra.mxu0 0.0
    %2996 = vmatprep.subr.mxu0 0.0
    %2997 = vmatpush1.msra.mxu0 0.0
    %2998 = vmatprep.subr.mxu0 0.0
    %2999 = vmatpush1.msra.mxu0 0.0
    %3000 = vmatprep.subr.mxu0 0.0
    %3001 = vmatpush1.msra.mxu0 0.0
    %3002 = vmatprep.subr.mxu0 0.0
    %3003 = vmatpush1.msra.mxu0 0.0
    %3004 = vmatprep.subr.mxu0 0.0
    %3005 = vmatpush1.msra.mxu0 0.0
    %3006 = vmatprep.subr.mxu0 0.0
    %3007 = vmatpush1.msra.mxu0 0.0
    %3008 = vmatprep.subr.mxu0 0.0
    %3009 = vmatpush1.msra.mxu0 0.0
    %3010 = vmatprep.subr.mxu0 0.0
    %3011 = vmatpush1.msra.mxu0 0.0
    %3012 = vmatprep.subr.mxu0 0.0
    %3013 = vmatpush1.msra.mxu0 0.0
    %3014 = vmatprep.subr.mxu0 0.0
    %3015 = vmatpush1.msra.mxu0 0.0
    %3016 = vmatprep.subr.mxu0 0.0
    %3017 = vmatpush1.msra.mxu0 0.0
    %3018 = vmatprep.mubr.f32.mxu0 0.0
    %3019 = vmatmul.mubr.f32.gmra.mrb[0].mxu0 %v2952
    %v3020 = vpop.f32.mrb[0].mxu0
    %v3021 = vadd.f32 0.0, %v3020
    %v3022 = vpop.f32.mrb[0].mxu0
    %3023 = vdwg.mxu0
    %3024 = vrot.lane.b32.xlu0 %v1865, 104
    %v3025 = vpop.permute.xlu0 %3024
    %3026 = vrot.lane.b32.xlu0 %v1963, 104
    %v3027 = vpop.permute.xlu0 %3026
    %3028 = vrot.lane.b32.xlu0 %v1968, 104
    %v3029 = vpop.permute.xlu0 %3028
    %v3030 = vsel %vm364, %v3025, 0
    %v3032 = vsel %vm364, %v3027, 0
    %v3034 = vsel %vm364, %v3029, 0
    %3036 = vmatprep.subr.mxu0 0.0
    %3037 = vmatpush1.xpose.msra.mxu0 %v3032
    %3038 = vmatprep.subr.mxu0 0.0
    %3039 = vmatpush1.xpose.msra.mxu0 %v3034
    %3040 = vmatprep.subr.mxu0 0.0
    %3041 = vmatpush1.xpose.msra.mxu0 0.0
    %3042 = vmatprep.subr.mxu0 0.0
    %3043 = vmatpush1.xpose.msra.mxu0 0.0
    %3044 = vmatprep.subr.mxu0 0.0
    %3045 = vmatpush1.xpose.msra.mxu0 0.0
    %3046 = vmatprep.subr.mxu0 0.0
    %3047 = vmatpush1.xpose.msra.mxu0 0.0
    %3048 = vmatprep.subr.mxu0 0.0
    %3049 = vmatpush1.xpose.msra.mxu0 0.0
    %3050 = vmatprep.subr.mxu0 0.0
    %3051 = vmatpush1.xpose.msra.mxu0 0.0
    %3052 = vmatprep.subr.mxu0 0.0
    %3053 = vmatpush1.xpose.msra.mxu0 0.0
    %3054 = vmatprep.subr.mxu0 0.0
    %3055 = vmatpush1.xpose.msra.mxu0 0.0
    %3056 = vmatprep.subr.mxu0 0.0
    %3057 = vmatpush1.xpose.msra.mxu0 0.0
    %3058 = vmatprep.subr.mxu0 0.0
    %3059 = vmatpush1.xpose.msra.mxu0 0.0
    %3060 = vmatprep.subr.mxu0 0.0
    %3061 = vmatpush1.xpose.msra.mxu0 0.0
    %3062 = vmatprep.subr.mxu0 0.0
    %3063 = vmatpush1.xpose.msra.mxu0 0.0
    %3064 = vmatprep.subr.mxu0 0.0
    %3065 = vmatpush1.xpose.msra.mxu0 0.0
    %3066 = vmatprep.subr.mxu0 0.0
    %3067 = vmatpush1.xpose.msra.mxu0 0.0
    %3068 = vmatprep.subr.mxu0 0.0
    %3069 = vmatpush1.xpose.msra.mxu0 0.0
    %3070 = vmatprep.subr.mxu0 0.0
    %3071 = vmatpush1.xpose.msra.mxu0 0.0
    %3072 = vmatprep.subr.mxu0 0.0
    %3073 = vmatpush1.xpose.msra.mxu0 0.0
    %3074 = vmatprep.subr.mxu0 0.0
    %3075 = vmatpush1.xpose.msra.mxu0 0.0
    %3076 = vmatprep.subr.mxu0 0.0
    %3077 = vmatpush1.xpose.msra.mxu0 0.0
    %3078 = vmatprep.subr.mxu0 0.0
    %3079 = vmatpush1.xpose.msra.mxu0 0.0
    %3080 = vmatprep.subr.mxu0 0.0
    %3081 = vmatpush1.xpose.msra.mxu0 0.0
    %3082 = vmatprep.subr.mxu0 0.0
    %3083 = vmatpush1.xpose.msra.mxu0 0.0
    %3084 = vmatprep.subr.mxu0 0.0
    %3085 = vmatpush1.xpose.msra.mxu0 0.0
    %3086 = vmatprep.subr.mxu0 0.0
    %3087 = vmatpush1.xpose.msra.mxu0 0.0
    %3088 = vmatprep.subr.mxu0 0.0
    %3089 = vmatpush1.xpose.msra.mxu0 0.0
    %3090 = vmatprep.subr.mxu0 0.0
    %3091 = vmatpush1.xpose.msra.mxu0 0.0
    %3092 = vmatprep.subr.mxu0 0.0
    %3093 = vmatpush1.xpose.msra.mxu0 0.0
    %3094 = vmatprep.subr.mxu0 0.0
    %3095 = vmatpush1.xpose.msra.mxu0 0.0
    %3096 = vmatprep.subr.mxu0 0.0
    %3097 = vmatpush1.xpose.msra.mxu0 0.0
    %3098 = vmatprep.subr.mxu0 0.0
    %3099 = vmatpush1.xpose.msra.mxu0 0.0
    %3100 = vmatprep.mubr.f32.mxu0 0.0
    %3101 = vmatmul.mubr.f32.gmra.mrb[0].mxu0 %v3030
    %v3102 = vpop.f32.mrb[0].mxu0
    %v3103 = vadd.f32 0.0, %v3102
    %v3104 = vpop.f32.mrb[0].mxu0
    %3105 = vdwg.mxu0
    %v3106 = vmul.f32 %v3103, 0.35355338
    %v3107 = vsel %vm1716, %v3106, -inf
    %3108 = vmax.xlane.f32.xlu0 %v3107
    %v3109 = vpop.xlane.xlu0 %3108
    %v3110 = vsub.f32 %v3106, %v3109
    %v3111 = vmul.f32 %v3110, 1.442695
    %v3112 = vpow.pop %v3111
    %v3113 = vsel %vm1716, %v3112, 0.0
    %3114 = vadd.xlane.f32.xlu0 %v3113
    %v3115 = vpop.xlane.xlu0 %3114
    %v3116 = vrcp.pop %v3115
    %v3117 = vmul.f32 %v3112, %v3116
    %s3118 = scalar_lea.vmem [#allocation26], 48
    %3119 = vst.msk [vmem:[%s3118] sm:$0xff] %vm1716, %v3117
    %3120 = vrot.lane.b32.xlu0 %v1963, 72
    %v3121 = vpop.permute.xlu0 %3120
    %3122 = vrot.lane.b32.xlu0 %v1968, 72
    %v3123 = vpop.permute.xlu0 %3122
    %v3127 = vsel %vm1716, %v3117, 0
    %3129 = vmatprep.subr.mxu0 0.0
    %3130 = vmatpush1.msra.mxu0 %v3121
    %3131 = vmatprep.subr.mxu0 0.0
    %3132 = vmatpush1.msra.mxu0 %v3123
    %3133 = vmatprep.subr.mxu0 0.0
    %3134 = vmatpush1.msra.mxu0 0.0
    %3135 = vmatprep.subr.mxu0 0.0
    %3136 = vmatpush1.msra.mxu0 0.0
    %3137 = vmatprep.subr.mxu0 0.0
    %3138 = vmatpush1.msra.mxu0 0.0
    %3139 = vmatprep.subr.mxu0 0.0
    %3140 = vmatpush1.msra.mxu0 0.0
    %3141 = vmatprep.subr.mxu0 0.0
    %3142 = vmatpush1.msra.mxu0 0.0
    %3143 = vmatprep.subr.mxu0 0.0
    %3144 = vmatpush1.msra.mxu0 0.0
    %3145 = vmatprep.subr.mxu0 0.0
    %3146 = vmatpush1.msra.mxu0 0.0
    %3147 = vmatprep.subr.mxu0 0.0
    %3148 = vmatpush1.msra.mxu0 0.0
    %3149 = vmatprep.subr.mxu0 0.0
    %3150 = vmatpush1.msra.mxu0 0.0
    %3151 = vmatprep.subr.mxu0 0.0
    %3152 = vmatpush1.msra.mxu0 0.0
    %3153 = vmatprep.subr.mxu0 0.0
    %3154 = vmatpush1.msra.mxu0 0.0
    %3155 = vmatprep.subr.mxu0 0.0
    %3156 = vmatpush1.msra.mxu0 0.0
    %3157 = vmatprep.subr.mxu0 0.0
    %3158 = vmatpush1.msra.mxu0 0.0
    %3159 = vmatprep.subr.mxu0 0.0
    %3160 = vmatpush1.msra.mxu0 0.0
    %3161 = vmatprep.subr.mxu0 0.0
    %3162 = vmatpush1.msra.mxu0 0.0
    %3163 = vmatprep.subr.mxu0 0.0
    %3164 = vmatpush1.msra.mxu0 0.0
    %3165 = vmatprep.subr.mxu0 0.0
    %3166 = vmatpush1.msra.mxu0 0.0
    %3167 = vmatprep.subr.mxu0 0.0
    %3168 = vmatpush1.msra.mxu0 0.0
    %3169 = vmatprep.subr.mxu0 0.0
    %3170 = vmatpush1.msra.mxu0 0.0
    %3171 = vmatprep.subr.mxu0 0.0
    %3172 = vmatpush1.msra.mxu0 0.0
    %3173 = vmatprep.subr.mxu0 0.0
    %3174 = vmatpush1.msra.mxu0 0.0
    %3175 = vmatprep.subr.mxu0 0.0
    %3176 = vmatpush1.msra.mxu0 0.0
    %3177 = vmatprep.subr.mxu0 0.0
    %3178 = vmatpush1.msra.mxu0 0.0
    %3179 = vmatprep.subr.mxu0 0.0
    %3180 = vmatpush1.msra.mxu0 0.0
    %3181 = vmatprep.subr.mxu0 0.0
    %3182 = vmatpush1.msra.mxu0 0.0
    %3183 = vmatprep.subr.mxu0 0.0
    %3184 = vmatpush1.msra.mxu0 0.0
    %3185 = vmatprep.subr.mxu0 0.0
    %3186 = vmatpush1.msra.mxu0 0.0
    %3187 = vmatprep.subr.mxu0 0.0
    %3188 = vmatpush1.msra.mxu0 0.0
    %3189 = vmatprep.subr.mxu0 0.0
    %3190 = vmatpush1.msra.mxu0 0.0
    %3191 = vmatprep.subr.mxu0 0.0
    %3192 = vmatpush1.msra.mxu0 0.0
    %3193 = vmatprep.mubr.f32.mxu0 0.0
    %3194 = vmatmul.mubr.f32.gmra.mrb[0].mxu0 %v3127
    %v3195 = vpop.f32.mrb[0].mxu0
    %v3196 = vadd.f32 0.0, %v3195
    %v3197 = vpop.f32.mrb[0].mxu0
    %3198 = vdwg.mxu0
    %3199 = vrot.lane.b32.xlu0 %v1870, 104
    %v3200 = vpop.permute.xlu0 %3199
    %3201 = vrot.lane.b32.xlu0 %v1973, 104
    %v3202 = vpop.permute.xlu0 %3201
    %3203 = vrot.lane.b32.xlu0 %v1978, 104
    %v3204 = vpop.permute.xlu0 %3203
    %v3205 = vsel %vm364, %v3200, 0
    %v3207 = vsel %vm364, %v3202, 0
    %v3209 = vsel %vm364, %v3204, 0
    %3211 = vmatprep.subr.mxu0 0.0
    %3212 = vmatpush1.xpose.msra.mxu0 %v3207
    %3213 = vmatprep.subr.mxu0 0.0
    %3214 = vmatpush1.xpose.msra.mxu0 %v3209
    %3215 = vmatprep.subr.mxu0 0.0
    %3216 = vmatpush1.xpose.msra.mxu0 0.0
    %3217 = vmatprep.subr.mxu0 0.0
    %3218 = vmatpush1.xpose.msra.mxu0 0.0
    %3219 = vmatprep.subr.mxu0 0.0
    %3220 = vmatpush1.xpose.msra.mxu0 0.0
    %3221 = vmatprep.subr.mxu0 0.0
    %3222 = vmatpush1.xpose.msra.mxu0 0.0
    %3223 = vmatprep.subr.mxu0 0.0
    %3224 = vmatpush1.xpose.msra.mxu0 0.0
    %3225 = vmatprep.subr.mxu0 0.0
    %3226 = vmatpush1.xpose.msra.mxu0 0.0
    %3227 = vmatprep.subr.mxu0 0.0
    %3228 = vmatpush1.xpose.msra.mxu0 0.0
    %3229 = vmatprep.subr.mxu0 0.0
    %3230 = vmatpush1.xpose.msra.mxu0 0.0
    %3231 = vmatprep.subr.mxu0 0.0
    %3232 = vmatpush1.xpose.msra.mxu0 0.0
    %3233 = vmatprep.subr.mxu0 0.0
    %3234 = vmatpush1.xpose.msra.mxu0 0.0
    %3235 = vmatprep.subr.mxu0 0.0
    %3236 = vmatpush1.xpose.msra.mxu0 0.0
    %3237 = vmatprep.subr.mxu0 0.0
    %3238 = vmatpush1.xpose.msra.mxu0 0.0
    %3239 = vmatprep.subr.mxu0 0.0
    %3240 = vmatpush1.xpose.msra.mxu0 0.0
    %3241 = vmatprep.subr.mxu0 0.0
    %3242 = vmatpush1.xpose.msra.mxu0 0.0
    %3243 = vmatprep.subr.mxu0 0.0
    %3244 = vmatpush1.xpose.msra.mxu0 0.0
    %3245 = vmatprep.subr.mxu0 0.0
    %3246 = vmatpush1.xpose.msra.mxu0 0.0
    %3247 = vmatprep.subr.mxu0 0.0
    %3248 = vmatpush1.xpose.msra.mxu0 0.0
    %3249 = vmatprep.subr.mxu0 0.0
    %3250 = vmatpush1.xpose.msra.mxu0 0.0
    %3251 = vmatprep.subr.mxu0 0.0
    %3252 = vmatpush1.xpose.msra.mxu0 0.0
    %3253 = vmatprep.subr.mxu0 0.0
    %3254 = vmatpush1.xpose.msra.mxu0 0.0
    %3255 = vmatprep.subr.mxu0 0.0
    %3256 = vmatpush1.xpose.msra.mxu0 0.0
    %3257 = vmatprep.subr.mxu0 0.0
    %3258 = vmatpush1.xpose.msra.mxu0 0.0
    %3259 = vmatprep.subr.mxu0 0.0
    %3260 = vmatpush1.xpose.msra.mxu0 0.0
    %3261 = vmatprep.subr.mxu0 0.0
    %3262 = vmatpush1.xpose.msra.mxu0 0.0
    %3263 = vmatprep.subr.mxu0 0.0
    %3264 = vmatpush1.xpose.msra.mxu0 0.0
    %3265 = vmatprep.subr.mxu0 0.0
    %3266 = vmatpush1.xpose.msra.mxu0 0.0
    %3267 = vmatprep.subr.mxu0 0.0
    %3268 = vmatpush1.xpose.msra.mxu0 0.0
    %3269 = vmatprep.subr.mxu0 0.0
    %3270 = vmatpush1.xpose.msra.mxu0 0.0
    %3271 = vmatprep.subr.mxu0 0.0
    %3272 = vmatpush1.xpose.msra.mxu0 0.0
    %3273 = vmatprep.subr.mxu0 0.0
    %3274 = vmatpush1.xpose.msra.mxu0 0.0
    %3275 = vmatprep.mubr.f32.mxu0 0.0
    %3276 = vmatmul.mubr.f32.gmra.mrb[0].mxu0 %v3205
    %v3277 = vpop.f32.mrb[0].mxu0
    %v3278 = vadd.f32 0.0, %v3277
    %v3279 = vpop.f32.mrb[0].mxu0
    %3280 = vdwg.mxu0
    %v3281 = vmul.f32 %v3278, 0.35355338
    %v3282 = vsel %vm1716, %v3281, -inf
    %3283 = vmax.xlane.f32.xlu0 %v3282
    %v3284 = vpop.xlane.xlu0 %3283
    %v3285 = vsub.f32 %v3281, %v3284
    %v3286 = vmul.f32 %v3285, 1.442695
    %v3287 = vpow.pop %v3286
    %v3288 = vsel %vm1716, %v3287, 0.0
    %3289 = vadd.xlane.f32.xlu0 %v3288
    %v3290 = vpop.xlane.xlu0 %3289
    %v3291 = vrcp.pop %v3290
    %v3292 = vmul.f32 %v3287, %v3291
    %s3293 = scalar_lea.vmem [#allocation26], 56
    %3294 = vst.msk [vmem:[%s3293] sm:$0xff] %vm1716, %v3292
    %3295 = vrot.lane.b32.xlu0 %v1973, 72
    %v3296 = vpop.permute.xlu0 %3295
    %3297 = vrot.lane.b32.xlu0 %v1978, 72
    %v3298 = vpop.permute.xlu0 %3297
    %v3302 = vsel %vm1716, %v3292, 0
    %3304 = vmatprep.subr.mxu0 0.0
    %3305 = vmatpush1.msra.mxu0 %v3296
    %3306 = vmatprep.subr.mxu0 0.0
    %3307 = vmatpush1.msra.mxu0 %v3298
    %3308 = vmatprep.subr.mxu0 0.0
    %3309 = vmatpush1.msra.mxu0 0.0
    %3310 = vmatprep.subr.mxu0 0.0
    %3311 = vmatpush1.msra.mxu0 0.0
    %3312 = vmatprep.subr.mxu0 0.0
    %3313 = vmatpush1.msra.mxu0 0.0
    %3314 = vmatprep.subr.mxu0 0.0
    %3315 = vmatpush1.msra.mxu0 0.0
    %3316 = vmatprep.subr.mxu0 0.0
    %3317 = vmatpush1.msra.mxu0 0.0
    %3318 = vmatprep.subr.mxu0 0.0
    %3319 = vmatpush1.msra.mxu0 0.0
    %3320 = vmatprep.subr.mxu0 0.0
    %3321 = vmatpush1.msra.mxu0 0.0
    %3322 = vmatprep.subr.mxu0 0.0
    %3323 = vmatpush1.msra.mxu0 0.0
    %3324 = vmatprep.subr.mxu0 0.0
    %3325 = vmatpush1.msra.mxu0 0.0
    %3326 = vmatprep.subr.mxu0 0.0
    %3327 = vmatpush1.msra.mxu0 0.0
    %3328 = vmatprep.subr.mxu0 0.0
    %3329 = vmatpush1.msra.mxu0 0.0
    %3330 = vmatprep.subr.mxu0 0.0
    %3331 = vmatpush1.msra.mxu0 0.0
    %3332 = vmatprep.subr.mxu0 0.0
    %3333 = vmatpush1.msra.mxu0 0.0
    %3334 = vmatprep.subr.mxu0 0.0
    %3335 = vmatpush1.msra.mxu0 0.0
    %3336 = vmatprep.subr.mxu0 0.0
    %3337 = vmatpush1.msra.mxu0 0.0
    %3338 = vmatprep.subr.mxu0 0.0
    %3339 = vmatpush1.msra.mxu0 0.0
    %3340 = vmatprep.subr.mxu0 0.0
    %3341 = vmatpush1.msra.mxu0 0.0
    %3342 = vmatprep.subr.mxu0 0.0
    %3343 = vmatpush1.msra.mxu0 0.0
    %3344 = vmatprep.subr.mxu0 0.0
    %3345 = vmatpush1.msra.mxu0 0.0
    %3346 = vmatprep.subr.mxu0 0.0
    %3347 = vmatpush1.msra.mxu0 0.0
    %3348 = vmatprep.subr.mxu0 0.0
    %3349 = vmatpush1.msra.mxu0 0.0
    %3350 = vmatprep.subr.mxu0 0.0
    %3351 = vmatpush1.msra.mxu0 0.0
    %3352 = vmatprep.subr.mxu0 0.0
    %3353 = vmatpush1.msra.mxu0 0.0
    %3354 = vmatprep.subr.mxu0 0.0
    %3355 = vmatpush1.msra.mxu0 0.0
    %3356 = vmatprep.subr.mxu0 0.0
    %3357 = vmatpush1.msra.mxu0 0.0
    %3358 = vmatprep.subr.mxu0 0.0
    %3359 = vmatpush1.msra.mxu0 0.0
    %3360 = vmatprep.subr.mxu0 0.0
    %3361 = vmatpush1.msra.mxu0 0.0
    %3362 = vmatprep.subr.mxu0 0.0
    %3363 = vmatpush1.msra.mxu0 0.0
    %3364 = vmatprep.subr.mxu0 0.0
    %3365 = vmatpush1.msra.mxu0 0.0
    %3366 = vmatprep.subr.mxu0 0.0
    %3367 = vmatpush1.msra.mxu0 0.0
    %3368 = vmatprep.mubr.f32.mxu0 0.0
    %3369 = vmatmul.mubr.f32.gmra.mrb[0].mxu0 %v3302
    %v3370 = vpop.f32.mrb[0].mxu0
    %v3371 = vadd.f32 0.0, %v3370
    %v3372 = vpop.f32.mrb[0].mxu0
    %3373 = vdwg.mxu0
    %3375 = vrot.lane.b32.xlu0 %v2496, 8
    %v3376 = vpop.permute.xlu0 %3375
    %3379 = vrot.lane.b32.xlu0 %v2846, 16
    %v3380 = vpop.permute.xlu0 %3379
    %3383 = vrot.lane.b32.xlu0 %v3196, 24
    %v3384 = vpop.permute.xlu0 %3383
    %v3386 = vsel %vm364, %v2149, %v3376
    %v3387 = vsel %vm1716, %v3386, %v3380
    %v3388 = vsel %vm1718, %v3387, %v3384
    %3390 = vrot.lane.b32.xlu0 %v2671, 8
    %v3391 = vpop.permute.xlu0 %3390
    %3394 = vrot.lane.b32.xlu0 %v3021, 16
    %v3395 = vpop.permute.xlu0 %3394
    %3398 = vrot.lane.b32.xlu0 %v3371, 24
    %v3399 = vpop.permute.xlu0 %3398
    %v3401 = vsel %vm364, %v2321, %v3391
    %v3402 = vsel %vm1716, %v3401, %v3395
    %v3403 = vsel %vm1718, %v3402, %v3399
    %v3404 = vadd.f32 %v1735, %v3388
    %v3405 = vadd.f32 %v1736, %v3403
    %v3406 = vld [vmem:[#allocation16] sm:$0x1]
    %v3407 = vld [vmem:[#allocation17] sm:$0x1]
    %v3408 = vsel %vm226, %v3404, 0.0
    %3409 = vadd.xlane.f32.xlu0 %v3408
    %v3410 = vpop.xlane.xlu0 %3409
    %v3411 = vsel %vm226, %v3405, 0.0
    %3412 = vadd.xlane.f32.xlu0 %v3411
    %v3413 = vpop.xlane.xlu0 %3412
    %v3414 = vmul.f32 %v3410, 0.03125
    %v3415 = vmul.f32 %v3413, 0.03125
    %v3416 = vsub.f32 %v3404, %v3414
    %v3417 = vsub.f32 %v3405, %v3415
    %v3418 = vmul.f32 %v3416, %v3416
    %v3419 = vmul.f32 %v3417, %v3417
    %v3420 = vsel %vm226, %v3418, 0.0
    %3421 = vadd.xlane.f32.xlu0 %v3420
    %v3422 = vpop.xlane.xlu0 %3421
    %v3423 = vsel %vm226, %v3419, 0.0
    %3424 = vadd.xlane.f32.xlu0 %v3423
    %v3425 = vpop.xlane.xlu0 %3424
    %v3426 = vmul.f32 %v3422, 0.03125
    %v3427 = vmul.f32 %v3425, 0.03125
    %v3428 = vadd.f32 %v3426, 1e-05
    %v3429 = vadd.f32 %v3427, 1e-05
    %v3430 = vrsqrt.pop %v3428
    %v3431 = vrsqrt.pop %v3429
    %v3432 = vmul.f32 %v3416, %v3430
    %v3433 = vmul.f32 %v3417, %v3431
    %v3435 = vlaneseq
    %v3436 = vshrl.u32 %v3435, 7
    %v3437 = vsub.s32 0, %v3436
    %v3438 = vrot.slane %v3406, %v3437
    %v3440 = vmul.f32 %v3432, %v3438
    %v3441 = vmul.f32 %v3433, %v3438
    %v3443 = vlaneseq
    %v3444 = vshrl.u32 %v3443, 7
    %v3445 = vsub.s32 0, %v3444
    %v3446 = vrot.slane %v3407, %v3445
    %v3448 = vadd.f32 %v3440, %v3446
    %v3449 = vadd.f32 %v3441, %v3446
    %v3450 = vld [vmem:[#allocation19] sm:$0xff]
    %v3451 = vld [vmem:[#allocation19 + $0x8] sm:$0xff]
    %v3452 = vld [vmem:[#allocation19 + $0x10] sm:$0xff]
    %v3453 = vld [vmem:[#allocation19 + $0x18] sm:$0xff]
    %v3454 = vld [vmem:[#allocation20] sm:$0x1]
    %v3456 = vlaneseq
    %v3457 = vshrl.u32 %v3456, 7
    %v3458 = vsub.s32 0, %v3457
    %v3459 = vrot.slane %v3454, %v3458
    %v3462 = vsel %vm226, %v3448, 0
    %v3465 = vsel %vm226, %v3449, 0
    %3467 = vmatprep.subr.mxu0 0.0
    %3468 = vmatpush1.msra.mxu0 %v3450
    %3469 = vmatprep.subr.mxu0 0.0
    %3470 = vmatpush1.msra.mxu0 %v3451
    %3471 = vmatprep.subr.mxu0 0.0
    %3472 = vmatpush1.msra.mxu0 %v3452
    %3473 = vmatprep.subr.mxu0 0.0
    %3474 = vmatpush1.msra.mxu0 %v3453
    %3475 = vmatprep.subr.mxu0 0.0
    %3476 = vmatpush1.msra.mxu0 0.0
    %3477 = vmatprep.subr.mxu0 0.0
    %3478 = vmatpush1.msra.mxu0 0.0
    %3479 = vmatprep.subr.mxu0 0.0
    %3480 = vmatpush1.msra.mxu0 0.0
    %3481 = vmatprep.subr.mxu0 0.0
    %3482 = vmatpush1.msra.mxu0 0.0
    %3483 = vmatprep.subr.mxu0 0.0
    %3484 = vmatpush1.msra.mxu0 0.0
    %3485 = vmatprep.subr.mxu0 0.0
    %3486 = vmatpush1.msra.mxu0 0.0
    %3487 = vmatprep.subr.mxu0 0.0
    %3488 = vmatpush1.msra.mxu0 0.0
    %3489 = vmatprep.subr.mxu0 0.0
    %3490 = vmatpush1.msra.mxu0 0.0
    %3491 = vmatprep.subr.mxu0 0.0
    %3492 = vmatpush1.msra.mxu0 0.0
    %3493 = vmatprep.subr.mxu0 0.0
    %3494 = vmatpush1.msra.mxu0 0.0
    %3495 = vmatprep.subr.mxu0 0.0
    %3496 = vmatpush1.msra.mxu0 0.0
    %3497 = vmatprep.subr.mxu0 0.0
    %3498 = vmatpush1.msra.mxu0 0.0
    %3499 = vmatprep.subr.mxu0 0.0
    %3500 = vmatpush1.msra.mxu0 0.0
    %3501 = vmatprep.subr.mxu0 0.0
    %3502 = vmatpush1.msra.mxu0 0.0
    %3503 = vmatprep.subr.mxu0 0.0
    %3504 = vmatpush1.msra.mxu0 0.0
    %3505 = vmatprep.subr.mxu0 0.0
    %3506 = vmatpush1.msra.mxu0 0.0
    %3507 = vmatprep.subr.mxu0 0.0
    %3508 = vmatpush1.msra.mxu0 0.0
    %3509 = vmatprep.subr.mxu0 0.0
    %3510 = vmatpush1.msra.mxu0 0.0
    %3511 = vmatprep.subr.mxu0 0.0
    %3512 = vmatpush1.msra.mxu0 0.0
    %3513 = vmatprep.subr.mxu0 0.0
    %3514 = vmatpush1.msra.mxu0 0.0
    %3515 = vmatprep.subr.mxu0 0.0
    %3516 = vmatpush1.msra.mxu0 0.0
    %3517 = vmatprep.subr.mxu0 0.0
    %3518 = vmatpush1.msra.mxu0 0.0
    %3519 = vmatprep.subr.mxu0 0.0
    %3520 = vmatpush1.msra.mxu0 0.0
    %3521 = vmatprep.subr.mxu0 0.0
    %3522 = vmatpush1.msra.mxu0 0.0
    %3523 = vmatprep.subr.mxu0 0.0
    %3524 = vmatpush1.msra.mxu0 0.0
    %3525 = vmatprep.subr.mxu0 0.0
    %3526 = vmatpush1.msra.mxu0 0.0
    %3527 = vmatprep.subr.mxu0 0.0
    %3528 = vmatpush1.msra.mxu0 0.0
    %3529 = vmatprep.subr.mxu0 0.0
    %3530 = vmatpush1.msra.mxu0 0.0
    %3531 = vmatprep.mubr.f32.mxu0 0.0
    %3532 = vmatmul.mubr.f32.gmra.mrb[0].mxu0 %v3462
    %v3533 = vpop.f32.mrb[0].mxu0
    %v3534 = vadd.f32 %v3459, %v3533
    %v3535 = vpop.f32.mrb[0].mxu0
    %3536 = vmatprep.mubr.f32.mxu0 0.0
    %3537 = vmatmul.mubr.f32.gmra.mrb[0].mxu0 %v3465
    %v3538 = vpop.f32.mrb[0].mxu0
    %v3539 = vadd.f32 %v3459, %v3538
    %v3540 = vpop.f32.mrb[0].mxu0
    %3541 = vdwg.mxu0
    %v3542 = vmax.f32 %v3534, 0.0
    %v3543 = vmax.f32 %v3539, 0.0
    %v3544 = vld [vmem:[%s16] sm:$0xff]
    %v3545 = vld [vmem:[%s16 + $0x8] sm:$0xff]
    %v3546 = vld [vmem:[%s16 + $0x10] sm:$0xff]
    %v3547 = vld [vmem:[%s16 + $0x18] sm:$0xff]
    %v3548 = vld [vmem:[%s16 + $0x20] sm:$0xff]
    %v3549 = vld [vmem:[%s16 + $0x28] sm:$0xff]
    %v3550 = vld [vmem:[%s16 + $0x30] sm:$0xff]
    %v3551 = vld [vmem:[%s16 + $0x38] sm:$0xff]
    %v3552 = vld [vmem:[#allocation22] sm:$0x1]
    %v3554 = vlaneseq
    %v3555 = vshrl.u32 %v3554, 7
    %v3556 = vsub.s32 0, %v3555
    %v3557 = vrot.slane %v3552, %v3556
    %vm3559 = vcmask 523264
    %v3561 = vsel %vm3559, %v3542, 0
    %v3564 = vsel %vm3559, %v3543, 0
    %3566 = vmatprep.subr.mxu0 0.0
    %3567 = vmatpush1.msra.mxu0 %v3544
    %3568 = vmatprep.subr.mxu0 0.0
    %3569 = vmatpush1.msra.mxu0 %v3545
    %3570 = vmatprep.subr.mxu0 0.0
    %3571 = vmatpush1.msra.mxu0 %v3546
    %3572 = vmatprep.subr.mxu0 0.0
    %3573 = vmatpush1.msra.mxu0 %v3547
    %3574 = vmatprep.subr.mxu0 0.0
    %3575 = vmatpush1.msra.mxu0 %v3548
    %3576 = vmatprep.subr.mxu0 0.0
    %3577 = vmatpush1.msra.mxu0 %v3549
    %3578 = vmatprep.subr.mxu0 0.0
    %3579 = vmatpush1.msra.mxu0 %v3550
    %3580 = vmatprep.subr.mxu0 0.0
    %3581 = vmatpush1.msra.mxu0 %v3551
    %3582 = vmatprep.subr.mxu0 0.0
    %3583 = vmatpush1.msra.mxu0 0.0
    %3584 = vmatprep.subr.mxu0 0.0
    %3585 = vmatpush1.msra.mxu0 0.0
    %3586 = vmatprep.subr.mxu0 0.0
    %3587 = vmatpush1.msra.mxu0 0.0
    %3588 = vmatprep.subr.mxu0 0.0
    %3589 = vmatpush1.msra.mxu0 0.0
    %3590 = vmatprep.subr.mxu0 0.0
    %3591 = vmatpush1.msra.mxu0 0.0
    %3592 = vmatprep.subr.mxu0 0.0
    %3593 = vmatpush1.msra.mxu0 0.0
    %3594 = vmatprep.subr.mxu0 0.0
    %3595 = vmatpush1.msra.mxu0 0.0
    %3596 = vmatprep.subr.mxu0 0.0
    %3597 = vmatpush1.msra.mxu0 0.0
    %3598 = vmatprep.subr.mxu0 0.0
    %3599 = vmatpush1.msra.mxu0 0.0
    %3600 = vmatprep.subr.mxu0 0.0
    %3601 = vmatpush1.msra.mxu0 0.0
    %3602 = vmatprep.subr.mxu0 0.0
    %3603 = vmatpush1.msra.mxu0 0.0
    %3604 = vmatprep.subr.mxu0 0.0
    %3605 = vmatpush1.msra.mxu0 0.0
    %3606 = vmatprep.subr.mxu0 0.0
    %3607 = vmatpush1.msra.mxu0 0.0
    %3608 = vmatprep.subr.mxu0 0.0
    %3609 = vmatpush1.msra.mxu0 0.0
    %3610 = vmatprep.subr.mxu0 0.0
    %3611 = vmatpush1.msra.mxu0 0.0
    %3612 = vmatprep.subr.mxu0 0.0
    %3613 = vmatpush1.msra.mxu0 0.0
    %3614 = vmatprep.subr.mxu0 0.0
    %3615 = vmatpush1.msra.mxu0 0.0
    %3616 = vmatprep.subr.mxu0 0.0
    %3617 = vmatpush1.msra.mxu0 0.0
    %3618 = vmatprep.subr.mxu0 0.0
    %3619 = vmatpush1.msra.mxu0 0.0
    %3620 = vmatprep.subr.mxu0 0.0
    %3621 = vmatpush1.msra.mxu0 0.0
    %3622 = vmatprep.subr.mxu0 0.0
    %3623 = vmatpush1.msra.mxu0 0.0
    %3624 = vmatprep.subr.mxu0 0.0
    %3625 = vmatpush1.msra.mxu0 0.0
    %3626 = vmatprep.subr.mxu0 0.0
    %3627 = vmatpush1.msra.mxu0 0.0
    %3628 = vmatprep.subr.mxu0 0.0
    %3629 = vmatpush1.msra.mxu0 0.0
    %3630 = vmatprep.mubr.f32.mxu0 0.0
    %3631 = vmatmul.mubr.f32.gmra.mrb[0].mxu0 %v3561
    %v3632 = vpop.f32.mrb[0].mxu0
    %v3633 = vadd.f32 %v3557, %v3632
    %v3634 = vpop.f32.mrb[0].mxu0
    %3635 = vmatprep.mubr.f32.mxu0 0.0
    %3636 = vmatmul.mubr.f32.gmra.mrb[0].mxu0 %v3564
    %v3637 = vpop.f32.mrb[0].mxu0
    %v3638 = vadd.f32 %v3557, %v3637
    %v3639 = vpop.f32.mrb[0].mxu0
    %3640 = vdwg.mxu0
    %v3641 = vadd.f32 %v3404, %v3633
    %v3642 = vadd.f32 %v3405, %v3638
    %3643 = vst.msk [vmem:[#allocation23] sm:$0xff] %vm226, %v3641
    %3644 = vst.msk [vmem:[#allocation23 + $0x8] sm:$0xff] %vm226, %v3642
    // Predicated region
    $region126: #{transformer_decoder_layer.1} parent=1 // pred_check
      _
    $region127: #{transformer_decoder_layer.1} parent=1 // pred_check_branch
      %3646 = sbr.rel (0) target = $region129
    $region128: #{transformer_decoder_layer.1} parent=1 // pred_region
      %s3648 = ssub.s32 256, 256
      %3649 = vsyncadd [#allocation4], %s3648
      %s3650 = sshll.u32 [#allocation23], 4
      %s3651 = int_to_ptr.vmem [resolvable:$true] %s3650
      %3656 = dma.vmem_to_hbm [thread:$0]  %s3651, 256, %s18, [#allocation4], 128, 128, 8
    $region129: #{transformer_decoder_layer.1} parent=1 // pred_fallthru
      _
    // Predicated region
    $region130: #{transformer_decoder_layer.1} parent=1 // pred_check
      _
    $region131: #{transformer_decoder_layer.1} parent=1 // pred_check_branch
      %3658 = sbr.rel (0) target = $region133
    $region132: #{transformer_decoder_layer.1} parent=1 // pred_region
      %s3660 = ssub.s32 1024, 1024
      %3661 = vsyncadd [#allocation25], %s3660
      %s3662 = sshll.u32 [#allocation24], 4
      %s3663 = int_to_ptr.vmem [resolvable:$true] %s3662
      %3668 = dma.vmem_to_hbm [thread:$0]  %s3663, 1024, %s19, [#allocation25], 128, 128, 8
    $region133: #{transformer_decoder_layer.1} parent=1 // pred_fallthru
      _
    // Predicated region
    $region134: #{transformer_decoder_layer.1} parent=1 // pred_check
      _
    $region135: #{transformer_decoder_layer.1} parent=1 // pred_check_branch
      %3670 = sbr.rel (0) target = $region137
    $region136: #{transformer_decoder_layer.1} parent=1 // pred_region
      %s3672 = ssub.s32 1024, 1024
      %3673 = vsyncadd [#allocation25], %s3672
      %s3674 = sshll.u32 [#allocation26], 4
      %s3675 = int_to_ptr.vmem [resolvable:$true] %s3674
      %3680 = dma.vmem_to_hbm [thread:$0]  %s3675, 1024, %s20, [#allocation25], 128, 128, 8
    $region137: #{transformer_decoder_layer.1} parent=1 // pred_fallthru
      _
    // Predicated region
    $region138: #{transformer_decoder_layer.1} parent=1 // pred_check
      _
    $region139: #{transformer_decoder_layer.1} parent=1 // pred_check_branch
      %3682 = sbr.rel (0) target = $region141
    $region140: #{transformer_decoder_layer.1} parent=1 // pred_region
      %3683 = dma.done [#allocation4], 256
    $region141: #{transformer_decoder_layer.1} parent=1 // pred_fallthru
      _
    // Predicated region
    $region142: #{transformer_decoder_layer.1} parent=1 // pred_check
      _
    $region143: #{transformer_decoder_layer.1} parent=1 // pred_check_branch
      %3685 = sbr.rel (0) target = $region145
    $region144: #{transformer_decoder_layer.1} parent=1 // pred_region
      %3686 = dma.done [#allocation25], 1024
    $region145: #{transformer_decoder_layer.1} parent=1 // pred_fallthru
      _
    // Predicated region
    $region146: #{transformer_decoder_layer.1} parent=1 // pred_check
      _
    $region147: #{transformer_decoder_layer.1} parent=1 // pred_check_branch
      %3688 = sbr.rel (0) target = $region149
    $region148: #{transformer_decoder_layer.1} parent=1 // pred_region
      %3689 = dma.done [#allocation25], 1024
    $region149: #{transformer_decoder_layer.1} parent=1 // pred_fallthru
      _
    %3690 = vsyncpa [#allocation3], 1
    %3691 = vsyncpa [#allocation6], 1
    %3692 = vsyncpa [#allocation9], 1
    %3693 = vsyncpa [#allocation12], 1
    %3694 = vsyncpa [#allocation15], 1
    %3695 = vsyncpa [#allocation18], 1
    %3696 = vsyncpa [#allocation21], 1
    %3697 = vsyncpa [#allocation4], 1
    %3698 = vsyncpa [#allocation25], 1

</llo_original>
